<compile_context>
chip_gen: v5e
topology: v5e:2x2
jax: 0.10.0
libtpu: 0.0.40
codegen_flags: <defaults>
</compile_context>

<pallas_src>
import math
from functools import partial

import numpy as np
import jax
import jax.numpy as jnp
from jax.experimental import pallas as pl
from jax.experimental.pallas import tpu as pltpu


# ============================================================================
# Setup-time (numpy) math: real Wigner-3j coefficients
# ============================================================================
def _su2_cg(j1, m1, j2, m2, j3, m3):
    """Clebsch-Gordan <j1 m1; j2 m2 | j3 m3> via the Racah formula (integer l)."""
    if m1 + m2 != m3:
        return 0.0
    f = math.factorial
    pre = (2 * j3 + 1) * f(j1 + j2 - j3) * f(j1 - j2 + j3) * f(-j1 + j2 + j3) / f(j1 + j2 + j3 + 1)
    pre *= f(j3 + m3) * f(j3 - m3) * f(j1 - m1) * f(j1 + m1) * f(j2 - m2) * f(j2 + m2)
    pre = math.sqrt(pre)
    s = 0.0
    for k in range(0, j1 + j2 - j3 + 1):
        den = [k, j1 + j2 - j3 - k, j1 - m1 - k, j2 + m2 - k, j3 - j2 + m1 + k, j3 - j1 - m2 + k]
        if min(den) < 0:
            continue
        d = 1
        for v in den:
            d *= f(v)
        s += (-1) ** k / d
    return pre * s


def _wigner3j_complex(l1, l2, l3):
    W = np.zeros((2 * l1 + 1, 2 * l2 + 1, 2 * l3 + 1))
    for m1 in range(-l1, l1 + 1):
        for m2 in range(-l2, l2 + 1):
            m3 = -(m1 + m2)
            if abs(m3) > l3:
                continue
            cg = _su2_cg(l1, m1, l2, m2, l3, -m3)
            W[m1 + l1, m2 + l2, m3 + l3] = (-1) ** (l1 - l2 - m3) / math.sqrt(2 * l3 + 1) * cg
    return W


def _real_basis(l):
    """Change of basis: real spherical harmonics = U @ complex spherical harmonics."""
    U = np.zeros((2 * l + 1, 2 * l + 1), dtype=np.complex128)
    s2 = 1.0 / math.sqrt(2.0)
    for m in range(-l, l + 1):
        i = m + l
        if m == 0:
            U[i, l] = 1.0
        elif m > 0:
            U[i, l - m] = s2
            U[i, l + m] = ((-1) ** m) * s2
        else:
            a = -m
            U[i, l - a] = 1j * s2
            U[i, l + a] = -1j * ((-1) ** a) * s2
    return U


def real_wigner3j(l1, l2, l3):
    # TODO(synk): matches e3nn's o3.wigner_3j only up to basis sign/phase convention.
    W = _wigner3j_complex(l1, l2, l3).astype(np.complex128)
    U1, U2, U3 = _real_basis(l1), _real_basis(l2), _real_basis(l3)
    C = np.einsum("abc,ia,jb,kc->ijk", W, U1.conj(), U2.conj(), U3.conj())
    re, im = np.real(C), np.imag(C)
    C = re if np.linalg.norm(re) >= np.linalg.norm(im) else im
    n = np.linalg.norm(C)
    return (C / n if n > 0 else C).astype(np.float32)


# (mul, l, parity)
IRREPS_SH = [(1, 0, 1), (1, 1, -1), (1, 2, 1), (1, 3, -1)]                          # 16 dims
GATE_IRREPS_IN = [(16, 0, 1), (16, 0, -1), (8, 0, 1), (8, 0, -1), (8, 0, 1),
                  (8, 0, -1), (16, 1, -1), (16, 1, 1)]                               # 160 dims
GATE_IRREPS_OUT = [(16, 0, 1), (16, 0, 1), (16, 1, -1), (16, 1, 1)]                  # 128 dims
FINAL_IRREPS_OUT = [(1, 0, -1), (6, 0, 1)]                                           # '0o + 6x0e'
NUM_NEIGHBORS = 3.8
NUM_NODES = 4        # per-graph divisor used in Network.forward


def _irreps_offsets(irreps):
    offs, off = [], 0
    for (mul, l, _p) in irreps:
        offs.append(off)
        off += mul * (2 * l + 1)
    return offs, off


def _pad128(n):
    return max(128, ((n + 127) // 128) * 128)


def build_tp(irreps_in1, irreps_in2, irreps_out, live_mult=None):
    """FullyConnectedTensorProduct ('uvw', external per-edge weights) as a sparse
    pair-product pipeline of lane-aligned matmuls:

        pair[e,i] = (x1 @ G1)[e,i] * (sh @ G2)[e,i]     # one column per CG nonzero
        tw[e,j]   = (pair @ PG)[e,j] * (h @ W2Gw)[e,j]  # one column per weight-path nonzero
        out[e,:]  = tw @ Pout                           # place into output irreps

    `live_mult(i1, u)` prunes input-1 multiplicities that are structurally zero.
    Path normalization uses the *unpruned* fan-in (pruning is runtime-exact).
    """
    if live_mult is None:
        live_mult = lambda i1, u: True
    off1, dim1 = _irreps_offsets(irreps_in1)
    off2, dim2 = _irreps_offsets(irreps_in2)
    off3, dim3 = _irreps_offsets(irreps_out)
    ins = []
    for i1, (m1, l1, p1) in enumerate(irreps_in1):
        for i2, (m2, l2, p2) in enumerate(irreps_in2):
            assert m2 == 1, "second TP input is the multiplicity-1 spherical-harmonics irreps"
            for i3, (m3, l3, p3) in enumerate(irreps_out):
                if p1 * p2 == p3 and abs(l1 - l2) <= l3 <= l1 + l2:
                    ins.append((i1, i2, i3))
    fan = {}
    for (i1, _i2, i3) in ins:
        fan[i3] = fan.get(i3, 0) + irreps_in1[i1][0]
    toffs, woffs, T, Wnum = [], [], 0, 0
    for (i1, _i2, i3) in ins:
        m1 = irreps_in1[i1][0]
        m3, l3, _ = irreps_out[i3]
        toffs.append(T)
        woffs.append(Wnum)
        T += m1 * (2 * l3 + 1)
        Wnum += m1 * m3

    a_i, b_i, t_i, cg = [], [], [], []          # stage 1: CG nonzeros
    t2_i, wn_i, c_i, al = [], [], [], []        # stage 2: weight-path nonzeros
    for idx, (i1, i2, i3) in enumerate(ins):
        m1, l1, _ = irreps_in1[i1]
        _, l2, _ = irreps_in2[i2]
        m3, l3, _ = irreps_out[i3]
        d1, K = 2 * l1 + 1, 2 * l3 + 1
        C = real_wigner3j(l1, l2, l3)                     # (d1, d2, K)
        nz = np.argwhere(np.abs(C) > 1e-7)
        # TODO(synk): e3nn's exact path-normalization constants are not replicated.
        alpha = math.sqrt(K / fan[i3])
        for u in range(m1):
            if not live_mult(i1, u):
                continue
            for (mi, mj, mk) in nz:
                a_i.append(off1[i1] + u * d1 + int(mi))
                b_i.append(off2[i2] + int(mj))
                t_i.append(toffs[idx] + u * K + int(mk))
                cg.append(float(C[mi, mj, mk]))
            for w in range(m3):
                for k in range(K):
                    t2_i.append(toffs[idx] + u * K + k)
                    wn_i.append(woffs[idx] + u * m3 + w)
                    c_i.append(off3[i3] + w * K + k)
                    al.append(alpha)

    p1n, p2n = len(a_i), len(t2_i)
    p1p, p2p = _pad128(p1n), _pad128(p2n)
    G1 = np.zeros((dim1, p1p), np.float32)
    G1[a_i, np.arange(p1n)] = cg
    G2 = np.zeros((dim2, p1p), np.float32)
    G2[b_i, np.arange(p1n)] = 1.0
    # NOTE: PG stays because several CG nonzeros can feed one tmp slot (sum, not copy),
    # so the review's "build G1'/G2' directly in path-nonzero space" fold is invalid.
    PG = np.zeros((p1p, p2p), np.float32)
    PG[:p1n, :p2n] = (np.asarray(t_i)[:, None] == np.asarray(t2_i)[None, :]).astype(np.float32)
    Gw = np.zeros((Wnum, p2p), np.float32)
    Gw[wn_i, np.arange(p2n)] = al
    Pout = np.zeros((p2p, dim3), np.float32)
    Pout[np.arange(p2n), c_i] = 1.0
    return dict(G1=G1, G2=G2, PG=PG, Gw=Gw, Pout=Pout, weight_numel=Wnum,
                dim_in1=dim1, dim_in2=dim2, dim_out=dim3, p1p=p1p, p2p=p2p)


TP1 = build_tp(IRREPS_SH, IRREPS_SH, GATE_IRREPS_IN)              # weight_numel = 272


def _tp2_live(i1, u):
    # GATE_IRREPS_OUT = 16x0e (relu scalars) + 16x0e (abs of structurally-zero 0o)
    #                 + 16x1o + 16x1e.  SH(x)SH has no odd-scalar paths, so the abs
    # block and the tanh-gated multiplicities 8..15 of both vector blocks are
    # identically zero -> prune them from the second tensor product (exact).
    if i1 == 0:
        return True
    if i1 == 1:
        return False
    return u < 8


TP2 = build_tp(GATE_IRREPS_OUT, IRREPS_SH, FINAL_IRREPS_OUT, live_mult=_tp2_live)

# conv-1 output columns actually consumed downstream, in kernel-friendly order:
#   [16 scalars (relu) | 48 gate values, each relu-gate repeated 3x | 24 live 1o comps
#    | 24 live 1e comps] -> 112 of 160 channels.  The 3x gate expansion is a 0/1 column
# selection, which commutes with relu, so it is folded into the placement matrix.
_CM1 = list(range(0, 16))
for _g in range(8):
    _CM1 += [32 + _g] * 3          # relu gates for 1o multiplicities 0..7
for _g in range(8):
    _CM1 += [48 + _g] * 3          # relu gates for 1e multiplicities 0..7
_CM1 += list(range(64, 88))        # 1o multiplicities 0..7 (3 comps each)
_CM1 += list(range(112, 136))      # 1e multiplicities 0..7
_POUT1X = TP1["Pout"][:, _CM1]     # [p2p1, 112]

# conv-2 input matrices restricted to the live rows, packed into one slab:
#   rows 0:16  = G1 for the 16x0e scalars, 16:40 = 1o mults 0..7, 40:64 = 1e mults 0..7,
#   rows 64:80 = the SH-side 0/1 gather G2.
_G12B = np.concatenate([TP2["G1"][0:16], TP2["G1"][32:56], TP2["G1"][80:104],
                        TP2["G2"]], axis=0)                       # [80, p1p2]
_G12A = np.concatenate([TP1["G1"], TP1["G2"]], axis=0)            # [32, p1p1]

# Device-resident constants (pure 0/1 matrices shipped as bf16: exact, half the DMA).
C_G12A = jnp.asarray(_G12A)                                       # f32 [32, p1p1]
C_G12B = jnp.asarray(_G12B)                                       # f32 [80, p1p2]
C_PG1 = jnp.asarray(TP1["PG"]).astype(jnp.bfloat16)               # [p1p1, p2p1]
C_PG2 = jnp.asarray(TP2["PG"]).astype(jnp.bfloat16)               # [p1p2, p2p2]
C_PO1 = jnp.asarray(_POUT1X).astype(jnp.bfloat16)                 # [p2p1, 112]
C_PO2 = jnp.asarray(TP2["Pout"])                                  # f32 [p2p2, 7]


# ============================================================================
# Single fused Pallas kernel: scatter -> conv(TP1) -> gate -> conv(TP2) -> pool
# ============================================================================
def _network_kernel(ef_ref, sp_ref, w1_ref, g12a_ref, g12b_ref, pg1_ref, wg1_ref,
                    pg2_ref, wg2_ref, po1_ref, po2_ref, o_ref, *, num_nodes):
    f32 = jnp.float32

    def dot(a, b):
        return jnp.dot(a, b, preferred_element_type=f32)

    ef = ef_ref[...]
    sh = ef[:, 0:16]           # spherical harmonics per edge
    es = ef[:, 16:24]          # radial embedding (padded 3 -> 8)
    gat = ef[:, 24:]           # one-hot edge_src gather                        [E, N]
    sp = sp_ref[...]
    sct = sp[0:num_nodes]      # masked scatter to nodes (x 1/sqrt(num_neigh))  [N, E]
    psct = sp[num_nodes:]      # pool @ scatter: masked scatter to graphs       [G, E]

    w1 = w1_ref[...]
    g12a = g12a_ref[...]
    g12b = g12b_ref[...]
    pg1 = pg1_ref[...].astype(f32)      # 0/1 re-gather, stored bf16 (exact)
    pg2 = pg2_ref[...].astype(f32)
    po1 = po1_ref[...].astype(f32)

    # ---- conv 1: TP(x[edge_src], sh; w(edge_scalars)) scattered back to nodes ----
    x0 = dot(sct, sh)                               # [N, 16] initial node embedding
    x1g = dot(gat, dot(x0, g12a[0:16]))             # node-level x@G1 first (N << E), then gather
    pair1 = x1g * dot(sh, g12a[16:32])              # per-CG-nonzero products x1[a] * C * sh[b]
    h1 = jnp.maximum(dot(es, w1[0:8]), 0.0)         # radial MLP hidden (norms folded in weights)
    tw1 = dot(pair1, pg1) * dot(h1, wg1_ref[...])   # tmp[t] per path-nonzero, times (w2 @ Gw)
    pre = dot(dot(sct, tw1), po1)                   # [N, 112] = [scalars | gates(x3) | vectors]

    # ---- gate (live channels only; abs/tanh branches act on structural zeros) ----
    # TODO(synk): e3nn's normalize2mom activation scaling constants are omitted here.
    s_e = jnp.maximum(pre[:, 0:16], 0.0)                     # 16x0e scalars
    v = pre[:, 64:112] * jnp.maximum(pre[:, 16:64], 0.0)     # gated 1o/1e, mults 0..7

    # ---- conv 2 (pruned to the 64 live input channels) + per-graph pooling ----
    xg2 = dot(s_e, g12b[0:16]) + dot(v, g12b[16:64])
    x1g2 = dot(gat, xg2)                            # [E, p1p2]
    pair2 = x1g2 * dot(sh, g12b[64:80])
    h2 = jnp.maximum(dot(es, w1[8:16]), 0.0)
    tw2 = dot(pair2, pg2) * dot(h2, wg2_ref[...])
    o_ref[...] = dot(dot(psct, tw2), po2_ref[...])  # [num_graphs, 7]


def network_pallas(ef, sp, params, *, num_graphs, num_nodes):
    args = (ef, sp, params["w1"], C_G12A, C_G12B, C_PG1, params["w2gw1"],
            C_PG2, params["w2gw2"], C_PO1, C_PO2)
    return pl.pallas_call(
        partial(_network_kernel, num_nodes=num_nodes),
        out_shape=jax.ShapeDtypeStruct((num_graphs, TP2["dim_out"]), jnp.float32),
        grid=(1,),
        in_specs=[pl.BlockSpec(a.shape, lambda i: (0, 0)) for a in args],
        out_specs=pl.BlockSpec((num_graphs, TP2["dim_out"]), lambda i: (0, 0)),
        compiler_params=pltpu.CompilerParams(vmem_limit_bytes=32 * 1024 * 1024),
    )(*args)


# ============================================================================
# Plain-JAX glue: edges, spherical harmonics, radial embedding, parameter folds
# ============================================================================
def spherical_harmonics_0to3(u):
    """Real spherical harmonics l=0..3, 'component' normalization (||Y_l||^2 = 2l+1)."""
    # TODO(synk): e3nn's exact component ordering/sign convention may differ; this basis
    # is self-consistent with real_wigner3j above.
    x, y, z = u[:, 0:1], u[:, 1:2], u[:, 2:3]
    s3, s5, s7, s15, s42, s70, s105 = (math.sqrt(v) for v in (3., 5., 7., 15., 42., 70., 105.))
    l0 = jnp.ones_like(x)
    l1 = jnp.concatenate([s3 * y, s3 * z, s3 * x], axis=1)
    l2 = jnp.concatenate([s15 * x * y, s15 * y * z, 0.5 * s5 * (3 * z * z - 1.0),
                          s15 * x * z, 0.5 * s15 * (x * x - y * y)], axis=1)
    l3 = jnp.concatenate([
        0.25 * s70 * y * (3 * x * x - y * y),
        s105 * x * y * z,
        0.25 * s42 * y * (5 * z * z - 1.0),
        0.5 * s7 * z * (5 * z * z - 3.0),
        0.25 * s42 * x * (5 * z * z - 1.0),
        0.5 * s105 * z * (x * x - y * y),
        0.25 * s70 * x * (x * x - 3 * y * y)], axis=1)
    return jnp.concatenate([l0, l1, l2, l3], axis=1)


def soft_one_hot_smooth_finite(d, start=0.5, end=2.5, number=3):
    values = jnp.linspace(start, end, number + 2)[1:-1]
    step = (end - start) / (number + 1)
    diff = (d[:, None] - values[None, :]) / step

    def soft_unit_step(t):
        return jnp.where(t > 0.0, jnp.exp(-1.0 / jnp.where(t > 0.0, t, 1.0)), 0.0)

    # TODO(synk): 1.14136*e^2 approximates e3nn's smooth_finite basis normalization.
    return 1.14136 * math.exp(2.0) * soft_unit_step(diff + 1.0) * soft_unit_step(1.0 - diff)


def init_params(key):
    k1, k2, k3, k4 = jax.random.split(key, 4)

    def layer1(k):
        # FullyConnectedNet([3, 256, wnum], relu): fold the 1/sqrt(fan_in) factor in.
        w = jax.random.normal(k, (3, 256), jnp.float32) * (1.0 / math.sqrt(3.0))
        return jnp.concatenate([w, jnp.zeros((5, 256), jnp.float32)], axis=0)  # pad K 3 -> 8

    def layer2(k, wnum):
        # normalize2mom(relu) gain ~ sqrt(2) and 1/sqrt(256) folded in (see TODO above).
        return jax.random.normal(k, (256, wnum), jnp.float32) * (math.sqrt(2.0) / math.sqrt(256.0))

    w1 = jnp.concatenate([layer1(k1), layer1(k3)], axis=0)        # [16, 256] (conv1; conv2)
    w2a = layer2(k2, TP1["weight_numel"])
    w2b = layer2(k4, TP2["weight_numel"])
    # Exact algebraic fold: (h @ w2) @ Gw == h @ (w2 @ Gw); one matmul fewer per conv.
    w2gw1 = jnp.dot(w2a, jnp.asarray(TP1["Gw"]))                  # [256, p2p1]
    w2gw2 = jnp.dot(w2b, jnp.asarray(TP2["Gw"]))                  # [256, p2p2]
    return dict(w1=w1, w2gw1=w2gw1, w2gw2=w2gw2)


def network_forward(params, pos, batch, *, num_graphs):
    n = pos.shape[0]
    # radius_graph realized as dense masked all-ordered-pairs (static shapes for the kernel)
    src_np = np.array([i for i in range(n) for j in range(n) if j != i], dtype=np.int32)
    dst_np = np.array([j for i in range(n) for j in range(n) if j != i], dtype=np.int32)
    e = src_np.shape[0]
    e_pad = ((e + 7) // 8) * 8
    src_np = np.concatenate([src_np, np.zeros(e_pad - e, np.int32)])
    dst_np = np.concatenate([dst_np, np.zeros(e_pad - e, np.int32)])
    valid = jnp.asarray(np.concatenate([np.ones(e, np.float32), np.zeros(e_pad - e, np.float32)]))
    src, dst = jnp.asarray(src_np), jnp.asarray(dst_np)

    edge_vec = pos[src] - pos[dst]
    dist = jnp.sqrt(jnp.sum(edge_vec * edge_vec, axis=1))
    mask = valid * (batch[src] == batch[dst]).astype(jnp.float32) * (dist < 2.5).astype(jnp.float32)
    unit = edge_vec / jnp.maximum(dist, 1e-9)[:, None]

    sh = spherical_harmonics_0to3(unit)                                      # [E, 16]
    es = soft_one_hot_smooth_finite(dist) * math.sqrt(3.0)                   # [E, 3]
    es = jnp.concatenate([es, jnp.zeros((e_pad, 5), jnp.float32)], axis=1)   # [E, 8]

    gather = jnp.asarray(np.eye(n, dtype=np.float32)[src_np])                # [E, N]
    # scatter matrix: edge mask and 1/sqrt(num_neighbors) folded in once (used by the
    # initial embedding and both convs, matching the reference).
    scatter = (jnp.asarray(np.eye(n, dtype=np.float32)[dst_np]).T
               * mask[None, :]) * (1.0 / math.sqrt(NUM_NEIGHBORS))           # [N, E]
    # per-graph pooling (1/sqrt(num_nodes) folded in), pre-composed with the scatter.
    pool = jax.nn.one_hot(batch, num_graphs, dtype=jnp.float32).T * (1.0 / math.sqrt(NUM_NODES))
    pool_scatter = jnp.dot(pool, scatter)                                    # [G, E]

    ef = jnp.concatenate([sh, es, gather], axis=1)                           # [E, 24 + N]
    sp = jnp.concatenate([scatter, pool_scatter], axis=0)                    # [N + G, E]
    return network_pallas(ef, sp, params, num_graphs=num_graphs, num_nodes=n)   # [B, 7]


if __name__ == "__main__":
    key = jax.random.PRNGKey(0)
    k_pos, k_param = jax.random.split(key)
    pos = jax.random.normal(k_pos, (8, 3), dtype=jnp.float32)    # 2 graphs x 4 nodes (tetris-like)
    batch = jnp.array([0, 0, 0, 0, 1, 1, 1, 1], dtype=jnp.int32)
    params = init_params(k_param)

    fwd = jax.jit(partial(network_forward, num_graphs=2))
    out = jax.block_until_ready(fwd(params, pos, batch))
    assert out.shape == (2, 7), out.shape
    assert bool(jnp.all(jnp.isfinite(out)))
    print("KERNEL_OK")
</pallas_src>

<mosaic_0001>
module attributes {stable_mosaic.version = 11 : i64} {
  func.func @_network_kernel(%arg0: i32, %arg1: memref<56x32xf32, #tpu.memory_space<vmem>>, %arg2: memref<10x56xf32, #tpu.memory_space<vmem>>, %arg3: memref<16x256xf32, #tpu.memory_space<vmem>>, %arg4: memref<32x256xf32, #tpu.memory_space<vmem>>, %arg5: memref<80x128xf32, #tpu.memory_space<vmem>>, %arg6: memref<256x640xbf16, #tpu.memory_space<vmem>>, %arg7: memref<256x640xf32, #tpu.memory_space<vmem>>, %arg8: memref<128x256xbf16, #tpu.memory_space<vmem>>, %arg9: memref<256x256xf32, #tpu.memory_space<vmem>>, %arg10: memref<640x112xbf16, #tpu.memory_space<vmem>>, %arg11: memref<256x7xf32, #tpu.memory_space<vmem>>, %arg12: memref<2x7xf32, #tpu.memory_space<vmem>>) attributes {dimension_semantics = [#tpu.dimension_semantics<arbitrary>], iteration_bounds = array<i64: 1>, scalar_prefetch = 0 : i64, scratch_operands = 0 : i64, tpu.core_type = #tpu.core_type<tc>, window_params = [{pipeline_mode = #tpu.pipeline_mode<synchronous>, transform_indices = @transform_0, window_bounds = array<i64: 56, 32>}, {pipeline_mode = #tpu.pipeline_mode<synchronous>, transform_indices = @transform_1, window_bounds = array<i64: 10, 56>}, {pipeline_mode = #tpu.pipeline_mode<synchronous>, transform_indices = @transform_2, window_bounds = array<i64: 16, 256>}, {pipeline_mode = #tpu.pipeline_mode<synchronous>, transform_indices = @transform_3, window_bounds = array<i64: 32, 256>}, {pipeline_mode = #tpu.pipeline_mode<synchronous>, transform_indices = @transform_4, window_bounds = array<i64: 80, 128>}, {pipeline_mode = #tpu.pipeline_mode<synchronous>, transform_indices = @transform_5, window_bounds = array<i64: 256, 640>}, {pipeline_mode = #tpu.pipeline_mode<synchronous>, transform_indices = @transform_6, window_bounds = array<i64: 256, 640>}, {pipeline_mode = #tpu.pipeline_mode<synchronous>, transform_indices = @transform_7, window_bounds = array<i64: 128, 256>}, {pipeline_mode = #tpu.pipeline_mode<synchronous>, transform_indices = @transform_8, window_bounds = array<i64: 256, 256>}, {pipeline_mode = #tpu.pipeline_mode<synchronous>, transform_indices = @transform_9, window_bounds = array<i64: 640, 112>}, {pipeline_mode = #tpu.pipeline_mode<synchronous>, transform_indices = @transform_10, window_bounds = array<i64: 256, 7>}, {pipeline_mode = #tpu.pipeline_mode<synchronous>, transform_indices = @transform_11, window_bounds = array<i64: 2, 7>}]} {
    %c0 = arith.constant 0 : index
    %c0_0 = arith.constant 0 : index
    %0 = vector.load %arg1[%c0, %c0_0] : memref<56x32xf32, #tpu.memory_space<vmem>>, vector<56x32xf32>
    %1 = vector.extract_strided_slice %0 {offsets = [0, 0], sizes = [56, 16], strides = [1, 1]} : vector<56x32xf32> to vector<56x16xf32>
    %2 = vector.extract_strided_slice %0 {offsets = [0, 16], sizes = [56, 8], strides = [1, 1]} : vector<56x32xf32> to vector<56x8xf32>
    %3 = vector.extract_strided_slice %0 {offsets = [0, 24], sizes = [56, 8], strides = [1, 1]} : vector<56x32xf32> to vector<56x8xf32>
    %c0_1 = arith.constant 0 : index
    %c0_2 = arith.constant 0 : index
    %4 = vector.load %arg2[%c0_1, %c0_2] : memref<10x56xf32, #tpu.memory_space<vmem>>, vector<10x56xf32>
    %5 = vector.extract_strided_slice %4 {offsets = [0, 0], sizes = [8, 56], strides = [1, 1]} : vector<10x56xf32> to vector<8x56xf32>
    %6 = vector.extract_strided_slice %4 {offsets = [8, 0], sizes = [2, 56], strides = [1, 1]} : vector<10x56xf32> to vector<2x56xf32>
    %c0_3 = arith.constant 0 : index
    %c0_4 = arith.constant 0 : index
    %7 = vector.load %arg3[%c0_3, %c0_4] : memref<16x256xf32, #tpu.memory_space<vmem>>, vector<16x256xf32>
    %c0_5 = arith.constant 0 : index
    %c0_6 = arith.constant 0 : index
    %8 = vector.load %arg4[%c0_5, %c0_6] : memref<32x256xf32, #tpu.memory_space<vmem>>, vector<32x256xf32>
    %c0_7 = arith.constant 0 : index
    %c0_8 = arith.constant 0 : index
    %9 = vector.load %arg5[%c0_7, %c0_8] : memref<80x128xf32, #tpu.memory_space<vmem>>, vector<80x128xf32>
    %c0_9 = arith.constant 0 : index
    %c0_10 = arith.constant 0 : index
    %10 = vector.load %arg6[%c0_9, %c0_10] : memref<256x640xbf16, #tpu.memory_space<vmem>>, vector<256x640xbf16>
    %11 = arith.extf %10 : vector<256x640xbf16> to vector<256x640xf32>
    %c0_11 = arith.constant 0 : index
    %c0_12 = arith.constant 0 : index
    %12 = vector.load %arg8[%c0_11, %c0_12] : memref<128x256xbf16, #tpu.memory_space<vmem>>, vector<128x256xbf16>
    %13 = arith.extf %12 : vector<128x256xbf16> to vector<128x256xf32>
    %c0_13 = arith.constant 0 : index
    %c0_14 = arith.constant 0 : index
    %14 = vector.load %arg10[%c0_13, %c0_14] : memref<640x112xbf16, #tpu.memory_space<vmem>>, vector<640x112xbf16>
    %15 = arith.extf %14 : vector<640x112xbf16> to vector<640x112xf32>
    %cst = arith.constant dense<0.000000e+00> : vector<8x16xf32>
    %16 = tpu.matmul %5, %1, %cst {dimension_numbers = #tpu.dot_dimension_numbers<[1], [0], [0], [1], [0, 0, 1, 1], [], []>} : vector<8x56xf32>, vector<56x16xf32>, vector<8x16xf32> -> vector<8x16xf32>
    %17 = vector.extract_strided_slice %8 {offsets = [0, 0], sizes = [16, 256], strides = [1, 1]} : vector<32x256xf32> to vector<16x256xf32>
    %cst_15 = arith.constant dense<0.000000e+00> : vector<8x256xf32>
    %18 = tpu.matmul %16, %17, %cst_15 {dimension_numbers = #tpu.dot_dimension_numbers<[1], [0], [0], [1], [0, 0, 1, 1], [], []>} : vector<8x16xf32>, vector<16x256xf32>, vector<8x256xf32> -> vector<8x256xf32>
    %cst_16 = arith.constant dense<0.000000e+00> : vector<56x256xf32>
    %19 = tpu.matmul %3, %18, %cst_16 {dimension_numbers = #tpu.dot_dimension_numbers<[1], [0], [0], [1], [0, 0, 1, 1], [], []>} : vector<56x8xf32>, vector<8x256xf32>, vector<56x256xf32> -> vector<56x256xf32>
    %20 = vector.extract_strided_slice %8 {offsets = [16, 0], sizes = [16, 256], strides = [1, 1]} : vector<32x256xf32> to vector<16x256xf32>
    %cst_17 = arith.constant dense<0.000000e+00> : vector<56x256xf32>
    %21 = tpu.matmul %1, %20, %cst_17 {dimension_numbers = #tpu.dot_dimension_numbers<[1], [0], [0], [1], [0, 0, 1, 1], [], []>} : vector<56x16xf32>, vector<16x256xf32>, vector<56x256xf32> -> vector<56x256xf32>
    %22 = arith.mulf %19, %21 : vector<56x256xf32>
    %23 = vector.extract_strided_slice %7 {offsets = [0, 0], sizes = [8, 256], strides = [1, 1]} : vector<16x256xf32> to vector<8x256xf32>
    %cst_18 = arith.constant dense<0.000000e+00> : vector<56x256xf32>
    %24 = tpu.matmul %2, %23, %cst_18 {dimension_numbers = #tpu.dot_dimension_numbers<[1], [0], [0], [1], [0, 0, 1, 1], [], []>} : vector<56x8xf32>, vector<8x256xf32>, vector<56x256xf32> -> vector<56x256xf32>
    %cst_19 = arith.constant 0.000000e+00 : f32
    %25 = vector.broadcast %cst_19 : f32 to vector<56x256xf32>
    %26 = arith.maximumf %24, %25 : vector<56x256xf32>
    %cst_20 = arith.constant dense<0.000000e+00> : vector<56x640xf32>
    %27 = tpu.matmul %22, %11, %cst_20 {dimension_numbers = #tpu.dot_dimension_numbers<[1], [0], [0], [1], [0, 0, 1, 1], [], []>} : vector<56x256xf32>, vector<256x640xf32>, vector<56x640xf32> -> vector<56x640xf32>
    %c0_21 = arith.constant 0 : index
    %c0_22 = arith.constant 0 : index
    %28 = vector.load %arg7[%c0_21, %c0_22] : memref<256x640xf32, #tpu.memory_space<vmem>>, vector<256x640xf32>
    %cst_23 = arith.constant dense<0.000000e+00> : vector<56x640xf32>
    %29 = tpu.matmul %26, %28, %cst_23 {dimension_numbers = #tpu.dot_dimension_numbers<[1], [0], [0], [1], [0, 0, 1, 1], [], []>} : vector<56x256xf32>, vector<256x640xf32>, vector<56x640xf32> -> vector<56x640xf32>
    %30 = arith.mulf %27, %29 : vector<56x640xf32>
    %cst_24 = arith.constant dense<0.000000e+00> : vector<8x640xf32>
    %31 = tpu.matmul %5, %30, %cst_24 {dimension_numbers = #tpu.dot_dimension_numbers<[1], [0], [0], [1], [0, 0, 1, 1], [], []>} : vector<8x56xf32>, vector<56x640xf32>, vector<8x640xf32> -> vector<8x640xf32>
    %cst_25 = arith.constant dense<0.000000e+00> : vector<8x112xf32>
    %32 = tpu.matmul %31, %15, %cst_25 {dimension_numbers = #tpu.dot_dimension_numbers<[1], [0], [0], [1], [0, 0, 1, 1], [], []>} : vector<8x640xf32>, vector<640x112xf32>, vector<8x112xf32> -> vector<8x112xf32>
    %33 = vector.extract_strided_slice %32 {offsets = [0, 0], sizes = [8, 16], strides = [1, 1]} : vector<8x112xf32> to vector<8x16xf32>
    %cst_26 = arith.constant 0.000000e+00 : f32
    %34 = vector.broadcast %cst_26 : f32 to vector<8x16xf32>
    %35 = arith.maximumf %33, %34 : vector<8x16xf32>
    %36 = vector.extract_strided_slice %32 {offsets = [0, 64], sizes = [8, 48], strides = [1, 1]} : vector<8x112xf32> to vector<8x48xf32>
    %37 = vector.extract_strided_slice %32 {offsets = [0, 16], sizes = [8, 48], strides = [1, 1]} : vector<8x112xf32> to vector<8x48xf32>
    %cst_27 = arith.constant 0.000000e+00 : f32
    %38 = vector.broadcast %cst_27 : f32 to vector<8x48xf32>
    %39 = arith.maximumf %37, %38 : vector<8x48xf32>
    %40 = arith.mulf %36, %39 : vector<8x48xf32>
    %41 = vector.extract_strided_slice %9 {offsets = [0, 0], sizes = [16, 128], strides = [1, 1]} : vector<80x128xf32> to vector<16x128xf32>
    %cst_28 = arith.constant dense<0.000000e+00> : vector<8x128xf32>
    %42 = tpu.matmul %35, %41, %cst_28 {dimension_numbers = #tpu.dot_dimension_numbers<[1], [0], [0], [1], [0, 0, 1, 1], [], []>} : vector<8x16xf32>, vector<16x128xf32>, vector<8x128xf32> -> vector<8x128xf32>
    %43 = vector.extract_strided_slice %9 {offsets = [16, 0], sizes = [48, 128], strides = [1, 1]} : vector<80x128xf32> to vector<48x128xf32>
    %cst_29 = arith.constant dense<0.000000e+00> : vector<8x128xf32>
    %44 = tpu.matmul %40, %43, %cst_29 {dimension_numbers = #tpu.dot_dimension_numbers<[1], [0], [0], [1], [0, 0, 1, 1], [], []>} : vector<8x48xf32>, vector<48x128xf32>, vector<8x128xf32> -> vector<8x128xf32>
    %45 = arith.addf %42, %44 : vector<8x128xf32>
    %cst_30 = arith.constant dense<0.000000e+00> : vector<56x128xf32>
    %46 = tpu.matmul %3, %45, %cst_30 {dimension_numbers = #tpu.dot_dimension_numbers<[1], [0], [0], [1], [0, 0, 1, 1], [], []>} : vector<56x8xf32>, vector<8x128xf32>, vector<56x128xf32> -> vector<56x128xf32>
    %47 = vector.extract_strided_slice %9 {offsets = [64, 0], sizes = [16, 128], strides = [1, 1]} : vector<80x128xf32> to vector<16x128xf32>
    %cst_31 = arith.constant dense<0.000000e+00> : vector<56x128xf32>
    %48 = tpu.matmul %1, %47, %cst_31 {dimension_numbers = #tpu.dot_dimension_numbers<[1], [0], [0], [1], [0, 0, 1, 1], [], []>} : vector<56x16xf32>, vector<16x128xf32>, vector<56x128xf32> -> vector<56x128xf32>
    %49 = arith.mulf %46, %48 : vector<56x128xf32>
    %50 = vector.extract_strided_slice %7 {offsets = [8, 0], sizes = [8, 256], strides = [1, 1]} : vector<16x256xf32> to vector<8x256xf32>
    %cst_32 = arith.constant dense<0.000000e+00> : vector<56x256xf32>
    %51 = tpu.matmul %2, %50, %cst_32 {dimension_numbers = #tpu.dot_dimension_numbers<[1], [0], [0], [1], [0, 0, 1, 1], [], []>} : vector<56x8xf32>, vector<8x256xf32>, vector<56x256xf32> -> vector<56x256xf32>
    %cst_33 = arith.constant 0.000000e+00 : f32
    %52 = vector.broadcast %cst_33 : f32 to vector<56x256xf32>
    %53 = arith.maximumf %51, %52 : vector<56x256xf32>
    %cst_34 = arith.constant dense<0.000000e+00> : vector<56x256xf32>
    %54 = tpu.matmul %49, %13, %cst_34 {dimension_numbers = #tpu.dot_dimension_numbers<[1], [0], [0], [1], [0, 0, 1, 1], [], []>} : vector<56x128xf32>, vector<128x256xf32>, vector<56x256xf32> -> vector<56x256xf32>
    %c0_35 = arith.constant 0 : index
    %c0_36 = arith.constant 0 : index
    %55 = vector.load %arg9[%c0_35, %c0_36] : memref<256x256xf32, #tpu.memory_space<vmem>>, vector<256x256xf32>
    %cst_37 = arith.constant dense<0.000000e+00> : vector<56x256xf32>
    %56 = tpu.matmul %53, %55, %cst_37 {dimension_numbers = #tpu.dot_dimension_numbers<[1], [0], [0], [1], [0, 0, 1, 1], [], []>} : vector<56x256xf32>, vector<256x256xf32>, vector<56x256xf32> -> vector<56x256xf32>
    %57 = arith.mulf %54, %56 : vector<56x256xf32>
    %cst_38 = arith.constant dense<0.000000e+00> : vector<2x256xf32>
    %58 = tpu.matmul %6, %57, %cst_38 {dimension_numbers = #tpu.dot_dimension_numbers<[1], [0], [0], [1], [0, 0, 1, 1], [], []>} : vector<2x56xf32>, vector<56x256xf32>, vector<2x256xf32> -> vector<2x256xf32>
    %c0_39 = arith.constant 0 : index
    %c0_40 = arith.constant 0 : index
    %59 = vector.load %arg11[%c0_39, %c0_40] : memref<256x7xf32, #tpu.memory_space<vmem>>, vector<256x7xf32>
    %cst_41 = arith.constant dense<0.000000e+00> : vector<2x7xf32>
    %60 = tpu.matmul %58, %59, %cst_41 {dimension_numbers = #tpu.dot_dimension_numbers<[1], [0], [0], [1], [0, 0, 1, 1], [], []>} : vector<2x256xf32>, vector<256x7xf32>, vector<2x7xf32> -> vector<2x7xf32>
    %c0_42 = arith.constant 0 : index
    %c0_43 = arith.constant 0 : index
    %61 = vector.load %arg12[%c0_42, %c0_43] : memref<2x7xf32, #tpu.memory_space<vmem>>, vector<2x7xf32>
    tpu.vector_store %arg12[%c0_42, %c0_43], %60 {strides = array<i32>} : memref<2x7xf32, #tpu.memory_space<vmem>>, vector<2x7xf32>,
    return
  }
  func.func @transform_0(%arg0: i32) -> (i32, i32) {
    %c0_i32 = arith.constant 0 : i32
    %c0_i32_0 = arith.constant 0 : i32
    %c0_i32_1 = arith.constant 0 : i32
    return %c0_i32, %c0_i32_0 : i32, i32
  }
  func.func @transform_1(%arg0: i32) -> (i32, i32) {
    %c0_i32 = arith.constant 0 : i32
    %c0_i32_0 = arith.constant 0 : i32
    %c0_i32_1 = arith.constant 0 : i32
    return %c0_i32, %c0_i32_0 : i32, i32
  }
  func.func @transform_2(%arg0: i32) -> (i32, i32) {
    %c0_i32 = arith.constant 0 : i32
    %c0_i32_0 = arith.constant 0 : i32
    %c0_i32_1 = arith.constant 0 : i32
    return %c0_i32, %c0_i32_0 : i32, i32
  }
  func.func @transform_3(%arg0: i32) -> (i32, i32) {
    %c0_i32 = arith.constant 0 : i32
    %c0_i32_0 = arith.constant 0 : i32
    %c0_i32_1 = arith.constant 0 : i32
    return %c0_i32, %c0_i32_0 : i32, i32
  }
  func.func @transform_4(%arg0: i32) -> (i32, i32) {
    %c0_i32 = arith.constant 0 : i32
    %c0_i32_0 = arith.constant 0 : i32
    %c0_i32_1 = arith.constant 0 : i32
    return %c0_i32, %c0_i32_0 : i32, i32
  }
  func.func @transform_5(%arg0: i32) -> (i32, i32) {
    %c0_i32 = arith.constant 0 : i32
    %c0_i32_0 = arith.constant 0 : i32
    %c0_i32_1 = arith.constant 0 : i32
    return %c0_i32, %c0_i32_0 : i32, i32
  }
  func.func @transform_6(%arg0: i32) -> (i32, i32) {
    %c0_i32 = arith.constant 0 : i32
    %c0_i32_0 = arith.constant 0 : i32
    %c0_i32_1 = arith.constant 0 : i32
    return %c0_i32, %c0_i32_0 : i32, i32
  }
  func.func @transform_7(%arg0: i32) -> (i32, i32) {
    %c0_i32 = arith.constant 0 : i32
    %c0_i32_0 = arith.constant 0 : i32
    %c0_i32_1 = arith.constant 0 : i32
    return %c0_i32, %c0_i32_0 : i32, i32
  }
  func.func @transform_8(%arg0: i32) -> (i32, i32) {
    %c0_i32 = arith.constant 0 : i32
    %c0_i32_0 = arith.constant 0 : i32
    %c0_i32_1 = arith.constant 0 : i32
    return %c0_i32, %c0_i32_0 : i32, i32
  }
  func.func @transform_9(%arg0: i32) -> (i32, i32) {
    %c0_i32 = arith.constant 0 : i32
    %c0_i32_0 = arith.constant 0 : i32
    %c0_i32_1 = arith.constant 0 : i32
    return %c0_i32, %c0_i32_0 : i32, i32
  }
  func.func @transform_10(%arg0: i32) -> (i32, i32) {
    %c0_i32 = arith.constant 0 : i32
    %c0_i32_0 = arith.constant 0 : i32
    %c0_i32_1 = arith.constant 0 : i32
    return %c0_i32, %c0_i32_0 : i32, i32
  }
  func.func @transform_11(%arg0: i32) -> (i32, i32) {
    %c0_i32 = arith.constant 0 : i32
    %c0_i32_0 = arith.constant 0 : i32
    %c0_i32_1 = arith.constant 0 : i32
    return %c0_i32, %c0_i32_0 : i32, i32
  }
}

</mosaic_0001>

<llo_original>
// kernel: network_forward.1
$region0: #{network_forward.1}
  #allocation0 [shape = 'u32[]', space=smem, size = 0x4, offset = 0x4, fixed_abs, tag = 'smem constant byte address 0x4 - core index']
  #allocation1 [shape = 'u32[72,128]{1,0:T(1,128)}', space=vmem, size = 0x9000, scoped, tag = 'internal scratch']
  %s0 = inlined_call_operand.vmem [shape: f32[56,32], index: 0, kind: input, shape index: {}]
  %s1 = inlined_call_operand.vmem [shape: f32[10,56], index: 1, kind: input, shape index: {}]
  %s2 = inlined_call_operand.vmem [shape: f32[16,256], index: 2, kind: input, shape index: {}]
  %s3 = inlined_call_operand.vmem [shape: f32[32,256], index: 3, kind: input, shape index: {}]
  %s4 = inlined_call_operand.vmem [shape: f32[80,128], index: 4, kind: input, shape index: {}]
  %s5 = inlined_call_operand.vmem [shape: bf16[256,640], index: 5, kind: input, shape index: {}]
  %s6 = inlined_call_operand.vmem [shape: f32[256,640], index: 6, kind: input, shape index: {}]
  %s7 = inlined_call_operand.vmem [shape: bf16[128,256], index: 7, kind: input, shape index: {}]
  %s8 = inlined_call_operand.vmem [shape: f32[256,256], index: 8, kind: input, shape index: {}]
  %s9 = inlined_call_operand.vmem [shape: bf16[640,112], index: 9, kind: input, shape index: {}]
  %s10 = inlined_call_operand.vmem [shape: f32[256,7], index: 10, kind: input, shape index: {}]
  %s11 = inlined_call_operand.hbm [shape: f32[2,7], index: 11, kind: output, shape index: {}]
  %s12 = sld [smem:[#allocation0]]
  $region54: #{network_forward.1} parent=0
    _
  %s14 = ssub.s32 1, %s12
  %s15 = scalar_select 0, %s14, %s12
  $region1: #{network_forward.1} parent=0
    #allocation2 [shape = 'u8[1024]{0}', space=vmem, size = 0x400, scoped, tag = 'output window, operand 0, single buffered']
    #allocation3 [shape = 's32[1]{0}', space=sflag, size = 0x4, scoped, tag = 'scoped memory for network_forward.1']
    %16 = vsyncpa [#allocation3], 0
    // Predicated region
    $region2: #{network_forward.1} parent=1 // pred_check
      _
    $region3: #{network_forward.1} parent=1 // pred_check_branch
      %18 = sbr.rel (0) target = $region5
    $region4: #{network_forward.1} parent=1 // pred_region
      _
    $region5: #{network_forward.1} parent=1 // pred_fallthru
      _
    // Predicated region
    $region6: #{network_forward.1} parent=1 // pred_check
      _
    $region7: #{network_forward.1} parent=1 // pred_check_branch
      %20 = sbr.rel (0) target = $region9
    $region8: #{network_forward.1} parent=1 // pred_region
      _
    $region9: #{network_forward.1} parent=1 // pred_fallthru
      _
    // Predicated region
    $region10: #{network_forward.1} parent=1 // pred_check
      _
    $region11: #{network_forward.1} parent=1 // pred_check_branch
      %22 = sbr.rel (0) target = $region13
    $region12: #{network_forward.1} parent=1 // pred_region
      _
    $region13: #{network_forward.1} parent=1 // pred_fallthru
      _
    // Predicated region
    $region14: #{network_forward.1} parent=1 // pred_check
      _
    $region15: #{network_forward.1} parent=1 // pred_check_branch
      %24 = sbr.rel (0) target = $region17
    $region16: #{network_forward.1} parent=1 // pred_region
      _
    $region17: #{network_forward.1} parent=1 // pred_fallthru
      _
    // Predicated region
    $region18: #{network_forward.1} parent=1 // pred_check
      _
    $region19: #{network_forward.1} parent=1 // pred_check_branch
      %26 = sbr.rel (0) target = $region21
    $region20: #{network_forward.1} parent=1 // pred_region
      _
    $region21: #{network_forward.1} parent=1 // pred_fallthru
      _
    // Predicated region
    $region22: #{network_forward.1} parent=1 // pred_check
      _
    $region23: #{network_forward.1} parent=1 // pred_check_branch
      %28 = sbr.rel (0) target = $region25
    $region24: #{network_forward.1} parent=1 // pred_region
      _
    $region25: #{network_forward.1} parent=1 // pred_fallthru
      _
    // Predicated region
    $region26: #{network_forward.1} parent=1 // pred_check
      _
    $region27: #{network_forward.1} parent=1 // pred_check_branch
      %30 = sbr.rel (0) target = $region29
    $region28: #{network_forward.1} parent=1 // pred_region
      _
    $region29: #{network_forward.1} parent=1 // pred_fallthru
      _
    // Predicated region
    $region30: #{network_forward.1} parent=1 // pred_check
      _
    $region31: #{network_forward.1} parent=1 // pred_check_branch
      %32 = sbr.rel (0) target = $region33
    $region32: #{network_forward.1} parent=1 // pred_region
      _
    $region33: #{network_forward.1} parent=1 // pred_fallthru
      _
    // Predicated region
    $region34: #{network_forward.1} parent=1 // pred_check
      _
    $region35: #{network_forward.1} parent=1 // pred_check_branch
      %34 = sbr.rel (0) target = $region37
    $region36: #{network_forward.1} parent=1 // pred_region
      _
    $region37: #{network_forward.1} parent=1 // pred_fallthru
      _
    // Predicated region
    $region38: #{network_forward.1} parent=1 // pred_check
      _
    $region39: #{network_forward.1} parent=1 // pred_check_branch
      %36 = sbr.rel (0) target = $region41
    $region40: #{network_forward.1} parent=1 // pred_region
      _
    $region41: #{network_forward.1} parent=1 // pred_fallthru
      _
    // Predicated region
    $region42: #{network_forward.1} parent=1 // pred_check
      _
    $region43: #{network_forward.1} parent=1 // pred_check_branch
      %38 = sbr.rel (0) target = $region45
    $region44: #{network_forward.1} parent=1 // pred_region
      _
    $region45: #{network_forward.1} parent=1 // pred_fallthru
      _
    %v39 = vld [vmem:[%s0] sm:$0xff]
    %v40 = vld [vmem:[%s0 + $0x8] sm:$0xff]
    %v41 = vld [vmem:[%s0 + $0x10] sm:$0xff]
    %v42 = vld [vmem:[%s0 + $0x18] sm:$0xff]
    %v43 = vld [vmem:[%s0 + $0x20] sm:$0xff]
    %v44 = vld [vmem:[%s0 + $0x28] sm:$0xff]
    %v45 = vld [vmem:[%s0 + $0x30] sm:$0xff]
    %v46 = vld [vmem:[%s1] sm:$0xff]
    %v47 = vld [vmem:[%s1 + $0x8] sm:$0x3]
    %v48 = vld [vmem:[%s2] sm:$0xff]
    %v49 = vld [vmem:[%s2 + $0x8] sm:$0xff]
    %v50 = vld [vmem:[%s2 + $0x10] sm:$0xff]
    %v51 = vld [vmem:[%s2 + $0x18] sm:$0xff]
    %v52 = vld [vmem:[%s3] sm:$0xff]
    %v53 = vld [vmem:[%s3 + $0x8] sm:$0xff]
    %v54 = vld [vmem:[%s3 + $0x10] sm:$0xff]
    %v55 = vld [vmem:[%s3 + $0x18] sm:$0xff]
    %v56 = vld [vmem:[%s3 + $0x20] sm:$0xff]
    %v57 = vld [vmem:[%s3 + $0x28] sm:$0xff]
    %v58 = vld [vmem:[%s3 + $0x30] sm:$0xff]
    %v59 = vld [vmem:[%s3 + $0x38] sm:$0xff]
    %v60 = vld [vmem:[%s4] sm:$0xff]
    %v61 = vld [vmem:[%s4 + $0x8] sm:$0xff]
    %v62 = vld [vmem:[%s4 + $0x10] sm:$0xff]
    %v63 = vld [vmem:[%s4 + $0x18] sm:$0xff]
    %v64 = vld [vmem:[%s4 + $0x20] sm:$0xff]
    %v65 = vld [vmem:[%s4 + $0x28] sm:$0xff]
    %v66 = vld [vmem:[%s4 + $0x30] sm:$0xff]
    %v67 = vld [vmem:[%s4 + $0x38] sm:$0xff]
    %v68 = vld [vmem:[%s4 + $0x40] sm:$0xff]
    %v69 = vld [vmem:[%s4 + $0x48] sm:$0xff]
    %v70 = vld [vmem:[%s5] sm:$0xff]
    %v71 = vld [vmem:[%s5 + $0x8] sm:$0xff]
    %v72 = vld [vmem:[%s5 + $0x10] sm:$0xf]
    %v73 = vld [vmem:[%s5 + $0x14] sm:$0xff]
    %v74 = vld [vmem:[%s5 + $0x1c] sm:$0xff]
    %v75 = vld [vmem:[%s5 + $0x24] sm:$0xf]
    %v76 = vld [vmem:[%s5 + $0x28] sm:$0xff]
    %v77 = vld [vmem:[%s5 + $0x30] sm:$0xff]
    %v78 = vld [vmem:[%s5 + $0x38] sm:$0xf]
    %v79 = vld [vmem:[%s5 + $0x3c] sm:$0xff]
    %v80 = vld [vmem:[%s5 + $0x44] sm:$0xff]
    %v81 = vld [vmem:[%s5 + $0x4c] sm:$0xf]
    %v82 = vld [vmem:[%s5 + $0x50] sm:$0xff]
    %v83 = vld [vmem:[%s5 + $0x58] sm:$0xff]
    %v84 = vld [vmem:[%s5 + $0x60] sm:$0xf]
    %v85 = vld [vmem:[%s5 + $0x64] sm:$0xff]
    %v86 = vld [vmem:[%s5 + $0x6c] sm:$0xff]
    %v87 = vld [vmem:[%s5 + $0x74] sm:$0xf]
    %v88 = vld [vmem:[%s5 + $0x78] sm:$0xff]
    %v89 = vld [vmem:[%s5 + $0x80] sm:$0xff]
    %v90 = vld [vmem:[%s5 + $0x88] sm:$0xf]
    %v91 = vld [vmem:[%s5 + $0x8c] sm:$0xff]
    %v92 = vld [vmem:[%s5 + $0x94] sm:$0xff]
    %v93 = vld [vmem:[%s5 + $0x9c] sm:$0xf]
    %v94 = vld [vmem:[%s5 + $0xa0] sm:$0xff]
    %v95 = vld [vmem:[%s5 + $0xa8] sm:$0xff]
    %v96 = vld [vmem:[%s5 + $0xb0] sm:$0xf]
    %v97 = vld [vmem:[%s5 + $0xb4] sm:$0xff]
    %v98 = vld [vmem:[%s5 + $0xbc] sm:$0xff]
    %v99 = vld [vmem:[%s5 + $0xc4] sm:$0xf]
    %v100 = vld [vmem:[%s5 + $0xc8] sm:$0xff]
    %v101 = vld [vmem:[%s5 + $0xd0] sm:$0xff]
    %v102 = vld [vmem:[%s5 + $0xd8] sm:$0xf]
    %v103 = vld [vmem:[%s5 + $0xdc] sm:$0xff]
    %v104 = vld [vmem:[%s5 + $0xe4] sm:$0xff]
    %v105 = vld [vmem:[%s5 + $0xec] sm:$0xf]
    %v106 = vld [vmem:[%s5 + $0xf0] sm:$0xff]
    %v107 = vld [vmem:[%s5 + $0xf8] sm:$0xff]
    %v108 = vld [vmem:[%s5 + $0x100] sm:$0xf]
    %v109 = vld [vmem:[%s5 + $0x104] sm:$0xff]
    %v110 = vld [vmem:[%s5 + $0x10c] sm:$0xff]
    %v111 = vld [vmem:[%s5 + $0x114] sm:$0xf]
    %v112 = vld [vmem:[%s5 + $0x118] sm:$0xff]
    %v113 = vld [vmem:[%s5 + $0x120] sm:$0xff]
    %v114 = vld [vmem:[%s5 + $0x128] sm:$0xf]
    %v115 = vld [vmem:[%s5 + $0x12c] sm:$0xff]
    %v116 = vld [vmem:[%s5 + $0x134] sm:$0xff]
    %v117 = vld [vmem:[%s5 + $0x13c] sm:$0xf]
    %v118 = vld [vmem:[%s5 + $0x140] sm:$0xff]
    %v119 = vld [vmem:[%s5 + $0x148] sm:$0xff]
    %v120 = vld [vmem:[%s5 + $0x150] sm:$0xf]
    %v121 = vld [vmem:[%s5 + $0x154] sm:$0xff]
    %v122 = vld [vmem:[%s5 + $0x15c] sm:$0xff]
    %v123 = vld [vmem:[%s5 + $0x164] sm:$0xf]
    %v124 = vld [vmem:[%s5 + $0x168] sm:$0xff]
    %v125 = vld [vmem:[%s5 + $0x170] sm:$0xff]
    %v126 = vld [vmem:[%s5 + $0x178] sm:$0xf]
    %v127 = vld [vmem:[%s5 + $0x17c] sm:$0xff]
    %v128 = vld [vmem:[%s5 + $0x184] sm:$0xff]
    %v129 = vld [vmem:[%s5 + $0x18c] sm:$0xf]
    %v130 = vld [vmem:[%s5 + $0x190] sm:$0xff]
    %v131 = vld [vmem:[%s5 + $0x198] sm:$0xff]
    %v132 = vld [vmem:[%s5 + $0x1a0] sm:$0xf]
    %v133 = vld [vmem:[%s5 + $0x1a4] sm:$0xff]
    %v134 = vld [vmem:[%s5 + $0x1ac] sm:$0xff]
    %v135 = vld [vmem:[%s5 + $0x1b4] sm:$0xf]
    %v136 = vld [vmem:[%s5 + $0x1b8] sm:$0xff]
    %v137 = vld [vmem:[%s5 + $0x1c0] sm:$0xff]
    %v138 = vld [vmem:[%s5 + $0x1c8] sm:$0xf]
    %v139 = vld [vmem:[%s5 + $0x1cc] sm:$0xff]
    %v140 = vld [vmem:[%s5 + $0x1d4] sm:$0xff]
    %v141 = vld [vmem:[%s5 + $0x1dc] sm:$0xf]
    %v142 = vld [vmem:[%s5 + $0x1e0] sm:$0xff]
    %v143 = vld [vmem:[%s5 + $0x1e8] sm:$0xff]
    %v144 = vld [vmem:[%s5 + $0x1f0] sm:$0xf]
    %v145 = vld [vmem:[%s5 + $0x1f4] sm:$0xff]
    %v146 = vld [vmem:[%s5 + $0x1fc] sm:$0xff]
    %v147 = vld [vmem:[%s5 + $0x204] sm:$0xf]
    %v148 = vld [vmem:[%s5 + $0x208] sm:$0xff]
    %v149 = vld [vmem:[%s5 + $0x210] sm:$0xff]
    %v150 = vld [vmem:[%s5 + $0x218] sm:$0xf]
    %v151 = vld [vmem:[%s5 + $0x21c] sm:$0xff]
    %v152 = vld [vmem:[%s5 + $0x224] sm:$0xff]
    %v153 = vld [vmem:[%s5 + $0x22c] sm:$0xf]
    %v154 = vld [vmem:[%s5 + $0x230] sm:$0xff]
    %v155 = vld [vmem:[%s5 + $0x238] sm:$0xff]
    %v156 = vld [vmem:[%s5 + $0x240] sm:$0xf]
    %v157 = vld [vmem:[%s5 + $0x244] sm:$0xff]
    %v158 = vld [vmem:[%s5 + $0x24c] sm:$0xff]
    %v159 = vld [vmem:[%s5 + $0x254] sm:$0xf]
    %v160 = vld [vmem:[%s5 + $0x258] sm:$0xff]
    %v161 = vld [vmem:[%s5 + $0x260] sm:$0xff]
    %v162 = vld [vmem:[%s5 + $0x268] sm:$0xf]
    %v163 = vld [vmem:[%s5 + $0x26c] sm:$0xff]
    %v164 = vld [vmem:[%s5 + $0x274] sm:$0xff]
    %v165 = vld [vmem:[%s5 + $0x27c] sm:$0xf]
    %v166 = vunpack.c.l.bf16 %v70
    %v167 = vunpack.c.h.bf16 %v70
    %v168 = vunpack.c.l.bf16 %v71
    %v169 = vunpack.c.h.bf16 %v71
    %v170 = vunpack.c.l.bf16 %v72
    %v171 = vunpack.c.l.bf16 %v73
    %v172 = vunpack.c.h.bf16 %v73
    %v173 = vunpack.c.l.bf16 %v74
    %v174 = vunpack.c.h.bf16 %v74
    %v175 = vunpack.c.l.bf16 %v75
    %v176 = vunpack.c.l.bf16 %v76
    %v177 = vunpack.c.h.bf16 %v76
    %v178 = vunpack.c.l.bf16 %v77
    %v179 = vunpack.c.h.bf16 %v77
    %v180 = vunpack.c.l.bf16 %v78
    %v181 = vunpack.c.l.bf16 %v79
    %v182 = vunpack.c.h.bf16 %v79
    %v183 = vunpack.c.l.bf16 %v80
    %v184 = vunpack.c.h.bf16 %v80
    %v185 = vunpack.c.l.bf16 %v81
    %v186 = vunpack.c.l.bf16 %v82
    %v187 = vunpack.c.h.bf16 %v82
    %v188 = vunpack.c.l.bf16 %v83
    %v189 = vunpack.c.h.bf16 %v83
    %v190 = vunpack.c.l.bf16 %v84
    %v191 = vunpack.c.l.bf16 %v85
    %v192 = vunpack.c.h.bf16 %v85
    %v193 = vunpack.c.l.bf16 %v86
    %v194 = vunpack.c.h.bf16 %v86
    %v195 = vunpack.c.l.bf16 %v87
    %v196 = vunpack.c.l.bf16 %v88
    %v197 = vunpack.c.h.bf16 %v88
    %v198 = vunpack.c.l.bf16 %v89
    %v199 = vunpack.c.h.bf16 %v89
    %v200 = vunpack.c.l.bf16 %v90
    %v201 = vunpack.c.l.bf16 %v91
    %v202 = vunpack.c.h.bf16 %v91
    %v203 = vunpack.c.l.bf16 %v92
    %v204 = vunpack.c.h.bf16 %v92
    %v205 = vunpack.c.l.bf16 %v93
    %v206 = vunpack.c.l.bf16 %v94
    %v207 = vunpack.c.h.bf16 %v94
    %v208 = vunpack.c.l.bf16 %v95
    %v209 = vunpack.c.h.bf16 %v95
    %v210 = vunpack.c.l.bf16 %v96
    %v211 = vunpack.c.l.bf16 %v97
    %v212 = vunpack.c.h.bf16 %v97
    %v213 = vunpack.c.l.bf16 %v98
    %v214 = vunpack.c.h.bf16 %v98
    %v215 = vunpack.c.l.bf16 %v99
    %v216 = vunpack.c.l.bf16 %v100
    %v217 = vunpack.c.h.bf16 %v100
    %v218 = vunpack.c.l.bf16 %v101
    %v219 = vunpack.c.h.bf16 %v101
    %v220 = vunpack.c.l.bf16 %v102
    %v221 = vunpack.c.l.bf16 %v103
    %v222 = vunpack.c.h.bf16 %v103
    %v223 = vunpack.c.l.bf16 %v104
    %v224 = vunpack.c.h.bf16 %v104
    %v225 = vunpack.c.l.bf16 %v105
    %v226 = vunpack.c.l.bf16 %v106
    %v227 = vunpack.c.h.bf16 %v106
    %v228 = vunpack.c.l.bf16 %v107
    %v229 = vunpack.c.h.bf16 %v107
    %v230 = vunpack.c.l.bf16 %v108
    %v231 = vunpack.c.l.bf16 %v109
    %v232 = vunpack.c.h.bf16 %v109
    %v233 = vunpack.c.l.bf16 %v110
    %v234 = vunpack.c.h.bf16 %v110
    %v235 = vunpack.c.l.bf16 %v111
    %v236 = vunpack.c.l.bf16 %v112
    %v237 = vunpack.c.h.bf16 %v112
    %v238 = vunpack.c.l.bf16 %v113
    %v239 = vunpack.c.h.bf16 %v113
    %v240 = vunpack.c.l.bf16 %v114
    %v241 = vunpack.c.l.bf16 %v115
    %v242 = vunpack.c.h.bf16 %v115
    %v243 = vunpack.c.l.bf16 %v116
    %v244 = vunpack.c.h.bf16 %v116
    %v245 = vunpack.c.l.bf16 %v117
    %v246 = vunpack.c.l.bf16 %v118
    %v247 = vunpack.c.h.bf16 %v118
    %v248 = vunpack.c.l.bf16 %v119
    %v249 = vunpack.c.h.bf16 %v119
    %v250 = vunpack.c.l.bf16 %v120
    %v251 = vunpack.c.l.bf16 %v121
    %v252 = vunpack.c.h.bf16 %v121
    %v253 = vunpack.c.l.bf16 %v122
    %v254 = vunpack.c.h.bf16 %v122
    %v255 = vunpack.c.l.bf16 %v123
    %v256 = vunpack.c.l.bf16 %v124
    %v257 = vunpack.c.h.bf16 %v124
    %v258 = vunpack.c.l.bf16 %v125
    %v259 = vunpack.c.h.bf16 %v125
    %v260 = vunpack.c.l.bf16 %v126
    %v261 = vunpack.c.l.bf16 %v127
    %v262 = vunpack.c.h.bf16 %v127
    %v263 = vunpack.c.l.bf16 %v128
    %v264 = vunpack.c.h.bf16 %v128
    %v265 = vunpack.c.l.bf16 %v129
    %v266 = vunpack.c.l.bf16 %v130
    %v267 = vunpack.c.h.bf16 %v130
    %v268 = vunpack.c.l.bf16 %v131
    %v269 = vunpack.c.h.bf16 %v131
    %v270 = vunpack.c.l.bf16 %v132
    %v271 = vunpack.c.l.bf16 %v133
    %v272 = vunpack.c.h.bf16 %v133
    %v273 = vunpack.c.l.bf16 %v134
    %v274 = vunpack.c.h.bf16 %v134
    %v275 = vunpack.c.l.bf16 %v135
    %v276 = vunpack.c.l.bf16 %v136
    %v277 = vunpack.c.h.bf16 %v136
    %v278 = vunpack.c.l.bf16 %v137
    %v279 = vunpack.c.h.bf16 %v137
    %v280 = vunpack.c.l.bf16 %v138
    %v281 = vunpack.c.l.bf16 %v139
    %v282 = vunpack.c.h.bf16 %v139
    %v283 = vunpack.c.l.bf16 %v140
    %v284 = vunpack.c.h.bf16 %v140
    %v285 = vunpack.c.l.bf16 %v141
    %v286 = vunpack.c.l.bf16 %v142
    %v287 = vunpack.c.h.bf16 %v142
    %v288 = vunpack.c.l.bf16 %v143
    %v289 = vunpack.c.h.bf16 %v143
    %v290 = vunpack.c.l.bf16 %v144
    %v291 = vunpack.c.l.bf16 %v145
    %v292 = vunpack.c.h.bf16 %v145
    %v293 = vunpack.c.l.bf16 %v146
    %v294 = vunpack.c.h.bf16 %v146
    %v295 = vunpack.c.l.bf16 %v147
    %v296 = vunpack.c.l.bf16 %v148
    %v297 = vunpack.c.h.bf16 %v148
    %v298 = vunpack.c.l.bf16 %v149
    %v299 = vunpack.c.h.bf16 %v149
    %v300 = vunpack.c.l.bf16 %v150
    %v301 = vunpack.c.l.bf16 %v151
    %v302 = vunpack.c.h.bf16 %v151
    %v303 = vunpack.c.l.bf16 %v152
    %v304 = vunpack.c.h.bf16 %v152
    %v305 = vunpack.c.l.bf16 %v153
    %v306 = vunpack.c.l.bf16 %v154
    %v307 = vunpack.c.h.bf16 %v154
    %v308 = vunpack.c.l.bf16 %v155
    %v309 = vunpack.c.h.bf16 %v155
    %v310 = vunpack.c.l.bf16 %v156
    %v311 = vunpack.c.l.bf16 %v157
    %v312 = vunpack.c.h.bf16 %v157
    %v313 = vunpack.c.l.bf16 %v158
    %v314 = vunpack.c.h.bf16 %v158
    %v315 = vunpack.c.l.bf16 %v159
    %v316 = vunpack.c.l.bf16 %v160
    %v317 = vunpack.c.h.bf16 %v160
    %v318 = vunpack.c.l.bf16 %v161
    %v319 = vunpack.c.h.bf16 %v161
    %v320 = vunpack.c.l.bf16 %v162
    %v321 = vunpack.c.l.bf16 %v163
    %v322 = vunpack.c.h.bf16 %v163
    %v323 = vunpack.c.l.bf16 %v164
    %v324 = vunpack.c.h.bf16 %v164
    %v325 = vunpack.c.l.bf16 %v165
    %v326 = vld [vmem:[%s7] sm:$0xff]
    %v327 = vld [vmem:[%s7 + $0x8] sm:$0xff]
    %v328 = vld [vmem:[%s7 + $0x10] sm:$0xff]
    %v329 = vld [vmem:[%s7 + $0x18] sm:$0xff]
    %v330 = vld [vmem:[%s7 + $0x20] sm:$0xff]
    %v331 = vld [vmem:[%s7 + $0x28] sm:$0xff]
    %v332 = vld [vmem:[%s7 + $0x30] sm:$0xff]
    %v333 = vld [vmem:[%s7 + $0x38] sm:$0xff]
    %v334 = vld [vmem:[%s7 + $0x40] sm:$0xff]
    %v335 = vld [vmem:[%s7 + $0x48] sm:$0xff]
    %v336 = vld [vmem:[%s7 + $0x50] sm:$0xff]
    %v337 = vld [vmem:[%s7 + $0x58] sm:$0xff]
    %v338 = vld [vmem:[%s7 + $0x60] sm:$0xff]
    %v339 = vld [vmem:[%s7 + $0x68] sm:$0xff]
    %v340 = vld [vmem:[%s7 + $0x70] sm:$0xff]
    %v341 = vld [vmem:[%s7 + $0x78] sm:$0xff]
    %v342 = vunpack.c.l.bf16 %v326
    %v343 = vunpack.c.h.bf16 %v326
    %v344 = vunpack.c.l.bf16 %v327
    %v345 = vunpack.c.h.bf16 %v327
    %v346 = vunpack.c.l.bf16 %v328
    %v347 = vunpack.c.h.bf16 %v328
    %v348 = vunpack.c.l.bf16 %v329
    %v349 = vunpack.c.h.bf16 %v329
    %v350 = vunpack.c.l.bf16 %v330
    %v351 = vunpack.c.h.bf16 %v330
    %v352 = vunpack.c.l.bf16 %v331
    %v353 = vunpack.c.h.bf16 %v331
    %v354 = vunpack.c.l.bf16 %v332
    %v355 = vunpack.c.h.bf16 %v332
    %v356 = vunpack.c.l.bf16 %v333
    %v357 = vunpack.c.h.bf16 %v333
    %v358 = vunpack.c.l.bf16 %v334
    %v359 = vunpack.c.h.bf16 %v334
    %v360 = vunpack.c.l.bf16 %v335
    %v361 = vunpack.c.h.bf16 %v335
    %v362 = vunpack.c.l.bf16 %v336
    %v363 = vunpack.c.h.bf16 %v336
    %v364 = vunpack.c.l.bf16 %v337
    %v365 = vunpack.c.h.bf16 %v337
    %v366 = vunpack.c.l.bf16 %v338
    %v367 = vunpack.c.h.bf16 %v338
    %v368 = vunpack.c.l.bf16 %v339
    %v369 = vunpack.c.h.bf16 %v339
    %v370 = vunpack.c.l.bf16 %v340
    %v371 = vunpack.c.h.bf16 %v340
    %v372 = vunpack.c.l.bf16 %v341
    %v373 = vunpack.c.h.bf16 %v341
    %v374 = vld [vmem:[%s9] sm:$0xf]
    %v375 = vld [vmem:[%s9 + $0x4] sm:$0xf]
    %v376 = vld [vmem:[%s9 + $0x8] sm:$0xf]
    %v377 = vld [vmem:[%s9 + $0xc] sm:$0xf]
    %v378 = vld [vmem:[%s9 + $0x10] sm:$0xf]
    %v379 = vld [vmem:[%s9 + $0x14] sm:$0xf]
    %v380 = vld [vmem:[%s9 + $0x18] sm:$0xf]
    %v381 = vld [vmem:[%s9 + $0x1c] sm:$0xf]
    %v382 = vld [vmem:[%s9 + $0x20] sm:$0xf]
    %v383 = vld [vmem:[%s9 + $0x24] sm:$0xf]
    %v384 = vld [vmem:[%s9 + $0x28] sm:$0xf]
    %v385 = vld [vmem:[%s9 + $0x2c] sm:$0xf]
    %v386 = vld [vmem:[%s9 + $0x30] sm:$0xf]
    %v387 = vld [vmem:[%s9 + $0x34] sm:$0xf]
    %v388 = vld [vmem:[%s9 + $0x38] sm:$0xf]
    %v389 = vld [vmem:[%s9 + $0x3c] sm:$0xf]
    %v390 = vld [vmem:[%s9 + $0x40] sm:$0xf]
    %v391 = vld [vmem:[%s9 + $0x44] sm:$0xf]
    %v392 = vld [vmem:[%s9 + $0x48] sm:$0xf]
    %v393 = vld [vmem:[%s9 + $0x4c] sm:$0xf]
    %v394 = vld [vmem:[%s9 + $0x50] sm:$0xf]
    %v395 = vld [vmem:[%s9 + $0x54] sm:$0xf]
    %v396 = vld [vmem:[%s9 + $0x58] sm:$0xf]
    %v397 = vld [vmem:[%s9 + $0x5c] sm:$0xf]
    %v398 = vld [vmem:[%s9 + $0x60] sm:$0xf]
    %v399 = vld [vmem:[%s9 + $0x64] sm:$0xf]
    %v400 = vld [vmem:[%s9 + $0x68] sm:$0xf]
    %v401 = vld [vmem:[%s9 + $0x6c] sm:$0xf]
    %v402 = vld [vmem:[%s9 + $0x70] sm:$0xf]
    %v403 = vld [vmem:[%s9 + $0x74] sm:$0xf]
    %v404 = vld [vmem:[%s9 + $0x78] sm:$0xf]
    %v405 = vld [vmem:[%s9 + $0x7c] sm:$0xf]
    %v406 = vld [vmem:[%s9 + $0x80] sm:$0xf]
    %v407 = vld [vmem:[%s9 + $0x84] sm:$0xf]
    %v408 = vld [vmem:[%s9 + $0x88] sm:$0xf]
    %v409 = vld [vmem:[%s9 + $0x8c] sm:$0xf]
    %v410 = vld [vmem:[%s9 + $0x90] sm:$0xf]
    %v411 = vld [vmem:[%s9 + $0x94] sm:$0xf]
    %v412 = vld [vmem:[%s9 + $0x98] sm:$0xf]
    %v413 = vld [vmem:[%s9 + $0x9c] sm:$0xf]
    %v414 = vld [vmem:[%s9 + $0xa0] sm:$0xf]
    %v415 = vld [vmem:[%s9 + $0xa4] sm:$0xf]
    %v416 = vld [vmem:[%s9 + $0xa8] sm:$0xf]
    %v417 = vld [vmem:[%s9 + $0xac] sm:$0xf]
    %v418 = vld [vmem:[%s9 + $0xb0] sm:$0xf]
    %v419 = vld [vmem:[%s9 + $0xb4] sm:$0xf]
    %v420 = vld [vmem:[%s9 + $0xb8] sm:$0xf]
    %v421 = vld [vmem:[%s9 + $0xbc] sm:$0xf]
    %v422 = vld [vmem:[%s9 + $0xc0] sm:$0xf]
    %v423 = vld [vmem:[%s9 + $0xc4] sm:$0xf]
    %v424 = vld [vmem:[%s9 + $0xc8] sm:$0xf]
    %v425 = vld [vmem:[%s9 + $0xcc] sm:$0xf]
    %v426 = vld [vmem:[%s9 + $0xd0] sm:$0xf]
    %v427 = vld [vmem:[%s9 + $0xd4] sm:$0xf]
    %v428 = vld [vmem:[%s9 + $0xd8] sm:$0xf]
    %v429 = vld [vmem:[%s9 + $0xdc] sm:$0xf]
    %v430 = vld [vmem:[%s9 + $0xe0] sm:$0xf]
    %v431 = vld [vmem:[%s9 + $0xe4] sm:$0xf]
    %v432 = vld [vmem:[%s9 + $0xe8] sm:$0xf]
    %v433 = vld [vmem:[%s9 + $0xec] sm:$0xf]
    %v434 = vld [vmem:[%s9 + $0xf0] sm:$0xf]
    %v435 = vld [vmem:[%s9 + $0xf4] sm:$0xf]
    %v436 = vld [vmem:[%s9 + $0xf8] sm:$0xf]
    %v437 = vld [vmem:[%s9 + $0xfc] sm:$0xf]
    %v438 = vld [vmem:[%s9 + $0x100] sm:$0xf]
    %v439 = vld [vmem:[%s9 + $0x104] sm:$0xf]
    %v440 = vld [vmem:[%s9 + $0x108] sm:$0xf]
    %v441 = vld [vmem:[%s9 + $0x10c] sm:$0xf]
    %v442 = vld [vmem:[%s9 + $0x110] sm:$0xf]
    %v443 = vld [vmem:[%s9 + $0x114] sm:$0xf]
    %v444 = vld [vmem:[%s9 + $0x118] sm:$0xf]
    %v445 = vld [vmem:[%s9 + $0x11c] sm:$0xf]
    %v446 = vld [vmem:[%s9 + $0x120] sm:$0xf]
    %v447 = vld [vmem:[%s9 + $0x124] sm:$0xf]
    %v448 = vld [vmem:[%s9 + $0x128] sm:$0xf]
    %v449 = vld [vmem:[%s9 + $0x12c] sm:$0xf]
    %v450 = vld [vmem:[%s9 + $0x130] sm:$0xf]
    %v451 = vld [vmem:[%s9 + $0x134] sm:$0xf]
    %v452 = vld [vmem:[%s9 + $0x138] sm:$0xf]
    %v453 = vld [vmem:[%s9 + $0x13c] sm:$0xf]
    %v454 = vunpack.c.l.bf16 %v374
    %v455 = vunpack.c.l.bf16 %v375
    %v456 = vunpack.c.l.bf16 %v376
    %v457 = vunpack.c.l.bf16 %v377
    %v458 = vunpack.c.l.bf16 %v378
    %v459 = vunpack.c.l.bf16 %v379
    %v460 = vunpack.c.l.bf16 %v380
    %v461 = vunpack.c.l.bf16 %v381
    %v462 = vunpack.c.l.bf16 %v382
    %v463 = vunpack.c.l.bf16 %v383
    %v464 = vunpack.c.l.bf16 %v384
    %v465 = vunpack.c.l.bf16 %v385
    %v466 = vunpack.c.l.bf16 %v386
    %v467 = vunpack.c.l.bf16 %v387
    %v468 = vunpack.c.l.bf16 %v388
    %v469 = vunpack.c.l.bf16 %v389
    %v470 = vunpack.c.l.bf16 %v390
    %v471 = vunpack.c.l.bf16 %v391
    %v472 = vunpack.c.l.bf16 %v392
    %v473 = vunpack.c.l.bf16 %v393
    %v474 = vunpack.c.l.bf16 %v394
    %v475 = vunpack.c.l.bf16 %v395
    %v476 = vunpack.c.l.bf16 %v396
    %v477 = vunpack.c.l.bf16 %v397
    %v478 = vunpack.c.l.bf16 %v398
    %v479 = vunpack.c.l.bf16 %v399
    %v480 = vunpack.c.l.bf16 %v400
    %v481 = vunpack.c.l.bf16 %v401
    %v482 = vunpack.c.l.bf16 %v402
    %v483 = vunpack.c.l.bf16 %v403
    %v484 = vunpack.c.l.bf16 %v404
    %v485 = vunpack.c.l.bf16 %v405
    %v486 = vunpack.c.l.bf16 %v406
    %v487 = vunpack.c.l.bf16 %v407
    %v488 = vunpack.c.l.bf16 %v408
    %v489 = vunpack.c.l.bf16 %v409
    %v490 = vunpack.c.l.bf16 %v410
    %v491 = vunpack.c.l.bf16 %v411
    %v492 = vunpack.c.l.bf16 %v412
    %v493 = vunpack.c.l.bf16 %v413
    %v494 = vunpack.c.l.bf16 %v414
    %v495 = vunpack.c.l.bf16 %v415
    %v496 = vunpack.c.l.bf16 %v416
    %v497 = vunpack.c.l.bf16 %v417
    %v498 = vunpack.c.l.bf16 %v418
    %v499 = vunpack.c.l.bf16 %v419
    %v500 = vunpack.c.l.bf16 %v420
    %v501 = vunpack.c.l.bf16 %v421
    %v502 = vunpack.c.l.bf16 %v422
    %v503 = vunpack.c.l.bf16 %v423
    %v504 = vunpack.c.l.bf16 %v424
    %v505 = vunpack.c.l.bf16 %v425
    %v506 = vunpack.c.l.bf16 %v426
    %v507 = vunpack.c.l.bf16 %v427
    %v508 = vunpack.c.l.bf16 %v428
    %v509 = vunpack.c.l.bf16 %v429
    %v510 = vunpack.c.l.bf16 %v430
    %v511 = vunpack.c.l.bf16 %v431
    %v512 = vunpack.c.l.bf16 %v432
    %v513 = vunpack.c.l.bf16 %v433
    %v514 = vunpack.c.l.bf16 %v434
    %v515 = vunpack.c.l.bf16 %v435
    %v516 = vunpack.c.l.bf16 %v436
    %v517 = vunpack.c.l.bf16 %v437
    %v518 = vunpack.c.l.bf16 %v438
    %v519 = vunpack.c.l.bf16 %v439
    %v520 = vunpack.c.l.bf16 %v440
    %v521 = vunpack.c.l.bf16 %v441
    %v522 = vunpack.c.l.bf16 %v442
    %v523 = vunpack.c.l.bf16 %v443
    %v524 = vunpack.c.l.bf16 %v444
    %v525 = vunpack.c.l.bf16 %v445
    %v526 = vunpack.c.l.bf16 %v446
    %v527 = vunpack.c.l.bf16 %v447
    %v528 = vunpack.c.l.bf16 %v448
    %v529 = vunpack.c.l.bf16 %v449
    %v530 = vunpack.c.l.bf16 %v450
    %v531 = vunpack.c.l.bf16 %v451
    %v532 = vunpack.c.l.bf16 %v452
    %v533 = vunpack.c.l.bf16 %v453
    %vm534 = vcmask 457728
    %v536 = vsel %vm534, %v46, 0
    %538 = vmatpush.msra.mxu0 0.0
    %539 = vmatpush.msra.mxu0 0.0
    %540 = vmatpush.msra.mxu0 0.0
    %541 = vmatpush.msra.mxu0 0.0
    %542 = vmatpush.msra.mxu0 0.0
    %543 = vmatpush.msra.mxu0 0.0
    %544 = vmatpush.msra.mxu0 0.0
    %545 = vmatpush.msra.mxu0 0.0
    %546 = vmatpush.msra.mxu0 0.0
    %547 = vmatpush.msra.mxu0 %v45
    %548 = vmatpush.msra.mxu0 %v44
    %549 = vmatpush.msra.mxu0 %v43
    %550 = vmatpush.msra.mxu0 %v42
    %551 = vmatpush.msra.mxu0 %v41
    %552 = vmatpush.msra.mxu0 %v40
    %553 = vmatpush.msra.mxu0 %v39
    %554 = vmatmul.f32.gmra.mxu0 %v536
    %v555 = vpop.f32.mrf.mxu0
    %v556 = vadd.f32 0.0, %v555
    %557 = vdwg.mxu0
    %vm558 = vcmask 130048
    %v560 = vsel %vm558, %v556, 0
    %562 = vmatpush.msra.mxu0 0.0
    %563 = vmatpush.msra.mxu0 0.0
    %564 = vmatpush.msra.mxu0 0.0
    %565 = vmatpush.msra.mxu0 0.0
    %566 = vmatpush.msra.mxu0 0.0
    %567 = vmatpush.msra.mxu0 0.0
    %568 = vmatpush.msra.mxu0 0.0
    %569 = vmatpush.msra.mxu0 0.0
    %570 = vmatpush.msra.mxu0 0.0
    %571 = vmatpush.msra.mxu0 0.0
    %572 = vmatpush.msra.mxu0 0.0
    %573 = vmatpush.msra.mxu0 0.0
    %574 = vmatpush.msra.mxu0 0.0
    %575 = vmatpush.msra.mxu0 0.0
    %576 = vmatpush.msra.mxu0 %v54
    %577 = vmatpush.msra.mxu0 %v52
    %578 = vmatmul.f32.gmra.mxu0 %v560
    %v579 = vpop.f32.mrf.mxu0
    %v580 = vadd.f32 0.0, %v579
    %581 = vdwg.mxu0
    %582 = vmatpush.msra.mxu0 0.0
    %583 = vmatpush.msra.mxu0 0.0
    %584 = vmatpush.msra.mxu0 0.0
    %585 = vmatpush.msra.mxu0 0.0
    %586 = vmatpush.msra.mxu0 0.0
    %587 = vmatpush.msra.mxu0 0.0
    %588 = vmatpush.msra.mxu0 0.0
    %589 = vmatpush.msra.mxu0 0.0
    %590 = vmatpush.msra.mxu0 0.0
    %591 = vmatpush.msra.mxu0 0.0
    %592 = vmatpush.msra.mxu0 0.0
    %593 = vmatpush.msra.mxu0 0.0
    %594 = vmatpush.msra.mxu0 0.0
    %595 = vmatpush.msra.mxu0 0.0
    %596 = vmatpush.msra.mxu0 %v55
    %597 = vmatpush.msra.mxu0 %v53
    %598 = vmatmul.f32.gmra.mxu0 %v560
    %v599 = vpop.f32.mrf.mxu0
    %v600 = vadd.f32 0.0, %v599
    %601 = vdwg.mxu0
    %609 = vrot.lane.b32.xlu0 %v39, 104
    %v610 = vpop.permute.xlu0 %609
    %611 = vrot.lane.b32.xlu0 %v40, 104
    %v612 = vpop.permute.xlu0 %611
    %613 = vrot.lane.b32.xlu0 %v41, 104
    %v614 = vpop.permute.xlu0 %613
    %615 = vrot.lane.b32.xlu0 %v42, 104
    %v616 = vpop.permute.xlu0 %615
    %617 = vrot.lane.b32.xlu0 %v43, 104
    %v618 = vpop.permute.xlu0 %617
    %619 = vrot.lane.b32.xlu0 %v44, 104
    %v620 = vpop.permute.xlu0 %619
    %621 = vrot.lane.b32.xlu0 %v45, 104
    %v622 = vpop.permute.xlu0 %621
    %vm623 = vcmask 64512
    %v624 = vsel %vm623, %v610, 0
    %v626 = vsel %vm623, %v612, 0
    %v628 = vsel %vm623, %v614, 0
    %v630 = vsel %vm623, %v616, 0
    %v632 = vsel %vm623, %v618, 0
    %v634 = vsel %vm623, %v620, 0
    %v636 = vsel %vm623, %v622, 0
    %638 = vmatpush.msra.mxu0 0.0
    %639 = vmatpush.msra.mxu0 0.0
    %640 = vmatpush.msra.mxu0 0.0
    %641 = vmatpush.msra.mxu0 0.0
    %642 = vmatpush.msra.mxu0 0.0
    %643 = vmatpush.msra.mxu0 0.0
    %644 = vmatpush.msra.mxu0 0.0
    %645 = vmatpush.msra.mxu0 0.0
    %646 = vmatpush.msra.mxu0 0.0
    %647 = vmatpush.msra.mxu0 0.0
    %648 = vmatpush.msra.mxu0 0.0
    %649 = vmatpush.msra.mxu0 0.0
    %650 = vmatpush.msra.mxu0 0.0
    %651 = vmatpush.msra.mxu0 0.0
    %652 = vmatpush.msra.mxu0 0.0
    %653 = vmatpush.msra.mxu0 %v580
    %654 = vmatmul.f32.gmra.mxu0 %v624
    %v655 = vpop.f32.mrf.mxu0
    %v656 = vadd.f32 0.0, %v655
    %657 = vmatmul.f32.gmra.mxu0 %v626
    %v658 = vpop.f32.mrf.mxu0
    %v659 = vadd.f32 0.0, %v658
    %660 = vmatmul.f32.gmra.mxu0 %v628
    %v661 = vpop.f32.mrf.mxu0
    %v662 = vadd.f32 0.0, %v661
    %663 = vmatmul.f32.gmra.mxu0 %v630
    %v664 = vpop.f32.mrf.mxu0
    %v665 = vadd.f32 0.0, %v664
    %666 = vmatmul.f32.gmra.mxu0 %v632
    %v667 = vpop.f32.mrf.mxu0
    %v668 = vadd.f32 0.0, %v667
    %669 = vmatmul.f32.gmra.mxu0 %v634
    %v670 = vpop.f32.mrf.mxu0
    %v671 = vadd.f32 0.0, %v670
    %672 = vmatmul.f32.gmra.mxu0 %v636
    %v673 = vpop.f32.mrf.mxu0
    %v674 = vadd.f32 0.0, %v673
    %675 = vdwg.mxu0
    %676 = vmatpush.msra.mxu0 0.0
    %677 = vmatpush.msra.mxu0 0.0
    %678 = vmatpush.msra.mxu0 0.0
    %679 = vmatpush.msra.mxu0 0.0
    %680 = vmatpush.msra.mxu0 0.0
    %681 = vmatpush.msra.mxu0 0.0
    %682 = vmatpush.msra.mxu0 0.0
    %683 = vmatpush.msra.mxu0 0.0
    %684 = vmatpush.msra.mxu0 0.0
    %685 = vmatpush.msra.mxu0 0.0
    %686 = vmatpush.msra.mxu0 0.0
    %687 = vmatpush.msra.mxu0 0.0
    %688 = vmatpush.msra.mxu0 0.0
    %689 = vmatpush.msra.mxu0 0.0
    %690 = vmatpush.msra.mxu0 0.0
    %691 = vmatpush.msra.mxu0 %v600
    %692 = vmatmul.f32.gmra.mxu0 %v624
    %v693 = vpop.f32.mrf.mxu0
    %v694 = vadd.f32 0.0, %v693
    %695 = vmatmul.f32.gmra.mxu0 %v626
    %v696 = vpop.f32.mrf.mxu0
    %v697 = vadd.f32 0.0, %v696
    %698 = vmatmul.f32.gmra.mxu0 %v628
    %v699 = vpop.f32.mrf.mxu0
    %v700 = vadd.f32 0.0, %v699
    %701 = vmatmul.f32.gmra.mxu0 %v630
    %v702 = vpop.f32.mrf.mxu0
    %v703 = vadd.f32 0.0, %v702
    %704 = vmatmul.f32.gmra.mxu0 %v632
    %v705 = vpop.f32.mrf.mxu0
    %v706 = vadd.f32 0.0, %v705
    %707 = vmatmul.f32.gmra.mxu0 %v634
    %v708 = vpop.f32.mrf.mxu0
    %v709 = vadd.f32 0.0, %v708
    %710 = vmatmul.f32.gmra.mxu0 %v636
    %v711 = vpop.f32.mrf.mxu0
    %v712 = vadd.f32 0.0, %v711
    %713 = vdwg.mxu0
    %v714 = vsel %vm558, %v39, 0
    %v716 = vsel %vm558, %v40, 0
    %v718 = vsel %vm558, %v41, 0
    %v720 = vsel %vm558, %v42, 0
    %v722 = vsel %vm558, %v43, 0
    %v724 = vsel %vm558, %v44, 0
    %v726 = vsel %vm558, %v45, 0
    %728 = vmatpush.msra.mxu0 0.0
    %729 = vmatpush.msra.mxu0 0.0
    %730 = vmatpush.msra.mxu0 0.0
    %731 = vmatpush.msra.mxu0 0.0
    %732 = vmatpush.msra.mxu0 0.0
    %733 = vmatpush.msra.mxu0 0.0
    %734 = vmatpush.msra.mxu0 0.0
    %735 = vmatpush.msra.mxu0 0.0
    %736 = vmatpush.msra.mxu0 0.0
    %737 = vmatpush.msra.mxu0 0.0
    %738 = vmatpush.msra.mxu0 0.0
    %739 = vmatpush.msra.mxu0 0.0
    %740 = vmatpush.msra.mxu0 0.0
    %741 = vmatpush.msra.mxu0 0.0
    %742 = vmatpush.msra.mxu0 %v58
    %743 = vmatpush.msra.mxu0 %v56
    %744 = vmatmul.f32.gmra.mxu0 %v714
    %v745 = vpop.f32.mrf.mxu0
    %v746 = vadd.f32 0.0, %v745
    %747 = vmatmul.f32.gmra.mxu0 %v716
    %v748 = vpop.f32.mrf.mxu0
    %v749 = vadd.f32 0.0, %v748
    %750 = vmatmul.f32.gmra.mxu0 %v718
    %v751 = vpop.f32.mrf.mxu0
    %v752 = vadd.f32 0.0, %v751
    %753 = vmatmul.f32.gmra.mxu0 %v720
    %v754 = vpop.f32.mrf.mxu0
    %v755 = vadd.f32 0.0, %v754
    %756 = vmatmul.f32.gmra.mxu0 %v722
    %v757 = vpop.f32.mrf.mxu0
    %v758 = vadd.f32 0.0, %v757
    %759 = vmatmul.f32.gmra.mxu0 %v724
    %v760 = vpop.f32.mrf.mxu0
    %v761 = vadd.f32 0.0, %v760
    %762 = vmatmul.f32.gmra.mxu0 %v726
    %v763 = vpop.f32.mrf.mxu0
    %v764 = vadd.f32 0.0, %v763
    %765 = vdwg.mxu0
    %766 = vmatpush.msra.mxu0 0.0
    %767 = vmatpush.msra.mxu0 0.0
    %768 = vmatpush.msra.mxu0 0.0
    %769 = vmatpush.msra.mxu0 0.0
    %770 = vmatpush.msra.mxu0 0.0
    %771 = vmatpush.msra.mxu0 0.0
    %772 = vmatpush.msra.mxu0 0.0
    %773 = vmatpush.msra.mxu0 0.0
    %774 = vmatpush.msra.mxu0 0.0
    %775 = vmatpush.msra.mxu0 0.0
    %776 = vmatpush.msra.mxu0 0.0
    %777 = vmatpush.msra.mxu0 0.0
    %778 = vmatpush.msra.mxu0 0.0
    %779 = vmatpush.msra.mxu0 0.0
    %780 = vmatpush.msra.mxu0 %v59
    %781 = vmatpush.msra.mxu0 %v57
    %782 = vmatmul.f32.gmra.mxu0 %v714
    %v783 = vpop.f32.mrf.mxu0
    %v784 = vadd.f32 0.0, %v783
    %785 = vmatmul.f32.gmra.mxu0 %v716
    %v786 = vpop.f32.mrf.mxu0
    %v787 = vadd.f32 0.0, %v786
    %788 = vmatmul.f32.gmra.mxu0 %v718
    %v789 = vpop.f32.mrf.mxu0
    %v790 = vadd.f32 0.0, %v789
    %791 = vmatmul.f32.gmra.mxu0 %v720
    %v792 = vpop.f32.mrf.mxu0
    %v793 = vadd.f32 0.0, %v792
    %794 = vmatmul.f32.gmra.mxu0 %v722
    %v795 = vpop.f32.mrf.mxu0
    %v796 = vadd.f32 0.0, %v795
    %797 = vmatmul.f32.gmra.mxu0 %v724
    %v798 = vpop.f32.mrf.mxu0
    %v799 = vadd.f32 0.0, %v798
    %800 = vmatmul.f32.gmra.mxu0 %v726
    %v801 = vpop.f32.mrf.mxu0
    %v802 = vadd.f32 0.0, %v801
    %803 = vdwg.mxu0
    %v804 = vmul.f32 %v656, %v746
    %v805 = vmul.f32 %v694, %v784
    %v806 = vmul.f32 %v659, %v749
    %v807 = vmul.f32 %v697, %v787
    %v808 = vmul.f32 %v662, %v752
    %v809 = vmul.f32 %v700, %v790
    %v810 = vmul.f32 %v665, %v755
    %v811 = vmul.f32 %v703, %v793
    %v812 = vmul.f32 %v668, %v758
    %v813 = vmul.f32 %v706, %v796
    %v814 = vmul.f32 %v671, %v761
    %v815 = vmul.f32 %v709, %v799
    %v816 = vmul.f32 %v674, %v764
    %v817 = vmul.f32 %v712, %v802
    %818 = vrot.lane.b32.xlu0 %v39, 112
    %v819 = vpop.permute.xlu0 %818
    %820 = vrot.lane.b32.xlu0 %v40, 112
    %v821 = vpop.permute.xlu0 %820
    %822 = vrot.lane.b32.xlu0 %v41, 112
    %v823 = vpop.permute.xlu0 %822
    %824 = vrot.lane.b32.xlu0 %v42, 112
    %v825 = vpop.permute.xlu0 %824
    %826 = vrot.lane.b32.xlu0 %v43, 112
    %v827 = vpop.permute.xlu0 %826
    %828 = vrot.lane.b32.xlu0 %v44, 112
    %v829 = vpop.permute.xlu0 %828
    %830 = vrot.lane.b32.xlu0 %v45, 112
    %v831 = vpop.permute.xlu0 %830
    %v832 = vsel %vm623, %v819, 0
    %v834 = vsel %vm623, %v821, 0
    %v836 = vsel %vm623, %v823, 0
    %v838 = vsel %vm623, %v825, 0
    %v840 = vsel %vm623, %v827, 0
    %v842 = vsel %vm623, %v829, 0
    %v844 = vsel %vm623, %v831, 0
    %846 = vmatpush.msra.mxu0 0.0
    %847 = vmatpush.msra.mxu0 0.0
    %848 = vmatpush.msra.mxu0 0.0
    %849 = vmatpush.msra.mxu0 0.0
    %850 = vmatpush.msra.mxu0 0.0
    %851 = vmatpush.msra.mxu0 0.0
    %852 = vmatpush.msra.mxu0 0.0
    %853 = vmatpush.msra.mxu0 0.0
    %854 = vmatpush.msra.mxu0 0.0
    %855 = vmatpush.msra.mxu0 0.0
    %856 = vmatpush.msra.mxu0 0.0
    %857 = vmatpush.msra.mxu0 0.0
    %858 = vmatpush.msra.mxu0 0.0
    %859 = vmatpush.msra.mxu0 0.0
    %860 = vmatpush.msra.mxu0 0.0
    %861 = vmatpush.msra.mxu0 %v48
    %862 = vmatmul.f32.gmra.mxu0 %v832
    %v863 = vpop.f32.mrf.mxu0
    %v864 = vadd.f32 0.0, %v863
    %865 = vmatmul.f32.gmra.mxu0 %v834
    %v866 = vpop.f32.mrf.mxu0
    %v867 = vadd.f32 0.0, %v866
    %868 = vmatmul.f32.gmra.mxu0 %v836
    %v869 = vpop.f32.mrf.mxu0
    %v870 = vadd.f32 0.0, %v869
    %871 = vmatmul.f32.gmra.mxu0 %v838
    %v872 = vpop.f32.mrf.mxu0
    %v873 = vadd.f32 0.0, %v872
    %874 = vmatmul.f32.gmra.mxu0 %v840
    %v875 = vpop.f32.mrf.mxu0
    %v876 = vadd.f32 0.0, %v875
    %877 = vmatmul.f32.gmra.mxu0 %v842
    %v878 = vpop.f32.mrf.mxu0
    %v879 = vadd.f32 0.0, %v878
    %880 = vmatmul.f32.gmra.mxu0 %v844
    %v881 = vpop.f32.mrf.mxu0
    %v882 = vadd.f32 0.0, %v881
    %883 = vdwg.mxu0
    %884 = vmatpush.msra.mxu0 0.0
    %885 = vmatpush.msra.mxu0 0.0
    %886 = vmatpush.msra.mxu0 0.0
    %887 = vmatpush.msra.mxu0 0.0
    %888 = vmatpush.msra.mxu0 0.0
    %889 = vmatpush.msra.mxu0 0.0
    %890 = vmatpush.msra.mxu0 0.0
    %891 = vmatpush.msra.mxu0 0.0
    %892 = vmatpush.msra.mxu0 0.0
    %893 = vmatpush.msra.mxu0 0.0
    %894 = vmatpush.msra.mxu0 0.0
    %895 = vmatpush.msra.mxu0 0.0
    %896 = vmatpush.msra.mxu0 0.0
    %897 = vmatpush.msra.mxu0 0.0
    %898 = vmatpush.msra.mxu0 0.0
    %899 = vmatpush.msra.mxu0 %v49
    %900 = vmatmul.f32.gmra.mxu0 %v832
    %v901 = vpop.f32.mrf.mxu0
    %v902 = vadd.f32 0.0, %v901
    %903 = vmatmul.f32.gmra.mxu0 %v834
    %v904 = vpop.f32.mrf.mxu0
    %v905 = vadd.f32 0.0, %v904
    %906 = vmatmul.f32.gmra.mxu0 %v836
    %v907 = vpop.f32.mrf.mxu0
    %v908 = vadd.f32 0.0, %v907
    %909 = vmatmul.f32.gmra.mxu0 %v838
    %v910 = vpop.f32.mrf.mxu0
    %v911 = vadd.f32 0.0, %v910
    %912 = vmatmul.f32.gmra.mxu0 %v840
    %v913 = vpop.f32.mrf.mxu0
    %v914 = vadd.f32 0.0, %v913
    %915 = vmatmul.f32.gmra.mxu0 %v842
    %v916 = vpop.f32.mrf.mxu0
    %v917 = vadd.f32 0.0, %v916
    %918 = vmatmul.f32.gmra.mxu0 %v844
    %v919 = vpop.f32.mrf.mxu0
    %v920 = vadd.f32 0.0, %v919
    %921 = vdwg.mxu0
    %v922 = vmax.f32 %v864, 0.0
    %v923 = vmax.f32 %v902, 0.0
    %v924 = vmax.f32 %v867, 0.0
    %v925 = vmax.f32 %v905, 0.0
    %v926 = vmax.f32 %v870, 0.0
    %v927 = vmax.f32 %v908, 0.0
    %v928 = vmax.f32 %v873, 0.0
    %v929 = vmax.f32 %v911, 0.0
    %v930 = vmax.f32 %v876, 0.0
    %v931 = vmax.f32 %v914, 0.0
    %v932 = vmax.f32 %v879, 0.0
    %v933 = vmax.f32 %v917, 0.0
    %v934 = vmax.f32 %v882, 0.0
    %v935 = vmax.f32 %v920, 0.0
    %936 = vmatpush.msra.mxu0 %v241
    %937 = vmatpush.msra.mxu0 %v236
    %938 = vmatpush.msra.mxu0 %v231
    %939 = vmatpush.msra.mxu0 %v226
    %940 = vmatpush.msra.mxu0 %v221
    %941 = vmatpush.msra.mxu0 %v216
    %942 = vmatpush.msra.mxu0 %v211
    %943 = vmatpush.msra.mxu0 %v206
    %944 = vmatpush.msra.mxu0 %v201
    %945 = vmatpush.msra.mxu0 %v196
    %946 = vmatpush.msra.mxu0 %v191
    %947 = vmatpush.msra.mxu0 %v186
    %948 = vmatpush.msra.mxu0 %v181
    %949 = vmatpush.msra.mxu0 %v176
    %950 = vmatpush.msra.mxu0 %v171
    %951 = vmatpush.msra.mxu0 %v166
    %952 = vmatmul.f32.gmra.mxu0 %v804
    %v953 = vpop.f32.mrf.mxu0
    %v954 = vadd.f32 0.0, %v953
    %955 = vmatmul.f32.gmra.mxu0 %v806
    %v956 = vpop.f32.mrf.mxu0
    %v957 = vadd.f32 0.0, %v956
    %958 = vmatmul.f32.gmra.mxu0 %v808
    %v959 = vpop.f32.mrf.mxu0
    %v960 = vadd.f32 0.0, %v959
    %961 = vmatmul.f32.gmra.mxu0 %v810
    %v962 = vpop.f32.mrf.mxu0
    %v963 = vadd.f32 0.0, %v962
    %964 = vmatmul.f32.gmra.mxu0 %v812
    %v965 = vpop.f32.mrf.mxu0
    %v966 = vadd.f32 0.0, %v965
    %967 = vmatmul.f32.gmra.mxu0 %v814
    %v968 = vpop.f32.mrf.mxu0
    %v969 = vadd.f32 0.0, %v968
    %970 = vmatmul.f32.gmra.mxu0 %v816
    %v971 = vpop.f32.mrf.mxu0
    %v972 = vadd.f32 0.0, %v971
    %973 = vdwg.mxu0
    %974 = vmatpush.msra.mxu0 %v321
    %975 = vmatpush.msra.mxu0 %v316
    %976 = vmatpush.msra.mxu0 %v311
    %977 = vmatpush.msra.mxu0 %v306
    %978 = vmatpush.msra.mxu0 %v301
    %979 = vmatpush.msra.mxu0 %v296
    %980 = vmatpush.msra.mxu0 %v291
    %981 = vmatpush.msra.mxu0 %v286
    %982 = vmatpush.msra.mxu0 %v281
    %983 = vmatpush.msra.mxu0 %v276
    %984 = vmatpush.msra.mxu0 %v271
    %985 = vmatpush.msra.mxu0 %v266
    %986 = vmatpush.msra.mxu0 %v261
    %987 = vmatpush.msra.mxu0 %v256
    %988 = vmatpush.msra.mxu0 %v251
    %989 = vmatpush.msra.mxu0 %v246
    %990 = vmatmul.f32.gmra.mxu0 %v805
    %v991 = vpop.f32.mrf.mxu0
    %v992 = vadd.f32 %v954, %v991
    %993 = vmatmul.f32.gmra.mxu0 %v807
    %v994 = vpop.f32.mrf.mxu0
    %v995 = vadd.f32 %v957, %v994
    %996 = vmatmul.f32.gmra.mxu0 %v809
    %v997 = vpop.f32.mrf.mxu0
    %v998 = vadd.f32 %v960, %v997
    %999 = vmatmul.f32.gmra.mxu0 %v811
    %v1000 = vpop.f32.mrf.mxu0
    %v1001 = vadd.f32 %v963, %v1000
    %1002 = vmatmul.f32.gmra.mxu0 %v813
    %v1003 = vpop.f32.mrf.mxu0
    %v1004 = vadd.f32 %v966, %v1003
    %1005 = vmatmul.f32.gmra.mxu0 %v815
    %v1006 = vpop.f32.mrf.mxu0
    %v1007 = vadd.f32 %v969, %v1006
    %1008 = vmatmul.f32.gmra.mxu0 %v817
    %v1009 = vpop.f32.mrf.mxu0
    %v1010 = vadd.f32 %v972, %v1009
    %1011 = vdwg.mxu0
    %1012 = vmatpush.msra.mxu0 %v242
    %1013 = vmatpush.msra.mxu0 %v237
    %1014 = vmatpush.msra.mxu0 %v232
    %1015 = vmatpush.msra.mxu0 %v227
    %1016 = vmatpush.msra.mxu0 %v222
    %1017 = vmatpush.msra.mxu0 %v217
    %1018 = vmatpush.msra.mxu0 %v212
    %1019 = vmatpush.msra.mxu0 %v207
    %1020 = vmatpush.msra.mxu0 %v202
    %1021 = vmatpush.msra.mxu0 %v197
    %1022 = vmatpush.msra.mxu0 %v192
    %1023 = vmatpush.msra.mxu0 %v187
    %1024 = vmatpush.msra.mxu0 %v182
    %1025 = vmatpush.msra.mxu0 %v177
    %1026 = vmatpush.msra.mxu0 %v172
    %1027 = vmatpush.msra.mxu0 %v167
    %1028 = vmatmul.f32.gmra.mxu0 %v804
    %v1029 = vpop.f32.mrf.mxu0
    %v1030 = vadd.f32 0.0, %v1029
    %1031 = vmatmul.f32.gmra.mxu0 %v806
    %v1032 = vpop.f32.mrf.mxu0
    %v1033 = vadd.f32 0.0, %v1032
    %1034 = vmatmul.f32.gmra.mxu0 %v808
    %v1035 = vpop.f32.mrf.mxu0
    %v1036 = vadd.f32 0.0, %v1035
    %1037 = vmatmul.f32.gmra.mxu0 %v810
    %v1038 = vpop.f32.mrf.mxu0
    %v1039 = vadd.f32 0.0, %v1038
    %1040 = vmatmul.f32.gmra.mxu0 %v812
    %v1041 = vpop.f32.mrf.mxu0
    %v1042 = vadd.f32 0.0, %v1041
    %1043 = vmatmul.f32.gmra.mxu0 %v814
    %v1044 = vpop.f32.mrf.mxu0
    %v1045 = vadd.f32 0.0, %v1044
    %1046 = vmatmul.f32.gmra.mxu0 %v816
    %v1047 = vpop.f32.mrf.mxu0
    %v1048 = vadd.f32 0.0, %v1047
    %1049 = vdwg.mxu0
    %1050 = vmatpush.msra.mxu0 %v322
    %1051 = vmatpush.msra.mxu0 %v317
    %1052 = vmatpush.msra.mxu0 %v312
    %1053 = vmatpush.msra.mxu0 %v307
    %1054 = vmatpush.msra.mxu0 %v302
    %1055 = vmatpush.msra.mxu0 %v297
    %1056 = vmatpush.msra.mxu0 %v292
    %1057 = vmatpush.msra.mxu0 %v287
    %1058 = vmatpush.msra.mxu0 %v282
    %1059 = vmatpush.msra.mxu0 %v277
    %1060 = vmatpush.msra.mxu0 %v272
    %1061 = vmatpush.msra.mxu0 %v267
    %1062 = vmatpush.msra.mxu0 %v262
    %1063 = vmatpush.msra.mxu0 %v257
    %1064 = vmatpush.msra.mxu0 %v252
    %1065 = vmatpush.msra.mxu0 %v247
    %1066 = vmatmul.f32.gmra.mxu0 %v805
    %v1067 = vpop.f32.mrf.mxu0
    %v1068 = vadd.f32 %v1030, %v1067
    %1069 = vmatmul.f32.gmra.mxu0 %v807
    %v1070 = vpop.f32.mrf.mxu0
    %v1071 = vadd.f32 %v1033, %v1070
    %1072 = vmatmul.f32.gmra.mxu0 %v809
    %v1073 = vpop.f32.mrf.mxu0
    %v1074 = vadd.f32 %v1036, %v1073
    %1075 = vmatmul.f32.gmra.mxu0 %v811
    %v1076 = vpop.f32.mrf.mxu0
    %v1077 = vadd.f32 %v1039, %v1076
    %1078 = vmatmul.f32.gmra.mxu0 %v813
    %v1079 = vpop.f32.mrf.mxu0
    %v1080 = vadd.f32 %v1042, %v1079
    %1081 = vmatmul.f32.gmra.mxu0 %v815
    %v1082 = vpop.f32.mrf.mxu0
    %v1083 = vadd.f32 %v1045, %v1082
    %1084 = vmatmul.f32.gmra.mxu0 %v817
    %v1085 = vpop.f32.mrf.mxu0
    %v1086 = vadd.f32 %v1048, %v1085
    %1087 = vdwg.mxu0
    %1088 = vmatpush.msra.mxu0 %v243
    %1089 = vmatpush.msra.mxu0 %v238
    %1090 = vmatpush.msra.mxu0 %v233
    %1091 = vmatpush.msra.mxu0 %v228
    %1092 = vmatpush.msra.mxu0 %v223
    %1093 = vmatpush.msra.mxu0 %v218
    %1094 = vmatpush.msra.mxu0 %v213
    %1095 = vmatpush.msra.mxu0 %v208
    %1096 = vmatpush.msra.mxu0 %v203
    %1097 = vmatpush.msra.mxu0 %v198
    %1098 = vmatpush.msra.mxu0 %v193
    %1099 = vmatpush.msra.mxu0 %v188
    %1100 = vmatpush.msra.mxu0 %v183
    %1101 = vmatpush.msra.mxu0 %v178
    %1102 = vmatpush.msra.mxu0 %v173
    %1103 = vmatpush.msra.mxu0 %v168
    %1104 = vmatmul.f32.gmra.mxu0 %v804
    %v1105 = vpop.f32.mrf.mxu0
    %v1106 = vadd.f32 0.0, %v1105
    %1107 = vmatmul.f32.gmra.mxu0 %v806
    %v1108 = vpop.f32.mrf.mxu0
    %v1109 = vadd.f32 0.0, %v1108
    %1110 = vmatmul.f32.gmra.mxu0 %v808
    %v1111 = vpop.f32.mrf.mxu0
    %v1112 = vadd.f32 0.0, %v1111
    %1113 = vmatmul.f32.gmra.mxu0 %v810
    %v1114 = vpop.f32.mrf.mxu0
    %v1115 = vadd.f32 0.0, %v1114
    %1116 = vmatmul.f32.gmra.mxu0 %v812
    %v1117 = vpop.f32.mrf.mxu0
    %v1118 = vadd.f32 0.0, %v1117
    %1119 = vmatmul.f32.gmra.mxu0 %v814
    %v1120 = vpop.f32.mrf.mxu0
    %v1121 = vadd.f32 0.0, %v1120
    %1122 = vmatmul.f32.gmra.mxu0 %v816
    %v1123 = vpop.f32.mrf.mxu0
    %v1124 = vadd.f32 0.0, %v1123
    %1125 = vdwg.mxu0
    %1126 = vmatpush.msra.mxu0 %v323
    %1127 = vmatpush.msra.mxu0 %v318
    %1128 = vmatpush.msra.mxu0 %v313
    %1129 = vmatpush.msra.mxu0 %v308
    %1130 = vmatpush.msra.mxu0 %v303
    %1131 = vmatpush.msra.mxu0 %v298
    %1132 = vmatpush.msra.mxu0 %v293
    %1133 = vmatpush.msra.mxu0 %v288
    %1134 = vmatpush.msra.mxu0 %v283
    %1135 = vmatpush.msra.mxu0 %v278
    %1136 = vmatpush.msra.mxu0 %v273
    %1137 = vmatpush.msra.mxu0 %v268
    %1138 = vmatpush.msra.mxu0 %v263
    %1139 = vmatpush.msra.mxu0 %v258
    %1140 = vmatpush.msra.mxu0 %v253
    %1141 = vmatpush.msra.mxu0 %v248
    %1142 = vmatmul.f32.gmra.mxu0 %v805
    %v1143 = vpop.f32.mrf.mxu0
    %v1144 = vadd.f32 %v1106, %v1143
    %1145 = vmatmul.f32.gmra.mxu0 %v807
    %v1146 = vpop.f32.mrf.mxu0
    %v1147 = vadd.f32 %v1109, %v1146
    %1148 = vmatmul.f32.gmra.mxu0 %v809
    %v1149 = vpop.f32.mrf.mxu0
    %v1150 = vadd.f32 %v1112, %v1149
    %1151 = vmatmul.f32.gmra.mxu0 %v811
    %v1152 = vpop.f32.mrf.mxu0
    %v1153 = vadd.f32 %v1115, %v1152
    %1154 = vmatmul.f32.gmra.mxu0 %v813
    %v1155 = vpop.f32.mrf.mxu0
    %v1156 = vadd.f32 %v1118, %v1155
    %1157 = vmatmul.f32.gmra.mxu0 %v815
    %v1158 = vpop.f32.mrf.mxu0
    %v1159 = vadd.f32 %v1121, %v1158
    %1160 = vmatmul.f32.gmra.mxu0 %v817
    %v1161 = vpop.f32.mrf.mxu0
    %v1162 = vadd.f32 %v1124, %v1161
    %1163 = vdwg.mxu0
    %1164 = vmatpush.msra.mxu0 %v244
    %1165 = vmatpush.msra.mxu0 %v239
    %1166 = vmatpush.msra.mxu0 %v234
    %1167 = vmatpush.msra.mxu0 %v229
    %1168 = vmatpush.msra.mxu0 %v224
    %1169 = vmatpush.msra.mxu0 %v219
    %1170 = vmatpush.msra.mxu0 %v214
    %1171 = vmatpush.msra.mxu0 %v209
    %1172 = vmatpush.msra.mxu0 %v204
    %1173 = vmatpush.msra.mxu0 %v199
    %1174 = vmatpush.msra.mxu0 %v194
    %1175 = vmatpush.msra.mxu0 %v189
    %1176 = vmatpush.msra.mxu0 %v184
    %1177 = vmatpush.msra.mxu0 %v179
    %1178 = vmatpush.msra.mxu0 %v174
    %1179 = vmatpush.msra.mxu0 %v169
    %1180 = vmatmul.f32.gmra.mxu0 %v804
    %v1181 = vpop.f32.mrf.mxu0
    %v1182 = vadd.f32 0.0, %v1181
    %1183 = vmatmul.f32.gmra.mxu0 %v806
    %v1184 = vpop.f32.mrf.mxu0
    %v1185 = vadd.f32 0.0, %v1184
    %1186 = vmatmul.f32.gmra.mxu0 %v808
    %v1187 = vpop.f32.mrf.mxu0
    %v1188 = vadd.f32 0.0, %v1187
    %1189 = vmatmul.f32.gmra.mxu0 %v810
    %v1190 = vpop.f32.mrf.mxu0
    %v1191 = vadd.f32 0.0, %v1190
    %1192 = vmatmul.f32.gmra.mxu0 %v812
    %v1193 = vpop.f32.mrf.mxu0
    %v1194 = vadd.f32 0.0, %v1193
    %1195 = vmatmul.f32.gmra.mxu0 %v814
    %v1196 = vpop.f32.mrf.mxu0
    %v1197 = vadd.f32 0.0, %v1196
    %1198 = vmatmul.f32.gmra.mxu0 %v816
    %v1199 = vpop.f32.mrf.mxu0
    %v1200 = vadd.f32 0.0, %v1199
    %1201 = vdwg.mxu0
    %1202 = vmatpush.msra.mxu0 %v324
    %1203 = vmatpush.msra.mxu0 %v319
    %1204 = vmatpush.msra.mxu0 %v314
    %1205 = vmatpush.msra.mxu0 %v309
    %1206 = vmatpush.msra.mxu0 %v304
    %1207 = vmatpush.msra.mxu0 %v299
    %1208 = vmatpush.msra.mxu0 %v294
    %1209 = vmatpush.msra.mxu0 %v289
    %1210 = vmatpush.msra.mxu0 %v284
    %1211 = vmatpush.msra.mxu0 %v279
    %1212 = vmatpush.msra.mxu0 %v274
    %1213 = vmatpush.msra.mxu0 %v269
    %1214 = vmatpush.msra.mxu0 %v264
    %1215 = vmatpush.msra.mxu0 %v259
    %1216 = vmatpush.msra.mxu0 %v254
    %1217 = vmatpush.msra.mxu0 %v249
    %1218 = vmatmul.f32.gmra.mxu0 %v805
    %v1219 = vpop.f32.mrf.mxu0
    %v1220 = vadd.f32 %v1182, %v1219
    %1221 = vmatmul.f32.gmra.mxu0 %v807
    %v1222 = vpop.f32.mrf.mxu0
    %v1223 = vadd.f32 %v1185, %v1222
    %1224 = vmatmul.f32.gmra.mxu0 %v809
    %v1225 = vpop.f32.mrf.mxu0
    %v1226 = vadd.f32 %v1188, %v1225
    %1227 = vmatmul.f32.gmra.mxu0 %v811
    %v1228 = vpop.f32.mrf.mxu0
    %v1229 = vadd.f32 %v1191, %v1228
    %1230 = vmatmul.f32.gmra.mxu0 %v813
    %v1231 = vpop.f32.mrf.mxu0
    %v1232 = vadd.f32 %v1194, %v1231
    %1233 = vmatmul.f32.gmra.mxu0 %v815
    %v1234 = vpop.f32.mrf.mxu0
    %v1235 = vadd.f32 %v1197, %v1234
    %1236 = vmatmul.f32.gmra.mxu0 %v817
    %v1237 = vpop.f32.mrf.mxu0
    %v1238 = vadd.f32 %v1200, %v1237
    %1239 = vdwg.mxu0
    %1240 = vmatpush.msra.mxu0 %v245
    %1241 = vmatpush.msra.mxu0 %v240
    %1242 = vmatpush.msra.mxu0 %v235
    %1243 = vmatpush.msra.mxu0 %v230
    %1244 = vmatpush.msra.mxu0 %v225
    %1245 = vmatpush.msra.mxu0 %v220
    %1246 = vmatpush.msra.mxu0 %v215
    %1247 = vmatpush.msra.mxu0 %v210
    %1248 = vmatpush.msra.mxu0 %v205
    %1249 = vmatpush.msra.mxu0 %v200
    %1250 = vmatpush.msra.mxu0 %v195
    %1251 = vmatpush.msra.mxu0 %v190
    %1252 = vmatpush.msra.mxu0 %v185
    %1253 = vmatpush.msra.mxu0 %v180
    %1254 = vmatpush.msra.mxu0 %v175
    %1255 = vmatpush.msra.mxu0 %v170
    %1256 = vmatmul.f32.gmra.mxu0 %v804
    %v1257 = vpop.f32.mrf.mxu0
    %v1258 = vadd.f32 0.0, %v1257
    %1259 = vmatmul.f32.gmra.mxu0 %v806
    %v1260 = vpop.f32.mrf.mxu0
    %v1261 = vadd.f32 0.0, %v1260
    %1262 = vmatmul.f32.gmra.mxu0 %v808
    %v1263 = vpop.f32.mrf.mxu0
    %v1264 = vadd.f32 0.0, %v1263
    %1265 = vmatmul.f32.gmra.mxu0 %v810
    %v1266 = vpop.f32.mrf.mxu0
    %v1267 = vadd.f32 0.0, %v1266
    %1268 = vmatmul.f32.gmra.mxu0 %v812
    %v1269 = vpop.f32.mrf.mxu0
    %v1270 = vadd.f32 0.0, %v1269
    %1271 = vmatmul.f32.gmra.mxu0 %v814
    %v1272 = vpop.f32.mrf.mxu0
    %v1273 = vadd.f32 0.0, %v1272
    %1274 = vmatmul.f32.gmra.mxu0 %v816
    %v1275 = vpop.f32.mrf.mxu0
    %v1276 = vadd.f32 0.0, %v1275
    %1277 = vdwg.mxu0
    %1278 = vmatpush.msra.mxu0 %v325
    %1279 = vmatpush.msra.mxu0 %v320
    %1280 = vmatpush.msra.mxu0 %v315
    %1281 = vmatpush.msra.mxu0 %v310
    %1282 = vmatpush.msra.mxu0 %v305
    %1283 = vmatpush.msra.mxu0 %v300
    %1284 = vmatpush.msra.mxu0 %v295
    %1285 = vmatpush.msra.mxu0 %v290
    %1286 = vmatpush.msra.mxu0 %v285
    %1287 = vmatpush.msra.mxu0 %v280
    %1288 = vmatpush.msra.mxu0 %v275
    %1289 = vmatpush.msra.mxu0 %v270
    %1290 = vmatpush.msra.mxu0 %v265
    %1291 = vmatpush.msra.mxu0 %v260
    %1292 = vmatpush.msra.mxu0 %v255
    %1293 = vmatpush.msra.mxu0 %v250
    %1294 = vmatmul.f32.gmra.mxu0 %v805
    %v1295 = vpop.f32.mrf.mxu0
    %v1296 = vadd.f32 %v1258, %v1295
    %1297 = vmatmul.f32.gmra.mxu0 %v807
    %v1298 = vpop.f32.mrf.mxu0
    %v1299 = vadd.f32 %v1261, %v1298
    %1300 = vmatmul.f32.gmra.mxu0 %v809
    %v1301 = vpop.f32.mrf.mxu0
    %v1302 = vadd.f32 %v1264, %v1301
    %1303 = vmatmul.f32.gmra.mxu0 %v811
    %v1304 = vpop.f32.mrf.mxu0
    %v1305 = vadd.f32 %v1267, %v1304
    %1306 = vmatmul.f32.gmra.mxu0 %v813
    %v1307 = vpop.f32.mrf.mxu0
    %v1308 = vadd.f32 %v1270, %v1307
    %1309 = vmatmul.f32.gmra.mxu0 %v815
    %v1310 = vpop.f32.mrf.mxu0
    %v1311 = vadd.f32 %v1273, %v1310
    %1312 = vmatmul.f32.gmra.mxu0 %v817
    %v1313 = vpop.f32.mrf.mxu0
    %v1314 = vadd.f32 %v1276, %v1313
    %1315 = vdwg.mxu0
    %v1316 = vld [vmem:[%s6] sm:$0xff]
    %v1317 = vld [vmem:[%s6 + $0x8] sm:$0xff]
    %v1318 = vld [vmem:[%s6 + $0x10] sm:$0xff]
    %v1319 = vld [vmem:[%s6 + $0x18] sm:$0xff]
    %v1320 = vld [vmem:[%s6 + $0x20] sm:$0xff]
    %v1321 = vld [vmem:[%s6 + $0x28] sm:$0xff]
    %v1322 = vld [vmem:[%s6 + $0x30] sm:$0xff]
    %v1323 = vld [vmem:[%s6 + $0x38] sm:$0xff]
    %v1324 = vld [vmem:[%s6 + $0x40] sm:$0xff]
    %v1325 = vld [vmem:[%s6 + $0x48] sm:$0xff]
    %v1326 = vld [vmem:[%s6 + $0x50] sm:$0xff]
    %v1327 = vld [vmem:[%s6 + $0x58] sm:$0xff]
    %v1328 = vld [vmem:[%s6 + $0x60] sm:$0xff]
    %v1329 = vld [vmem:[%s6 + $0x68] sm:$0xff]
    %v1330 = vld [vmem:[%s6 + $0x70] sm:$0xff]
    %v1331 = vld [vmem:[%s6 + $0x78] sm:$0xff]
    %v1332 = vld [vmem:[%s6 + $0x80] sm:$0xff]
    %v1333 = vld [vmem:[%s6 + $0x88] sm:$0xff]
    %v1334 = vld [vmem:[%s6 + $0x90] sm:$0xff]
    %v1335 = vld [vmem:[%s6 + $0x98] sm:$0xff]
    %v1336 = vld [vmem:[%s6 + $0xa0] sm:$0xff]
    %v1337 = vld [vmem:[%s6 + $0xa8] sm:$0xff]
    %v1338 = vld [vmem:[%s6 + $0xb0] sm:$0xff]
    %v1339 = vld [vmem:[%s6 + $0xb8] sm:$0xff]
    %v1340 = vld [vmem:[%s6 + $0xc0] sm:$0xff]
    %v1341 = vld [vmem:[%s6 + $0xc8] sm:$0xff]
    %v1342 = vld [vmem:[%s6 + $0xd0] sm:$0xff]
    %v1343 = vld [vmem:[%s6 + $0xd8] sm:$0xff]
    %v1344 = vld [vmem:[%s6 + $0xe0] sm:$0xff]
    %v1345 = vld [vmem:[%s6 + $0xe8] sm:$0xff]
    %v1346 = vld [vmem:[%s6 + $0xf0] sm:$0xff]
    %v1347 = vld [vmem:[%s6 + $0xf8] sm:$0xff]
    %v1348 = vld [vmem:[%s6 + $0x100] sm:$0xff]
    %v1349 = vld [vmem:[%s6 + $0x108] sm:$0xff]
    %v1350 = vld [vmem:[%s6 + $0x110] sm:$0xff]
    %v1351 = vld [vmem:[%s6 + $0x118] sm:$0xff]
    %v1352 = vld [vmem:[%s6 + $0x120] sm:$0xff]
    %v1353 = vld [vmem:[%s6 + $0x128] sm:$0xff]
    %v1354 = vld [vmem:[%s6 + $0x130] sm:$0xff]
    %v1355 = vld [vmem:[%s6 + $0x138] sm:$0xff]
    %v1356 = vld [vmem:[%s6 + $0x140] sm:$0xff]
    %v1357 = vld [vmem:[%s6 + $0x148] sm:$0xff]
    %v1358 = vld [vmem:[%s6 + $0x150] sm:$0xff]
    %v1359 = vld [vmem:[%s6 + $0x158] sm:$0xff]
    %v1360 = vld [vmem:[%s6 + $0x160] sm:$0xff]
    %v1361 = vld [vmem:[%s6 + $0x168] sm:$0xff]
    %v1362 = vld [vmem:[%s6 + $0x170] sm:$0xff]
    %v1363 = vld [vmem:[%s6 + $0x178] sm:$0xff]
    %v1364 = vld [vmem:[%s6 + $0x180] sm:$0xff]
    %v1365 = vld [vmem:[%s6 + $0x188] sm:$0xff]
    %v1366 = vld [vmem:[%s6 + $0x190] sm:$0xff]
    %v1367 = vld [vmem:[%s6 + $0x198] sm:$0xff]
    %v1368 = vld [vmem:[%s6 + $0x1a0] sm:$0xff]
    %v1369 = vld [vmem:[%s6 + $0x1a8] sm:$0xff]
    %v1370 = vld [vmem:[%s6 + $0x1b0] sm:$0xff]
    %v1371 = vld [vmem:[%s6 + $0x1b8] sm:$0xff]
    %v1372 = vld [vmem:[%s6 + $0x1c0] sm:$0xff]
    %v1373 = vld [vmem:[%s6 + $0x1c8] sm:$0xff]
    %v1374 = vld [vmem:[%s6 + $0x1d0] sm:$0xff]
    %v1375 = vld [vmem:[%s6 + $0x1d8] sm:$0xff]
    %v1376 = vld [vmem:[%s6 + $0x1e0] sm:$0xff]
    %v1377 = vld [vmem:[%s6 + $0x1e8] sm:$0xff]
    %v1378 = vld [vmem:[%s6 + $0x1f0] sm:$0xff]
    %v1379 = vld [vmem:[%s6 + $0x1f8] sm:$0xff]
    %v1380 = vld [vmem:[%s6 + $0x200] sm:$0xff]
    %v1381 = vld [vmem:[%s6 + $0x208] sm:$0xff]
    %v1382 = vld [vmem:[%s6 + $0x210] sm:$0xff]
    %v1383 = vld [vmem:[%s6 + $0x218] sm:$0xff]
    %v1384 = vld [vmem:[%s6 + $0x220] sm:$0xff]
    %v1385 = vld [vmem:[%s6 + $0x228] sm:$0xff]
    %v1386 = vld [vmem:[%s6 + $0x230] sm:$0xff]
    %v1387 = vld [vmem:[%s6 + $0x238] sm:$0xff]
    %v1388 = vld [vmem:[%s6 + $0x240] sm:$0xff]
    %v1389 = vld [vmem:[%s6 + $0x248] sm:$0xff]
    %v1390 = vld [vmem:[%s6 + $0x250] sm:$0xff]
    %v1391 = vld [vmem:[%s6 + $0x258] sm:$0xff]
    %v1392 = vld [vmem:[%s6 + $0x260] sm:$0xff]
    %v1393 = vld [vmem:[%s6 + $0x268] sm:$0xff]
    %v1394 = vld [vmem:[%s6 + $0x270] sm:$0xff]
    %v1395 = vld [vmem:[%s6 + $0x278] sm:$0xff]
    %v1396 = vld [vmem:[%s6 + $0x280] sm:$0xff]
    %v1397 = vld [vmem:[%s6 + $0x288] sm:$0xff]
    %v1398 = vld [vmem:[%s6 + $0x290] sm:$0xff]
    %v1399 = vld [vmem:[%s6 + $0x298] sm:$0xff]
    %v1400 = vld [vmem:[%s6 + $0x2a0] sm:$0xff]
    %v1401 = vld [vmem:[%s6 + $0x2a8] sm:$0xff]
    %v1402 = vld [vmem:[%s6 + $0x2b0] sm:$0xff]
    %v1403 = vld [vmem:[%s6 + $0x2b8] sm:$0xff]
    %v1404 = vld [vmem:[%s6 + $0x2c0] sm:$0xff]
    %v1405 = vld [vmem:[%s6 + $0x2c8] sm:$0xff]
    %v1406 = vld [vmem:[%s6 + $0x2d0] sm:$0xff]
    %v1407 = vld [vmem:[%s6 + $0x2d8] sm:$0xff]
    %v1408 = vld [vmem:[%s6 + $0x2e0] sm:$0xff]
    %v1409 = vld [vmem:[%s6 + $0x2e8] sm:$0xff]
    %v1410 = vld [vmem:[%s6 + $0x2f0] sm:$0xff]
    %v1411 = vld [vmem:[%s6 + $0x2f8] sm:$0xff]
    %v1412 = vld [vmem:[%s6 + $0x300] sm:$0xff]
    %v1413 = vld [vmem:[%s6 + $0x308] sm:$0xff]
    %v1414 = vld [vmem:[%s6 + $0x310] sm:$0xff]
    %v1415 = vld [vmem:[%s6 + $0x318] sm:$0xff]
    %v1416 = vld [vmem:[%s6 + $0x320] sm:$0xff]
    %v1417 = vld [vmem:[%s6 + $0x328] sm:$0xff]
    %v1418 = vld [vmem:[%s6 + $0x330] sm:$0xff]
    %v1419 = vld [vmem:[%s6 + $0x338] sm:$0xff]
    %v1420 = vld [vmem:[%s6 + $0x340] sm:$0xff]
    %v1421 = vld [vmem:[%s6 + $0x348] sm:$0xff]
    %v1422 = vld [vmem:[%s6 + $0x350] sm:$0xff]
    %v1423 = vld [vmem:[%s6 + $0x358] sm:$0xff]
    %v1424 = vld [vmem:[%s6 + $0x360] sm:$0xff]
    %v1425 = vld [vmem:[%s6 + $0x368] sm:$0xff]
    %v1426 = vld [vmem:[%s6 + $0x370] sm:$0xff]
    %v1427 = vld [vmem:[%s6 + $0x378] sm:$0xff]
    %v1428 = vld [vmem:[%s6 + $0x380] sm:$0xff]
    %v1429 = vld [vmem:[%s6 + $0x388] sm:$0xff]
    %v1430 = vld [vmem:[%s6 + $0x390] sm:$0xff]
    %v1431 = vld [vmem:[%s6 + $0x398] sm:$0xff]
    %v1432 = vld [vmem:[%s6 + $0x3a0] sm:$0xff]
    %v1433 = vld [vmem:[%s6 + $0x3a8] sm:$0xff]
    %v1434 = vld [vmem:[%s6 + $0x3b0] sm:$0xff]
    %v1435 = vld [vmem:[%s6 + $0x3b8] sm:$0xff]
    %v1436 = vld [vmem:[%s6 + $0x3c0] sm:$0xff]
    %v1437 = vld [vmem:[%s6 + $0x3c8] sm:$0xff]
    %v1438 = vld [vmem:[%s6 + $0x3d0] sm:$0xff]
    %v1439 = vld [vmem:[%s6 + $0x3d8] sm:$0xff]
    %v1440 = vld [vmem:[%s6 + $0x3e0] sm:$0xff]
    %v1441 = vld [vmem:[%s6 + $0x3e8] sm:$0xff]
    %v1442 = vld [vmem:[%s6 + $0x3f0] sm:$0xff]
    %v1443 = vld [vmem:[%s6 + $0x3f8] sm:$0xff]
    %v1444 = vld [vmem:[%s6 + $0x400] sm:$0xff]
    %v1445 = vld [vmem:[%s6 + $0x408] sm:$0xff]
    %v1446 = vld [vmem:[%s6 + $0x410] sm:$0xff]
    %v1447 = vld [vmem:[%s6 + $0x418] sm:$0xff]
    %v1448 = vld [vmem:[%s6 + $0x420] sm:$0xff]
    %v1449 = vld [vmem:[%s6 + $0x428] sm:$0xff]
    %v1450 = vld [vmem:[%s6 + $0x430] sm:$0xff]
    %v1451 = vld [vmem:[%s6 + $0x438] sm:$0xff]
    %v1452 = vld [vmem:[%s6 + $0x440] sm:$0xff]
    %v1453 = vld [vmem:[%s6 + $0x448] sm:$0xff]
    %v1454 = vld [vmem:[%s6 + $0x450] sm:$0xff]
    %v1455 = vld [vmem:[%s6 + $0x458] sm:$0xff]
    %v1456 = vld [vmem:[%s6 + $0x460] sm:$0xff]
    %v1457 = vld [vmem:[%s6 + $0x468] sm:$0xff]
    %v1458 = vld [vmem:[%s6 + $0x470] sm:$0xff]
    %v1459 = vld [vmem:[%s6 + $0x478] sm:$0xff]
    %v1460 = vld [vmem:[%s6 + $0x480] sm:$0xff]
    %v1461 = vld [vmem:[%s6 + $0x488] sm:$0xff]
    %v1462 = vld [vmem:[%s6 + $0x490] sm:$0xff]
    %v1463 = vld [vmem:[%s6 + $0x498] sm:$0xff]
    %v1464 = vld [vmem:[%s6 + $0x4a0] sm:$0xff]
    %v1465 = vld [vmem:[%s6 + $0x4a8] sm:$0xff]
    %v1466 = vld [vmem:[%s6 + $0x4b0] sm:$0xff]
    %v1467 = vld [vmem:[%s6 + $0x4b8] sm:$0xff]
    %v1468 = vld [vmem:[%s6 + $0x4c0] sm:$0xff]
    %v1469 = vld [vmem:[%s6 + $0x4c8] sm:$0xff]
    %v1470 = vld [vmem:[%s6 + $0x4d0] sm:$0xff]
    %v1471 = vld [vmem:[%s6 + $0x4d8] sm:$0xff]
    %v1472 = vld [vmem:[%s6 + $0x4e0] sm:$0xff]
    %v1473 = vld [vmem:[%s6 + $0x4e8] sm:$0xff]
    %v1474 = vld [vmem:[%s6 + $0x4f0] sm:$0xff]
    %v1475 = vld [vmem:[%s6 + $0x4f8] sm:$0xff]
    %1476 = vmatpush.msra.mxu0 %v1391
    %1477 = vmatpush.msra.mxu0 %v1386
    %1478 = vmatpush.msra.mxu0 %v1381
    %1479 = vmatpush.msra.mxu0 %v1376
    %1480 = vmatpush.msra.mxu0 %v1371
    %1481 = vmatpush.msra.mxu0 %v1366
    %1482 = vmatpush.msra.mxu0 %v1361
    %1483 = vmatpush.msra.mxu0 %v1356
    %1484 = vmatpush.msra.mxu0 %v1351
    %1485 = vmatpush.msra.mxu0 %v1346
    %1486 = vmatpush.msra.mxu0 %v1341
    %1487 = vmatpush.msra.mxu0 %v1336
    %1488 = vmatpush.msra.mxu0 %v1331
    %1489 = vmatpush.msra.mxu0 %v1326
    %1490 = vmatpush.msra.mxu0 %v1321
    %1491 = vmatpush.msra.mxu0 %v1316
    %1492 = vmatmul.f32.gmra.mxu0 %v922
    %v1493 = vpop.f32.mrf.mxu0
    %v1494 = vadd.f32 0.0, %v1493
    %1495 = vmatmul.f32.gmra.mxu0 %v924
    %v1496 = vpop.f32.mrf.mxu0
    %v1497 = vadd.f32 0.0, %v1496
    %1498 = vmatmul.f32.gmra.mxu0 %v926
    %v1499 = vpop.f32.mrf.mxu0
    %v1500 = vadd.f32 0.0, %v1499
    %1501 = vmatmul.f32.gmra.mxu0 %v928
    %v1502 = vpop.f32.mrf.mxu0
    %v1503 = vadd.f32 0.0, %v1502
    %1504 = vmatmul.f32.gmra.mxu0 %v930
    %v1505 = vpop.f32.mrf.mxu0
    %v1506 = vadd.f32 0.0, %v1505
    %1507 = vmatmul.f32.gmra.mxu0 %v932
    %v1508 = vpop.f32.mrf.mxu0
    %v1509 = vadd.f32 0.0, %v1508
    %1510 = vmatmul.f32.gmra.mxu0 %v934
    %v1511 = vpop.f32.mrf.mxu0
    %v1512 = vadd.f32 0.0, %v1511
    %1513 = vdwg.mxu0
    %1514 = vmatpush.msra.mxu0 %v1471
    %1515 = vmatpush.msra.mxu0 %v1466
    %1516 = vmatpush.msra.mxu0 %v1461
    %1517 = vmatpush.msra.mxu0 %v1456
    %1518 = vmatpush.msra.mxu0 %v1451
    %1519 = vmatpush.msra.mxu0 %v1446
    %1520 = vmatpush.msra.mxu0 %v1441
    %1521 = vmatpush.msra.mxu0 %v1436
    %1522 = vmatpush.msra.mxu0 %v1431
    %1523 = vmatpush.msra.mxu0 %v1426
    %1524 = vmatpush.msra.mxu0 %v1421
    %1525 = vmatpush.msra.mxu0 %v1416
    %1526 = vmatpush.msra.mxu0 %v1411
    %1527 = vmatpush.msra.mxu0 %v1406
    %1528 = vmatpush.msra.mxu0 %v1401
    %1529 = vmatpush.msra.mxu0 %v1396
    %1530 = vmatmul.f32.gmra.mxu0 %v923
    %v1531 = vpop.f32.mrf.mxu0
    %v1532 = vadd.f32 %v1494, %v1531
    %1533 = vmatmul.f32.gmra.mxu0 %v925
    %v1534 = vpop.f32.mrf.mxu0
    %v1535 = vadd.f32 %v1497, %v1534
    %1536 = vmatmul.f32.gmra.mxu0 %v927
    %v1537 = vpop.f32.mrf.mxu0
    %v1538 = vadd.f32 %v1500, %v1537
    %1539 = vmatmul.f32.gmra.mxu0 %v929
    %v1540 = vpop.f32.mrf.mxu0
    %v1541 = vadd.f32 %v1503, %v1540
    %1542 = vmatmul.f32.gmra.mxu0 %v931
    %v1543 = vpop.f32.mrf.mxu0
    %v1544 = vadd.f32 %v1506, %v1543
    %1545 = vmatmul.f32.gmra.mxu0 %v933
    %v1546 = vpop.f32.mrf.mxu0
    %v1547 = vadd.f32 %v1509, %v1546
    %1548 = vmatmul.f32.gmra.mxu0 %v935
    %v1549 = vpop.f32.mrf.mxu0
    %v1550 = vadd.f32 %v1512, %v1549
    %1551 = vdwg.mxu0
    %1552 = vmatpush.msra.mxu0 %v1392
    %1553 = vmatpush.msra.mxu0 %v1387
    %1554 = vmatpush.msra.mxu0 %v1382
    %1555 = vmatpush.msra.mxu0 %v1377
    %1556 = vmatpush.msra.mxu0 %v1372
    %1557 = vmatpush.msra.mxu0 %v1367
    %1558 = vmatpush.msra.mxu0 %v1362
    %1559 = vmatpush.msra.mxu0 %v1357
    %1560 = vmatpush.msra.mxu0 %v1352
    %1561 = vmatpush.msra.mxu0 %v1347
    %1562 = vmatpush.msra.mxu0 %v1342
    %1563 = vmatpush.msra.mxu0 %v1337
    %1564 = vmatpush.msra.mxu0 %v1332
    %1565 = vmatpush.msra.mxu0 %v1327
    %1566 = vmatpush.msra.mxu0 %v1322
    %1567 = vmatpush.msra.mxu0 %v1317
    %1568 = vmatmul.f32.gmra.mxu0 %v922
    %v1569 = vpop.f32.mrf.mxu0
    %v1570 = vadd.f32 0.0, %v1569
    %1571 = vmatmul.f32.gmra.mxu0 %v924
    %v1572 = vpop.f32.mrf.mxu0
    %v1573 = vadd.f32 0.0, %v1572
    %1574 = vmatmul.f32.gmra.mxu0 %v926
    %v1575 = vpop.f32.mrf.mxu0
    %v1576 = vadd.f32 0.0, %v1575
    %1577 = vmatmul.f32.gmra.mxu0 %v928
    %v1578 = vpop.f32.mrf.mxu0
    %v1579 = vadd.f32 0.0, %v1578
    %1580 = vmatmul.f32.gmra.mxu0 %v930
    %v1581 = vpop.f32.mrf.mxu0
    %v1582 = vadd.f32 0.0, %v1581
    %1583 = vmatmul.f32.gmra.mxu0 %v932
    %v1584 = vpop.f32.mrf.mxu0
    %v1585 = vadd.f32 0.0, %v1584
    %1586 = vmatmul.f32.gmra.mxu0 %v934
    %v1587 = vpop.f32.mrf.mxu0
    %v1588 = vadd.f32 0.0, %v1587
    %1589 = vdwg.mxu0
    %1590 = vmatpush.msra.mxu0 %v1472
    %1591 = vmatpush.msra.mxu0 %v1467
    %1592 = vmatpush.msra.mxu0 %v1462
    %1593 = vmatpush.msra.mxu0 %v1457
    %1594 = vmatpush.msra.mxu0 %v1452
    %1595 = vmatpush.msra.mxu0 %v1447
    %1596 = vmatpush.msra.mxu0 %v1442
    %1597 = vmatpush.msra.mxu0 %v1437
    %1598 = vmatpush.msra.mxu0 %v1432
    %1599 = vmatpush.msra.mxu0 %v1427
    %1600 = vmatpush.msra.mxu0 %v1422
    %1601 = vmatpush.msra.mxu0 %v1417
    %1602 = vmatpush.msra.mxu0 %v1412
    %1603 = vmatpush.msra.mxu0 %v1407
    %1604 = vmatpush.msra.mxu0 %v1402
    %1605 = vmatpush.msra.mxu0 %v1397
    %1606 = vmatmul.f32.gmra.mxu0 %v923
    %v1607 = vpop.f32.mrf.mxu0
    %v1608 = vadd.f32 %v1570, %v1607
    %1609 = vmatmul.f32.gmra.mxu0 %v925
    %v1610 = vpop.f32.mrf.mxu0
    %v1611 = vadd.f32 %v1573, %v1610
    %1612 = vmatmul.f32.gmra.mxu0 %v927
    %v1613 = vpop.f32.mrf.mxu0
    %v1614 = vadd.f32 %v1576, %v1613
    %1615 = vmatmul.f32.gmra.mxu0 %v929
    %v1616 = vpop.f32.mrf.mxu0
    %v1617 = vadd.f32 %v1579, %v1616
    %1618 = vmatmul.f32.gmra.mxu0 %v931
    %v1619 = vpop.f32.mrf.mxu0
    %v1620 = vadd.f32 %v1582, %v1619
    %1621 = vmatmul.f32.gmra.mxu0 %v933
    %v1622 = vpop.f32.mrf.mxu0
    %v1623 = vadd.f32 %v1585, %v1622
    %1624 = vmatmul.f32.gmra.mxu0 %v935
    %v1625 = vpop.f32.mrf.mxu0
    %v1626 = vadd.f32 %v1588, %v1625
    %1627 = vdwg.mxu0
    %1628 = vmatpush.msra.mxu0 %v1393
    %1629 = vmatpush.msra.mxu0 %v1388
    %1630 = vmatpush.msra.mxu0 %v1383
    %1631 = vmatpush.msra.mxu0 %v1378
    %1632 = vmatpush.msra.mxu0 %v1373
    %1633 = vmatpush.msra.mxu0 %v1368
    %1634 = vmatpush.msra.mxu0 %v1363
    %1635 = vmatpush.msra.mxu0 %v1358
    %1636 = vmatpush.msra.mxu0 %v1353
    %1637 = vmatpush.msra.mxu0 %v1348
    %1638 = vmatpush.msra.mxu0 %v1343
    %1639 = vmatpush.msra.mxu0 %v1338
    %1640 = vmatpush.msra.mxu0 %v1333
    %1641 = vmatpush.msra.mxu0 %v1328
    %1642 = vmatpush.msra.mxu0 %v1323
    %1643 = vmatpush.msra.mxu0 %v1318
    %1644 = vmatmul.f32.gmra.mxu0 %v922
    %v1645 = vpop.f32.mrf.mxu0
    %v1646 = vadd.f32 0.0, %v1645
    %1647 = vmatmul.f32.gmra.mxu0 %v924
    %v1648 = vpop.f32.mrf.mxu0
    %v1649 = vadd.f32 0.0, %v1648
    %1650 = vmatmul.f32.gmra.mxu0 %v926
    %v1651 = vpop.f32.mrf.mxu0
    %v1652 = vadd.f32 0.0, %v1651
    %1653 = vmatmul.f32.gmra.mxu0 %v928
    %v1654 = vpop.f32.mrf.mxu0
    %v1655 = vadd.f32 0.0, %v1654
    %1656 = vmatmul.f32.gmra.mxu0 %v930
    %v1657 = vpop.f32.mrf.mxu0
    %v1658 = vadd.f32 0.0, %v1657
    %1659 = vmatmul.f32.gmra.mxu0 %v932
    %v1660 = vpop.f32.mrf.mxu0
    %v1661 = vadd.f32 0.0, %v1660
    %1662 = vmatmul.f32.gmra.mxu0 %v934
    %v1663 = vpop.f32.mrf.mxu0
    %v1664 = vadd.f32 0.0, %v1663
    %1665 = vdwg.mxu0
    %1666 = vmatpush.msra.mxu0 %v1473
    %1667 = vmatpush.msra.mxu0 %v1468
    %1668 = vmatpush.msra.mxu0 %v1463
    %1669 = vmatpush.msra.mxu0 %v1458
    %1670 = vmatpush.msra.mxu0 %v1453
    %1671 = vmatpush.msra.mxu0 %v1448
    %1672 = vmatpush.msra.mxu0 %v1443
    %1673 = vmatpush.msra.mxu0 %v1438
    %1674 = vmatpush.msra.mxu0 %v1433
    %1675 = vmatpush.msra.mxu0 %v1428
    %1676 = vmatpush.msra.mxu0 %v1423
    %1677 = vmatpush.msra.mxu0 %v1418
    %1678 = vmatpush.msra.mxu0 %v1413
    %1679 = vmatpush.msra.mxu0 %v1408
    %1680 = vmatpush.msra.mxu0 %v1403
    %1681 = vmatpush.msra.mxu0 %v1398
    %1682 = vmatmul.f32.gmra.mxu0 %v923
    %v1683 = vpop.f32.mrf.mxu0
    %v1684 = vadd.f32 %v1646, %v1683
    %1685 = vmatmul.f32.gmra.mxu0 %v925
    %v1686 = vpop.f32.mrf.mxu0
    %v1687 = vadd.f32 %v1649, %v1686
    %1688 = vmatmul.f32.gmra.mxu0 %v927
    %v1689 = vpop.f32.mrf.mxu0
    %v1690 = vadd.f32 %v1652, %v1689
    %1691 = vmatmul.f32.gmra.mxu0 %v929
    %v1692 = vpop.f32.mrf.mxu0
    %v1693 = vadd.f32 %v1655, %v1692
    %1694 = vmatmul.f32.gmra.mxu0 %v931
    %v1695 = vpop.f32.mrf.mxu0
    %v1696 = vadd.f32 %v1658, %v1695
    %1697 = vmatmul.f32.gmra.mxu0 %v933
    %v1698 = vpop.f32.mrf.mxu0
    %v1699 = vadd.f32 %v1661, %v1698
    %1700 = vmatmul.f32.gmra.mxu0 %v935
    %v1701 = vpop.f32.mrf.mxu0
    %v1702 = vadd.f32 %v1664, %v1701
    %1703 = vdwg.mxu0
    %1704 = vmatpush.msra.mxu0 %v1394
    %1705 = vmatpush.msra.mxu0 %v1389
    %1706 = vmatpush.msra.mxu0 %v1384
    %1707 = vmatpush.msra.mxu0 %v1379
    %1708 = vmatpush.msra.mxu0 %v1374
    %1709 = vmatpush.msra.mxu0 %v1369
    %1710 = vmatpush.msra.mxu0 %v1364
    %1711 = vmatpush.msra.mxu0 %v1359
    %1712 = vmatpush.msra.mxu0 %v1354
    %1713 = vmatpush.msra.mxu0 %v1349
    %1714 = vmatpush.msra.mxu0 %v1344
    %1715 = vmatpush.msra.mxu0 %v1339
    %1716 = vmatpush.msra.mxu0 %v1334
    %1717 = vmatpush.msra.mxu0 %v1329
    %1718 = vmatpush.msra.mxu0 %v1324
    %1719 = vmatpush.msra.mxu0 %v1319
    %1720 = vmatmul.f32.gmra.mxu0 %v922
    %v1721 = vpop.f32.mrf.mxu0
    %v1722 = vadd.f32 0.0, %v1721
    %1723 = vmatmul.f32.gmra.mxu0 %v924
    %v1724 = vpop.f32.mrf.mxu0
    %v1725 = vadd.f32 0.0, %v1724
    %1726 = vmatmul.f32.gmra.mxu0 %v926
    %v1727 = vpop.f32.mrf.mxu0
    %v1728 = vadd.f32 0.0, %v1727
    %1729 = vmatmul.f32.gmra.mxu0 %v928
    %v1730 = vpop.f32.mrf.mxu0
    %v1731 = vadd.f32 0.0, %v1730
    %1732 = vmatmul.f32.gmra.mxu0 %v930
    %v1733 = vpop.f32.mrf.mxu0
    %v1734 = vadd.f32 0.0, %v1733
    %1735 = vmatmul.f32.gmra.mxu0 %v932
    %v1736 = vpop.f32.mrf.mxu0
    %v1737 = vadd.f32 0.0, %v1736
    %1738 = vmatmul.f32.gmra.mxu0 %v934
    %v1739 = vpop.f32.mrf.mxu0
    %v1740 = vadd.f32 0.0, %v1739
    %1741 = vdwg.mxu0
    %1742 = vmatpush.msra.mxu0 %v1474
    %1743 = vmatpush.msra.mxu0 %v1469
    %1744 = vmatpush.msra.mxu0 %v1464
    %1745 = vmatpush.msra.mxu0 %v1459
    %1746 = vmatpush.msra.mxu0 %v1454
    %1747 = vmatpush.msra.mxu0 %v1449
    %1748 = vmatpush.msra.mxu0 %v1444
    %1749 = vmatpush.msra.mxu0 %v1439
    %1750 = vmatpush.msra.mxu0 %v1434
    %1751 = vmatpush.msra.mxu0 %v1429
    %1752 = vmatpush.msra.mxu0 %v1424
    %1753 = vmatpush.msra.mxu0 %v1419
    %1754 = vmatpush.msra.mxu0 %v1414
    %1755 = vmatpush.msra.mxu0 %v1409
    %1756 = vmatpush.msra.mxu0 %v1404
    %1757 = vmatpush.msra.mxu0 %v1399
    %1758 = vmatmul.f32.gmra.mxu0 %v923
    %v1759 = vpop.f32.mrf.mxu0
    %v1760 = vadd.f32 %v1722, %v1759
    %1761 = vmatmul.f32.gmra.mxu0 %v925
    %v1762 = vpop.f32.mrf.mxu0
    %v1763 = vadd.f32 %v1725, %v1762
    %1764 = vmatmul.f32.gmra.mxu0 %v927
    %v1765 = vpop.f32.mrf.mxu0
    %v1766 = vadd.f32 %v1728, %v1765
    %1767 = vmatmul.f32.gmra.mxu0 %v929
    %v1768 = vpop.f32.mrf.mxu0
    %v1769 = vadd.f32 %v1731, %v1768
    %1770 = vmatmul.f32.gmra.mxu0 %v931
    %v1771 = vpop.f32.mrf.mxu0
    %v1772 = vadd.f32 %v1734, %v1771
    %1773 = vmatmul.f32.gmra.mxu0 %v933
    %v1774 = vpop.f32.mrf.mxu0
    %v1775 = vadd.f32 %v1737, %v1774
    %1776 = vmatmul.f32.gmra.mxu0 %v935
    %v1777 = vpop.f32.mrf.mxu0
    %v1778 = vadd.f32 %v1740, %v1777
    %1779 = vdwg.mxu0
    %1780 = vmatpush.msra.mxu0 %v1395
    %1781 = vmatpush.msra.mxu0 %v1390
    %1782 = vmatpush.msra.mxu0 %v1385
    %1783 = vmatpush.msra.mxu0 %v1380
    %1784 = vmatpush.msra.mxu0 %v1375
    %1785 = vmatpush.msra.mxu0 %v1370
    %1786 = vmatpush.msra.mxu0 %v1365
    %1787 = vmatpush.msra.mxu0 %v1360
    %1788 = vmatpush.msra.mxu0 %v1355
    %1789 = vmatpush.msra.mxu0 %v1350
    %1790 = vmatpush.msra.mxu0 %v1345
    %1791 = vmatpush.msra.mxu0 %v1340
    %1792 = vmatpush.msra.mxu0 %v1335
    %1793 = vmatpush.msra.mxu0 %v1330
    %1794 = vmatpush.msra.mxu0 %v1325
    %1795 = vmatpush.msra.mxu0 %v1320
    %1796 = vmatmul.f32.gmra.mxu0 %v922
    %v1797 = vpop.f32.mrf.mxu0
    %v1798 = vadd.f32 0.0, %v1797
    %1799 = vmatmul.f32.gmra.mxu0 %v924
    %v1800 = vpop.f32.mrf.mxu0
    %v1801 = vadd.f32 0.0, %v1800
    %1802 = vmatmul.f32.gmra.mxu0 %v926
    %v1803 = vpop.f32.mrf.mxu0
    %v1804 = vadd.f32 0.0, %v1803
    %1805 = vmatmul.f32.gmra.mxu0 %v928
    %v1806 = vpop.f32.mrf.mxu0
    %v1807 = vadd.f32 0.0, %v1806
    %1808 = vmatmul.f32.gmra.mxu0 %v930
    %v1809 = vpop.f32.mrf.mxu0
    %v1810 = vadd.f32 0.0, %v1809
    %1811 = vmatmul.f32.gmra.mxu0 %v932
    %v1812 = vpop.f32.mrf.mxu0
    %v1813 = vadd.f32 0.0, %v1812
    %1814 = vmatmul.f32.gmra.mxu0 %v934
    %v1815 = vpop.f32.mrf.mxu0
    %v1816 = vadd.f32 0.0, %v1815
    %1817 = vdwg.mxu0
    %1818 = vmatpush.msra.mxu0 %v1475
    %1819 = vmatpush.msra.mxu0 %v1470
    %1820 = vmatpush.msra.mxu0 %v1465
    %1821 = vmatpush.msra.mxu0 %v1460
    %1822 = vmatpush.msra.mxu0 %v1455
    %1823 = vmatpush.msra.mxu0 %v1450
    %1824 = vmatpush.msra.mxu0 %v1445
    %1825 = vmatpush.msra.mxu0 %v1440
    %1826 = vmatpush.msra.mxu0 %v1435
    %1827 = vmatpush.msra.mxu0 %v1430
    %1828 = vmatpush.msra.mxu0 %v1425
    %1829 = vmatpush.msra.mxu0 %v1420
    %1830 = vmatpush.msra.mxu0 %v1415
    %1831 = vmatpush.msra.mxu0 %v1410
    %1832 = vmatpush.msra.mxu0 %v1405
    %1833 = vmatpush.msra.mxu0 %v1400
    %1834 = vmatmul.f32.gmra.mxu0 %v923
    %v1835 = vpop.f32.mrf.mxu0
    %v1836 = vadd.f32 %v1798, %v1835
    %1837 = vmatmul.f32.gmra.mxu0 %v925
    %v1838 = vpop.f32.mrf.mxu0
    %v1839 = vadd.f32 %v1801, %v1838
    %1840 = vmatmul.f32.gmra.mxu0 %v927
    %v1841 = vpop.f32.mrf.mxu0
    %v1842 = vadd.f32 %v1804, %v1841
    %1843 = vmatmul.f32.gmra.mxu0 %v929
    %v1844 = vpop.f32.mrf.mxu0
    %v1845 = vadd.f32 %v1807, %v1844
    %1846 = vmatmul.f32.gmra.mxu0 %v931
    %v1847 = vpop.f32.mrf.mxu0
    %v1848 = vadd.f32 %v1810, %v1847
    %1849 = vmatmul.f32.gmra.mxu0 %v933
    %v1850 = vpop.f32.mrf.mxu0
    %v1851 = vadd.f32 %v1813, %v1850
    %1852 = vmatmul.f32.gmra.mxu0 %v935
    %v1853 = vpop.f32.mrf.mxu0
    %v1854 = vadd.f32 %v1816, %v1853
    %1855 = vdwg.mxu0
    %v1856 = vmul.f32 %v992, %v1532
    %v1857 = vmul.f32 %v1068, %v1608
    %v1858 = vmul.f32 %v1144, %v1684
    %v1859 = vmul.f32 %v1220, %v1760
    %v1860 = vmul.f32 %v1296, %v1836
    %v1861 = vmul.f32 %v995, %v1535
    %v1862 = vmul.f32 %v1071, %v1611
    %v1863 = vmul.f32 %v1147, %v1687
    %v1864 = vmul.f32 %v1223, %v1763
    %v1865 = vmul.f32 %v1299, %v1839
    %v1866 = vmul.f32 %v998, %v1538
    %v1867 = vmul.f32 %v1074, %v1614
    %v1868 = vmul.f32 %v1150, %v1690
    %v1869 = vmul.f32 %v1226, %v1766
    %v1870 = vmul.f32 %v1302, %v1842
    %v1871 = vmul.f32 %v1001, %v1541
    %v1872 = vmul.f32 %v1077, %v1617
    %v1873 = vmul.f32 %v1153, %v1693
    %v1874 = vmul.f32 %v1229, %v1769
    %v1875 = vmul.f32 %v1305, %v1845
    %v1876 = vmul.f32 %v1004, %v1544
    %v1877 = vmul.f32 %v1080, %v1620
    %v1878 = vmul.f32 %v1156, %v1696
    %v1879 = vmul.f32 %v1232, %v1772
    %v1880 = vmul.f32 %v1308, %v1848
    %v1881 = vmul.f32 %v1007, %v1547
    %v1882 = vmul.f32 %v1083, %v1623
    %v1883 = vmul.f32 %v1159, %v1699
    %v1884 = vmul.f32 %v1235, %v1775
    %v1885 = vmul.f32 %v1311, %v1851
    %v1886 = vmul.f32 %v1010, %v1550
    %v1887 = vmul.f32 %v1086, %v1626
    %v1888 = vmul.f32 %v1162, %v1702
    %v1889 = vmul.f32 %v1238, %v1778
    %v1890 = vmul.f32 %v1314, %v1854
    %1891 = vmatpush.msra.mxu0 0.0
    %1892 = vmatpush.msra.mxu0 0.0
    %1893 = vmatpush.msra.mxu0 0.0
    %1894 = vmatpush.msra.mxu0 0.0
    %1895 = vmatpush.msra.mxu0 0.0
    %1896 = vmatpush.msra.mxu0 0.0
    %1897 = vmatpush.msra.mxu0 0.0
    %1898 = vmatpush.msra.mxu0 0.0
    %1899 = vmatpush.msra.mxu0 0.0
    %1900 = vmatpush.msra.mxu0 %v1886
    %1901 = vmatpush.msra.mxu0 %v1881
    %1902 = vmatpush.msra.mxu0 %v1876
    %1903 = vmatpush.msra.mxu0 %v1871
    %1904 = vmatpush.msra.mxu0 %v1866
    %1905 = vmatpush.msra.mxu0 %v1861
    %1906 = vmatpush.msra.mxu0 %v1856
    %1907 = vmatmul.f32.gmra.mxu0 %v536
    %v1908 = vpop.f32.mrf.mxu0
    %v1909 = vadd.f32 0.0, %v1908
    %1910 = vdwg.mxu0
    %1911 = vmatpush.msra.mxu0 0.0
    %1912 = vmatpush.msra.mxu0 0.0
    %1913 = vmatpush.msra.mxu0 0.0
    %1914 = vmatpush.msra.mxu0 0.0
    %1915 = vmatpush.msra.mxu0 0.0
    %1916 = vmatpush.msra.mxu0 0.0
    %1917 = vmatpush.msra.mxu0 0.0
    %1918 = vmatpush.msra.mxu0 0.0
    %1919 = vmatpush.msra.mxu0 0.0
    %1920 = vmatpush.msra.mxu0 %v1887
    %1921 = vmatpush.msra.mxu0 %v1882
    %1922 = vmatpush.msra.mxu0 %v1877
    %1923 = vmatpush.msra.mxu0 %v1872
    %1924 = vmatpush.msra.mxu0 %v1867
    %1925 = vmatpush.msra.mxu0 %v1862
    %1926 = vmatpush.msra.mxu0 %v1857
    %1927 = vmatmul.f32.gmra.mxu0 %v536
    %v1928 = vpop.f32.mrf.mxu0
    %v1929 = vadd.f32 0.0, %v1928
    %1930 = vdwg.mxu0
    %1931 = vmatpush.msra.mxu0 0.0
    %1932 = vmatpush.msra.mxu0 0.0
    %1933 = vmatpush.msra.mxu0 0.0
    %1934 = vmatpush.msra.mxu0 0.0
    %1935 = vmatpush.msra.mxu0 0.0
    %1936 = vmatpush.msra.mxu0 0.0
    %1937 = vmatpush.msra.mxu0 0.0
    %1938 = vmatpush.msra.mxu0 0.0
    %1939 = vmatpush.msra.mxu0 0.0
    %1940 = vmatpush.msra.mxu0 %v1888
    %1941 = vmatpush.msra.mxu0 %v1883
    %1942 = vmatpush.msra.mxu0 %v1878
    %1943 = vmatpush.msra.mxu0 %v1873
    %1944 = vmatpush.msra.mxu0 %v1868
    %1945 = vmatpush.msra.mxu0 %v1863
    %1946 = vmatpush.msra.mxu0 %v1858
    %1947 = vmatmul.f32.gmra.mxu0 %v536
    %v1948 = vpop.f32.mrf.mxu0
    %v1949 = vadd.f32 0.0, %v1948
    %1950 = vdwg.mxu0
    %1951 = vmatpush.msra.mxu0 0.0
    %1952 = vmatpush.msra.mxu0 0.0
    %1953 = vmatpush.msra.mxu0 0.0
    %1954 = vmatpush.msra.mxu0 0.0
    %1955 = vmatpush.msra.mxu0 0.0
    %1956 = vmatpush.msra.mxu0 0.0
    %1957 = vmatpush.msra.mxu0 0.0
    %1958 = vmatpush.msra.mxu0 0.0
    %1959 = vmatpush.msra.mxu0 0.0
    %1960 = vmatpush.msra.mxu0 %v1889
    %1961 = vmatpush.msra.mxu0 %v1884
    %1962 = vmatpush.msra.mxu0 %v1879
    %1963 = vmatpush.msra.mxu0 %v1874
    %1964 = vmatpush.msra.mxu0 %v1869
    %1965 = vmatpush.msra.mxu0 %v1864
    %1966 = vmatpush.msra.mxu0 %v1859
    %1967 = vmatmul.f32.gmra.mxu0 %v536
    %v1968 = vpop.f32.mrf.mxu0
    %v1969 = vadd.f32 0.0, %v1968
    %1970 = vdwg.mxu0
    %1971 = vmatpush.msra.mxu0 0.0
    %1972 = vmatpush.msra.mxu0 0.0
    %1973 = vmatpush.msra.mxu0 0.0
    %1974 = vmatpush.msra.mxu0 0.0
    %1975 = vmatpush.msra.mxu0 0.0
    %1976 = vmatpush.msra.mxu0 0.0
    %1977 = vmatpush.msra.mxu0 0.0
    %1978 = vmatpush.msra.mxu0 0.0
    %1979 = vmatpush.msra.mxu0 0.0
    %1980 = vmatpush.msra.mxu0 %v1890
    %1981 = vmatpush.msra.mxu0 %v1885
    %1982 = vmatpush.msra.mxu0 %v1880
    %1983 = vmatpush.msra.mxu0 %v1875
    %1984 = vmatpush.msra.mxu0 %v1870
    %1985 = vmatpush.msra.mxu0 %v1865
    %1986 = vmatpush.msra.mxu0 %v1860
    %1987 = vmatmul.f32.gmra.mxu0 %v536
    %v1988 = vpop.f32.mrf.mxu0
    %v1989 = vadd.f32 0.0, %v1988
    %1990 = vdwg.mxu0
    %1991 = vmatpush.msra.mxu0 %v469
    %1992 = vmatpush.msra.mxu0 %v468
    %1993 = vmatpush.msra.mxu0 %v467
    %1994 = vmatpush.msra.mxu0 %v466
    %1995 = vmatpush.msra.mxu0 %v465
    %1996 = vmatpush.msra.mxu0 %v464
    %1997 = vmatpush.msra.mxu0 %v463
    %1998 = vmatpush.msra.mxu0 %v462
    %1999 = vmatpush.msra.mxu0 %v461
    %2000 = vmatpush.msra.mxu0 %v460
    %2001 = vmatpush.msra.mxu0 %v459
    %2002 = vmatpush.msra.mxu0 %v458
    %2003 = vmatpush.msra.mxu0 %v457
    %2004 = vmatpush.msra.mxu0 %v456
    %2005 = vmatpush.msra.mxu0 %v455
    %2006 = vmatpush.msra.mxu0 %v454
    %2007 = vmatmul.f32.gmra.mxu0 %v1909
    %v2008 = vpop.f32.mrf.mxu0
    %v2009 = vadd.f32 0.0, %v2008
    %2010 = vdwg.mxu0
    %2011 = vmatpush.msra.mxu0 %v485
    %2012 = vmatpush.msra.mxu0 %v484
    %2013 = vmatpush.msra.mxu0 %v483
    %2014 = vmatpush.msra.mxu0 %v482
    %2015 = vmatpush.msra.mxu0 %v481
    %2016 = vmatpush.msra.mxu0 %v480
    %2017 = vmatpush.msra.mxu0 %v479
    %2018 = vmatpush.msra.mxu0 %v478
    %2019 = vmatpush.msra.mxu0 %v477
    %2020 = vmatpush.msra.mxu0 %v476
    %2021 = vmatpush.msra.mxu0 %v475
    %2022 = vmatpush.msra.mxu0 %v474
    %2023 = vmatpush.msra.mxu0 %v473
    %2024 = vmatpush.msra.mxu0 %v472
    %2025 = vmatpush.msra.mxu0 %v471
    %2026 = vmatpush.msra.mxu0 %v470
    %2027 = vmatmul.f32.gmra.mxu0 %v1929
    %v2028 = vpop.f32.mrf.mxu0
    %v2029 = vadd.f32 %v2009, %v2028
    %2030 = vdwg.mxu0
    %2031 = vmatpush.msra.mxu0 %v501
    %2032 = vmatpush.msra.mxu0 %v500
    %2033 = vmatpush.msra.mxu0 %v499
    %2034 = vmatpush.msra.mxu0 %v498
    %2035 = vmatpush.msra.mxu0 %v497
    %2036 = vmatpush.msra.mxu0 %v496
    %2037 = vmatpush.msra.mxu0 %v495
    %2038 = vmatpush.msra.mxu0 %v494
    %2039 = vmatpush.msra.mxu0 %v493
    %2040 = vmatpush.msra.mxu0 %v492
    %2041 = vmatpush.msra.mxu0 %v491
    %2042 = vmatpush.msra.mxu0 %v490
    %2043 = vmatpush.msra.mxu0 %v489
    %2044 = vmatpush.msra.mxu0 %v488
    %2045 = vmatpush.msra.mxu0 %v487
    %2046 = vmatpush.msra.mxu0 %v486
    %2047 = vmatmul.f32.gmra.mxu0 %v1949
    %v2048 = vpop.f32.mrf.mxu0
    %v2049 = vadd.f32 %v2029, %v2048
    %2050 = vdwg.mxu0
    %2051 = vmatpush.msra.mxu0 %v517
    %2052 = vmatpush.msra.mxu0 %v516
    %2053 = vmatpush.msra.mxu0 %v515
    %2054 = vmatpush.msra.mxu0 %v514
    %2055 = vmatpush.msra.mxu0 %v513
    %2056 = vmatpush.msra.mxu0 %v512
    %2057 = vmatpush.msra.mxu0 %v511
    %2058 = vmatpush.msra.mxu0 %v510
    %2059 = vmatpush.msra.mxu0 %v509
    %2060 = vmatpush.msra.mxu0 %v508
    %2061 = vmatpush.msra.mxu0 %v507
    %2062 = vmatpush.msra.mxu0 %v506
    %2063 = vmatpush.msra.mxu0 %v505
    %2064 = vmatpush.msra.mxu0 %v504
    %2065 = vmatpush.msra.mxu0 %v503
    %2066 = vmatpush.msra.mxu0 %v502
    %2067 = vmatmul.f32.gmra.mxu0 %v1969
    %v2068 = vpop.f32.mrf.mxu0
    %v2069 = vadd.f32 %v2049, %v2068
    %2070 = vdwg.mxu0
    %2071 = vmatpush.msra.mxu0 %v533
    %2072 = vmatpush.msra.mxu0 %v532
    %2073 = vmatpush.msra.mxu0 %v531
    %2074 = vmatpush.msra.mxu0 %v530
    %2075 = vmatpush.msra.mxu0 %v529
    %2076 = vmatpush.msra.mxu0 %v528
    %2077 = vmatpush.msra.mxu0 %v527
    %2078 = vmatpush.msra.mxu0 %v526
    %2079 = vmatpush.msra.mxu0 %v525
    %2080 = vmatpush.msra.mxu0 %v524
    %2081 = vmatpush.msra.mxu0 %v523
    %2082 = vmatpush.msra.mxu0 %v522
    %2083 = vmatpush.msra.mxu0 %v521
    %2084 = vmatpush.msra.mxu0 %v520
    %2085 = vmatpush.msra.mxu0 %v519
    %2086 = vmatpush.msra.mxu0 %v518
    %2087 = vmatmul.f32.gmra.mxu0 %v1989
    %v2088 = vpop.f32.mrf.mxu0
    %v2089 = vadd.f32 %v2069, %v2088
    %2090 = vdwg.mxu0
    %v2091 = vmax.f32 %v2089, 0.0
    %2093 = vrot.lane.b32.xlu0 %v2091, 48
    %v2094 = vpop.permute.xlu0 %2093
    %v2096 = vmul.f32 %v2089, %v2094
    %2098 = vrot.lane.b32.xlu0 %v2096, 64
    %v2099 = vpop.permute.xlu0 %2098
    %vm2100 = vcmask 392192
    %v2101 = vsel %vm2100, %v2099, 0
    %2103 = vmatpush.msra.mxu0 0.0
    %2104 = vmatpush.msra.mxu0 0.0
    %2105 = vmatpush.msra.mxu0 0.0
    %2106 = vmatpush.msra.mxu0 0.0
    %2107 = vmatpush.msra.mxu0 0.0
    %2108 = vmatpush.msra.mxu0 0.0
    %2109 = vmatpush.msra.mxu0 0.0
    %2110 = vmatpush.msra.mxu0 0.0
    %2111 = vmatpush.msra.mxu0 0.0
    %2112 = vmatpush.msra.mxu0 0.0
    %2113 = vmatpush.msra.mxu0 %v67
    %2114 = vmatpush.msra.mxu0 %v66
    %2115 = vmatpush.msra.mxu0 %v65
    %2116 = vmatpush.msra.mxu0 %v64
    %2117 = vmatpush.msra.mxu0 %v63
    %2118 = vmatpush.msra.mxu0 %v62
    %2119 = vmatmul.f32.gmra.mxu0 %v2101
    %v2120 = vpop.f32.mrf.mxu0
    %v2121 = vadd.f32 0.0, %v2120
    %2122 = vdwg.mxu0
    %v2123 = vsel %vm558, %v2091, 0
    %2125 = vmatpush.msra.mxu0 0.0
    %2126 = vmatpush.msra.mxu0 0.0
    %2127 = vmatpush.msra.mxu0 0.0
    %2128 = vmatpush.msra.mxu0 0.0
    %2129 = vmatpush.msra.mxu0 0.0
    %2130 = vmatpush.msra.mxu0 0.0
    %2131 = vmatpush.msra.mxu0 0.0
    %2132 = vmatpush.msra.mxu0 0.0
    %2133 = vmatpush.msra.mxu0 0.0
    %2134 = vmatpush.msra.mxu0 0.0
    %2135 = vmatpush.msra.mxu0 0.0
    %2136 = vmatpush.msra.mxu0 0.0
    %2137 = vmatpush.msra.mxu0 0.0
    %2138 = vmatpush.msra.mxu0 0.0
    %2139 = vmatpush.msra.mxu0 %v61
    %2140 = vmatpush.msra.mxu0 %v60
    %2141 = vmatmul.f32.gmra.mxu0 %v2123
    %v2142 = vpop.f32.mrf.mxu0
    %v2143 = vadd.f32 %v2121, %v2142
    %2144 = vdwg.mxu0
    %2145 = vmatpush.msra.mxu0 0.0
    %2146 = vmatpush.msra.mxu0 0.0
    %2147 = vmatpush.msra.mxu0 0.0
    %2148 = vmatpush.msra.mxu0 0.0
    %2149 = vmatpush.msra.mxu0 0.0
    %2150 = vmatpush.msra.mxu0 0.0
    %2151 = vmatpush.msra.mxu0 0.0
    %2152 = vmatpush.msra.mxu0 0.0
    %2153 = vmatpush.msra.mxu0 0.0
    %2154 = vmatpush.msra.mxu0 0.0
    %2155 = vmatpush.msra.mxu0 0.0
    %2156 = vmatpush.msra.mxu0 0.0
    %2157 = vmatpush.msra.mxu0 0.0
    %2158 = vmatpush.msra.mxu0 0.0
    %2159 = vmatpush.msra.mxu0 0.0
    %2160 = vmatpush.msra.mxu0 %v2143
    %2161 = vmatmul.f32.gmra.mxu0 %v624
    %v2162 = vpop.f32.mrf.mxu0
    %v2163 = vadd.f32 0.0, %v2162
    %2164 = vmatmul.f32.gmra.mxu0 %v626
    %v2165 = vpop.f32.mrf.mxu0
    %v2166 = vadd.f32 0.0, %v2165
    %2167 = vmatmul.f32.gmra.mxu0 %v628
    %v2168 = vpop.f32.mrf.mxu0
    %v2169 = vadd.f32 0.0, %v2168
    %2170 = vmatmul.f32.gmra.mxu0 %v630
    %v2171 = vpop.f32.mrf.mxu0
    %v2172 = vadd.f32 0.0, %v2171
    %2173 = vmatmul.f32.gmra.mxu0 %v632
    %v2174 = vpop.f32.mrf.mxu0
    %v2175 = vadd.f32 0.0, %v2174
    %2176 = vmatmul.f32.gmra.mxu0 %v634
    %v2177 = vpop.f32.mrf.mxu0
    %v2178 = vadd.f32 0.0, %v2177
    %2179 = vmatmul.f32.gmra.mxu0 %v636
    %v2180 = vpop.f32.mrf.mxu0
    %v2181 = vadd.f32 0.0, %v2180
    %2182 = vdwg.mxu0
    %2183 = vmatpush.msra.mxu0 0.0
    %2184 = vmatpush.msra.mxu0 0.0
    %2185 = vmatpush.msra.mxu0 0.0
    %2186 = vmatpush.msra.mxu0 0.0
    %2187 = vmatpush.msra.mxu0 0.0
    %2188 = vmatpush.msra.mxu0 0.0
    %2189 = vmatpush.msra.mxu0 0.0
    %2190 = vmatpush.msra.mxu0 0.0
    %2191 = vmatpush.msra.mxu0 0.0
    %2192 = vmatpush.msra.mxu0 0.0
    %2193 = vmatpush.msra.mxu0 0.0
    %2194 = vmatpush.msra.mxu0 0.0
    %2195 = vmatpush.msra.mxu0 0.0
    %2196 = vmatpush.msra.mxu0 0.0
    %2197 = vmatpush.msra.mxu0 %v69
    %2198 = vmatpush.msra.mxu0 %v68
    %2199 = vmatmul.f32.gmra.mxu0 %v714
    %v2200 = vpop.f32.mrf.mxu0
    %v2201 = vadd.f32 0.0, %v2200
    %2202 = vmatmul.f32.gmra.mxu0 %v716
    %v2203 = vpop.f32.mrf.mxu0
    %v2204 = vadd.f32 0.0, %v2203
    %2205 = vmatmul.f32.gmra.mxu0 %v718
    %v2206 = vpop.f32.mrf.mxu0
    %v2207 = vadd.f32 0.0, %v2206
    %2208 = vmatmul.f32.gmra.mxu0 %v720
    %v2209 = vpop.f32.mrf.mxu0
    %v2210 = vadd.f32 0.0, %v2209
    %2211 = vmatmul.f32.gmra.mxu0 %v722
    %v2212 = vpop.f32.mrf.mxu0
    %v2213 = vadd.f32 0.0, %v2212
    %2214 = vmatmul.f32.gmra.mxu0 %v724
    %v2215 = vpop.f32.mrf.mxu0
    %v2216 = vadd.f32 0.0, %v2215
    %2217 = vmatmul.f32.gmra.mxu0 %v726
    %v2218 = vpop.f32.mrf.mxu0
    %v2219 = vadd.f32 0.0, %v2218
    %2220 = vdwg.mxu0
    %v2221 = vmul.f32 %v2163, %v2201
    %v2222 = vmul.f32 %v2166, %v2204
    %v2223 = vmul.f32 %v2169, %v2207
    %v2224 = vmul.f32 %v2172, %v2210
    %v2225 = vmul.f32 %v2175, %v2213
    %v2226 = vmul.f32 %v2178, %v2216
    %v2227 = vmul.f32 %v2181, %v2219
    %2228 = vmatpush.msra.mxu0 0.0
    %2229 = vmatpush.msra.mxu0 0.0
    %2230 = vmatpush.msra.mxu0 0.0
    %2231 = vmatpush.msra.mxu0 0.0
    %2232 = vmatpush.msra.mxu0 0.0
    %2233 = vmatpush.msra.mxu0 0.0
    %2234 = vmatpush.msra.mxu0 0.0
    %2235 = vmatpush.msra.mxu0 0.0
    %2236 = vmatpush.msra.mxu0 0.0
    %2237 = vmatpush.msra.mxu0 0.0
    %2238 = vmatpush.msra.mxu0 0.0
    %2239 = vmatpush.msra.mxu0 0.0
    %2240 = vmatpush.msra.mxu0 0.0
    %2241 = vmatpush.msra.mxu0 0.0
    %2242 = vmatpush.msra.mxu0 0.0
    %2243 = vmatpush.msra.mxu0 %v50
    %2244 = vmatmul.f32.gmra.mxu0 %v832
    %v2245 = vpop.f32.mrf.mxu0
    %v2246 = vadd.f32 0.0, %v2245
    %2247 = vmatmul.f32.gmra.mxu0 %v834
    %v2248 = vpop.f32.mrf.mxu0
    %v2249 = vadd.f32 0.0, %v2248
    %2250 = vmatmul.f32.gmra.mxu0 %v836
    %v2251 = vpop.f32.mrf.mxu0
    %v2252 = vadd.f32 0.0, %v2251
    %2253 = vmatmul.f32.gmra.mxu0 %v838
    %v2254 = vpop.f32.mrf.mxu0
    %v2255 = vadd.f32 0.0, %v2254
    %2256 = vmatmul.f32.gmra.mxu0 %v840
    %v2257 = vpop.f32.mrf.mxu0
    %v2258 = vadd.f32 0.0, %v2257
    %2259 = vmatmul.f32.gmra.mxu0 %v842
    %v2260 = vpop.f32.mrf.mxu0
    %v2261 = vadd.f32 0.0, %v2260
    %2262 = vmatmul.f32.gmra.mxu0 %v844
    %v2263 = vpop.f32.mrf.mxu0
    %v2264 = vadd.f32 0.0, %v2263
    %2265 = vdwg.mxu0
    %2266 = vmatpush.msra.mxu0 0.0
    %2267 = vmatpush.msra.mxu0 0.0
    %2268 = vmatpush.msra.mxu0 0.0
    %2269 = vmatpush.msra.mxu0 0.0
    %2270 = vmatpush.msra.mxu0 0.0
    %2271 = vmatpush.msra.mxu0 0.0
    %2272 = vmatpush.msra.mxu0 0.0
    %2273 = vmatpush.msra.mxu0 0.0
    %2274 = vmatpush.msra.mxu0 0.0
    %2275 = vmatpush.msra.mxu0 0.0
    %2276 = vmatpush.msra.mxu0 0.0
    %2277 = vmatpush.msra.mxu0 0.0
    %2278 = vmatpush.msra.mxu0 0.0
    %2279 = vmatpush.msra.mxu0 0.0
    %2280 = vmatpush.msra.mxu0 0.0
    %2281 = vmatpush.msra.mxu0 %v51
    %2282 = vmatmul.f32.gmra.mxu0 %v832
    %v2283 = vpop.f32.mrf.mxu0
    %v2284 = vadd.f32 0.0, %v2283
    %2285 = vmatmul.f32.gmra.mxu0 %v834
    %v2286 = vpop.f32.mrf.mxu0
    %v2287 = vadd.f32 0.0, %v2286
    %2288 = vmatmul.f32.gmra.mxu0 %v836
    %v2289 = vpop.f32.mrf.mxu0
    %v2290 = vadd.f32 0.0, %v2289
    %2291 = vmatmul.f32.gmra.mxu0 %v838
    %v2292 = vpop.f32.mrf.mxu0
    %v2293 = vadd.f32 0.0, %v2292
    %2294 = vmatmul.f32.gmra.mxu0 %v840
    %v2295 = vpop.f32.mrf.mxu0
    %v2296 = vadd.f32 0.0, %v2295
    %2297 = vmatmul.f32.gmra.mxu0 %v842
    %v2298 = vpop.f32.mrf.mxu0
    %v2299 = vadd.f32 0.0, %v2298
    %2300 = vmatmul.f32.gmra.mxu0 %v844
    %v2301 = vpop.f32.mrf.mxu0
    %v2302 = vadd.f32 0.0, %v2301
    %2303 = vdwg.mxu0
    %v2304 = vmax.f32 %v2246, 0.0
    %v2305 = vmax.f32 %v2284, 0.0
    %v2306 = vmax.f32 %v2249, 0.0
    %v2307 = vmax.f32 %v2287, 0.0
    %v2308 = vmax.f32 %v2252, 0.0
    %v2309 = vmax.f32 %v2290, 0.0
    %v2310 = vmax.f32 %v2255, 0.0
    %v2311 = vmax.f32 %v2293, 0.0
    %v2312 = vmax.f32 %v2258, 0.0
    %v2313 = vmax.f32 %v2296, 0.0
    %v2314 = vmax.f32 %v2261, 0.0
    %v2315 = vmax.f32 %v2299, 0.0
    %v2316 = vmax.f32 %v2264, 0.0
    %v2317 = vmax.f32 %v2302, 0.0
    %2318 = vmatpush.msra.mxu0 %v372
    %2319 = vmatpush.msra.mxu0 %v370
    %2320 = vmatpush.msra.mxu0 %v368
    %2321 = vmatpush.msra.mxu0 %v366
    %2322 = vmatpush.msra.mxu0 %v364
    %2323 = vmatpush.msra.mxu0 %v362
    %2324 = vmatpush.msra.mxu0 %v360
    %2325 = vmatpush.msra.mxu0 %v358
    %2326 = vmatpush.msra.mxu0 %v356
    %2327 = vmatpush.msra.mxu0 %v354
    %2328 = vmatpush.msra.mxu0 %v352
    %2329 = vmatpush.msra.mxu0 %v350
    %2330 = vmatpush.msra.mxu0 %v348
    %2331 = vmatpush.msra.mxu0 %v346
    %2332 = vmatpush.msra.mxu0 %v344
    %2333 = vmatpush.msra.mxu0 %v342
    %2334 = vmatmul.f32.gmra.mxu0 %v2221
    %v2335 = vpop.f32.mrf.mxu0
    %v2336 = vadd.f32 0.0, %v2335
    %2337 = vmatmul.f32.gmra.mxu0 %v2222
    %v2338 = vpop.f32.mrf.mxu0
    %v2339 = vadd.f32 0.0, %v2338
    %2340 = vmatmul.f32.gmra.mxu0 %v2223
    %v2341 = vpop.f32.mrf.mxu0
    %v2342 = vadd.f32 0.0, %v2341
    %2343 = vmatmul.f32.gmra.mxu0 %v2224
    %v2344 = vpop.f32.mrf.mxu0
    %v2345 = vadd.f32 0.0, %v2344
    %2346 = vmatmul.f32.gmra.mxu0 %v2225
    %v2347 = vpop.f32.mrf.mxu0
    %v2348 = vadd.f32 0.0, %v2347
    %2349 = vmatmul.f32.gmra.mxu0 %v2226
    %v2350 = vpop.f32.mrf.mxu0
    %v2351 = vadd.f32 0.0, %v2350
    %2352 = vmatmul.f32.gmra.mxu0 %v2227
    %v2353 = vpop.f32.mrf.mxu0
    %v2354 = vadd.f32 0.0, %v2353
    %2355 = vdwg.mxu0
    %2356 = vmatpush.msra.mxu0 %v373
    %2357 = vmatpush.msra.mxu0 %v371
    %2358 = vmatpush.msra.mxu0 %v369
    %2359 = vmatpush.msra.mxu0 %v367
    %2360 = vmatpush.msra.mxu0 %v365
    %2361 = vmatpush.msra.mxu0 %v363
    %2362 = vmatpush.msra.mxu0 %v361
    %2363 = vmatpush.msra.mxu0 %v359
    %2364 = vmatpush.msra.mxu0 %v357
    %2365 = vmatpush.msra.mxu0 %v355
    %2366 = vmatpush.msra.mxu0 %v353
    %2367 = vmatpush.msra.mxu0 %v351
    %2368 = vmatpush.msra.mxu0 %v349
    %2369 = vmatpush.msra.mxu0 %v347
    %2370 = vmatpush.msra.mxu0 %v345
    %2371 = vmatpush.msra.mxu0 %v343
    %2372 = vmatmul.f32.gmra.mxu0 %v2221
    %v2373 = vpop.f32.mrf.mxu0
    %v2374 = vadd.f32 0.0, %v2373
    %2375 = vmatmul.f32.gmra.mxu0 %v2222
    %v2376 = vpop.f32.mrf.mxu0
    %v2377 = vadd.f32 0.0, %v2376
    %2378 = vmatmul.f32.gmra.mxu0 %v2223
    %v2379 = vpop.f32.mrf.mxu0
    %v2380 = vadd.f32 0.0, %v2379
    %2381 = vmatmul.f32.gmra.mxu0 %v2224
    %v2382 = vpop.f32.mrf.mxu0
    %v2383 = vadd.f32 0.0, %v2382
    %2384 = vmatmul.f32.gmra.mxu0 %v2225
    %v2385 = vpop.f32.mrf.mxu0
    %v2386 = vadd.f32 0.0, %v2385
    %2387 = vmatmul.f32.gmra.mxu0 %v2226
    %v2388 = vpop.f32.mrf.mxu0
    %v2389 = vadd.f32 0.0, %v2388
    %2390 = vmatmul.f32.gmra.mxu0 %v2227
    %v2391 = vpop.f32.mrf.mxu0
    %v2392 = vadd.f32 0.0, %v2391
    %2393 = vdwg.mxu0
    %v2394 = vld [vmem:[%s8] sm:$0xff]
    %v2395 = vld [vmem:[%s8 + $0x8] sm:$0xff]
    %v2396 = vld [vmem:[%s8 + $0x10] sm:$0xff]
    %v2397 = vld [vmem:[%s8 + $0x18] sm:$0xff]
    %v2398 = vld [vmem:[%s8 + $0x20] sm:$0xff]
    %v2399 = vld [vmem:[%s8 + $0x28] sm:$0xff]
    %v2400 = vld [vmem:[%s8 + $0x30] sm:$0xff]
    %v2401 = vld [vmem:[%s8 + $0x38] sm:$0xff]
    %v2402 = vld [vmem:[%s8 + $0x40] sm:$0xff]
    %v2403 = vld [vmem:[%s8 + $0x48] sm:$0xff]
    %v2404 = vld [vmem:[%s8 + $0x50] sm:$0xff]
    %v2405 = vld [vmem:[%s8 + $0x58] sm:$0xff]
    %v2406 = vld [vmem:[%s8 + $0x60] sm:$0xff]
    %v2407 = vld [vmem:[%s8 + $0x68] sm:$0xff]
    %v2408 = vld [vmem:[%s8 + $0x70] sm:$0xff]
    %v2409 = vld [vmem:[%s8 + $0x78] sm:$0xff]
    %v2410 = vld [vmem:[%s8 + $0x80] sm:$0xff]
    %v2411 = vld [vmem:[%s8 + $0x88] sm:$0xff]
    %v2412 = vld [vmem:[%s8 + $0x90] sm:$0xff]
    %v2413 = vld [vmem:[%s8 + $0x98] sm:$0xff]
    %v2414 = vld [vmem:[%s8 + $0xa0] sm:$0xff]
    %v2415 = vld [vmem:[%s8 + $0xa8] sm:$0xff]
    %v2416 = vld [vmem:[%s8 + $0xb0] sm:$0xff]
    %v2417 = vld [vmem:[%s8 + $0xb8] sm:$0xff]
    %v2418 = vld [vmem:[%s8 + $0xc0] sm:$0xff]
    %v2419 = vld [vmem:[%s8 + $0xc8] sm:$0xff]
    %v2420 = vld [vmem:[%s8 + $0xd0] sm:$0xff]
    %v2421 = vld [vmem:[%s8 + $0xd8] sm:$0xff]
    %v2422 = vld [vmem:[%s8 + $0xe0] sm:$0xff]
    %v2423 = vld [vmem:[%s8 + $0xe8] sm:$0xff]
    %v2424 = vld [vmem:[%s8 + $0xf0] sm:$0xff]
    %v2425 = vld [vmem:[%s8 + $0xf8] sm:$0xff]
    %v2426 = vld [vmem:[%s8 + $0x100] sm:$0xff]
    %v2427 = vld [vmem:[%s8 + $0x108] sm:$0xff]
    %v2428 = vld [vmem:[%s8 + $0x110] sm:$0xff]
    %v2429 = vld [vmem:[%s8 + $0x118] sm:$0xff]
    %v2430 = vld [vmem:[%s8 + $0x120] sm:$0xff]
    %v2431 = vld [vmem:[%s8 + $0x128] sm:$0xff]
    %v2432 = vld [vmem:[%s8 + $0x130] sm:$0xff]
    %v2433 = vld [vmem:[%s8 + $0x138] sm:$0xff]
    %v2434 = vld [vmem:[%s8 + $0x140] sm:$0xff]
    %v2435 = vld [vmem:[%s8 + $0x148] sm:$0xff]
    %v2436 = vld [vmem:[%s8 + $0x150] sm:$0xff]
    %v2437 = vld [vmem:[%s8 + $0x158] sm:$0xff]
    %v2438 = vld [vmem:[%s8 + $0x160] sm:$0xff]
    %v2439 = vld [vmem:[%s8 + $0x168] sm:$0xff]
    %v2440 = vld [vmem:[%s8 + $0x170] sm:$0xff]
    %v2441 = vld [vmem:[%s8 + $0x178] sm:$0xff]
    %v2442 = vld [vmem:[%s8 + $0x180] sm:$0xff]
    %v2443 = vld [vmem:[%s8 + $0x188] sm:$0xff]
    %v2444 = vld [vmem:[%s8 + $0x190] sm:$0xff]
    %v2445 = vld [vmem:[%s8 + $0x198] sm:$0xff]
    %v2446 = vld [vmem:[%s8 + $0x1a0] sm:$0xff]
    %v2447 = vld [vmem:[%s8 + $0x1a8] sm:$0xff]
    %v2448 = vld [vmem:[%s8 + $0x1b0] sm:$0xff]
    %v2449 = vld [vmem:[%s8 + $0x1b8] sm:$0xff]
    %v2450 = vld [vmem:[%s8 + $0x1c0] sm:$0xff]
    %v2451 = vld [vmem:[%s8 + $0x1c8] sm:$0xff]
    %v2452 = vld [vmem:[%s8 + $0x1d0] sm:$0xff]
    %v2453 = vld [vmem:[%s8 + $0x1d8] sm:$0xff]
    %v2454 = vld [vmem:[%s8 + $0x1e0] sm:$0xff]
    %v2455 = vld [vmem:[%s8 + $0x1e8] sm:$0xff]
    %v2456 = vld [vmem:[%s8 + $0x1f0] sm:$0xff]
    %v2457 = vld [vmem:[%s8 + $0x1f8] sm:$0xff]
    %2458 = vmatpush.msra.mxu0 %v2424
    %2459 = vmatpush.msra.mxu0 %v2422
    %2460 = vmatpush.msra.mxu0 %v2420
    %2461 = vmatpush.msra.mxu0 %v2418
    %2462 = vmatpush.msra.mxu0 %v2416
    %2463 = vmatpush.msra.mxu0 %v2414
    %2464 = vmatpush.msra.mxu0 %v2412
    %2465 = vmatpush.msra.mxu0 %v2410
    %2466 = vmatpush.msra.mxu0 %v2408
    %2467 = vmatpush.msra.mxu0 %v2406
    %2468 = vmatpush.msra.mxu0 %v2404
    %2469 = vmatpush.msra.mxu0 %v2402
    %2470 = vmatpush.msra.mxu0 %v2400
    %2471 = vmatpush.msra.mxu0 %v2398
    %2472 = vmatpush.msra.mxu0 %v2396
    %2473 = vmatpush.msra.mxu0 %v2394
    %2474 = vmatmul.f32.gmra.mxu0 %v2304
    %v2475 = vpop.f32.mrf.mxu0
    %v2476 = vadd.f32 0.0, %v2475
    %2477 = vmatmul.f32.gmra.mxu0 %v2306
    %v2478 = vpop.f32.mrf.mxu0
    %v2479 = vadd.f32 0.0, %v2478
    %2480 = vmatmul.f32.gmra.mxu0 %v2308
    %v2481 = vpop.f32.mrf.mxu0
    %v2482 = vadd.f32 0.0, %v2481
    %2483 = vmatmul.f32.gmra.mxu0 %v2310
    %v2484 = vpop.f32.mrf.mxu0
    %v2485 = vadd.f32 0.0, %v2484
    %2486 = vmatmul.f32.gmra.mxu0 %v2312
    %v2487 = vpop.f32.mrf.mxu0
    %v2488 = vadd.f32 0.0, %v2487
    %2489 = vmatmul.f32.gmra.mxu0 %v2314
    %v2490 = vpop.f32.mrf.mxu0
    %v2491 = vadd.f32 0.0, %v2490
    %2492 = vmatmul.f32.gmra.mxu0 %v2316
    %v2493 = vpop.f32.mrf.mxu0
    %v2494 = vadd.f32 0.0, %v2493
    %2495 = vdwg.mxu0
    %2496 = vmatpush.msra.mxu0 %v2456
    %2497 = vmatpush.msra.mxu0 %v2454
    %2498 = vmatpush.msra.mxu0 %v2452
    %2499 = vmatpush.msra.mxu0 %v2450
    %2500 = vmatpush.msra.mxu0 %v2448
    %2501 = vmatpush.msra.mxu0 %v2446
    %2502 = vmatpush.msra.mxu0 %v2444
    %2503 = vmatpush.msra.mxu0 %v2442
    %2504 = vmatpush.msra.mxu0 %v2440
    %2505 = vmatpush.msra.mxu0 %v2438
    %2506 = vmatpush.msra.mxu0 %v2436
    %2507 = vmatpush.msra.mxu0 %v2434
    %2508 = vmatpush.msra.mxu0 %v2432
    %2509 = vmatpush.msra.mxu0 %v2430
    %2510 = vmatpush.msra.mxu0 %v2428
    %2511 = vmatpush.msra.mxu0 %v2426
    %2512 = vmatmul.f32.gmra.mxu0 %v2305
    %v2513 = vpop.f32.mrf.mxu0
    %v2514 = vadd.f32 %v2476, %v2513
    %2515 = vmatmul.f32.gmra.mxu0 %v2307
    %v2516 = vpop.f32.mrf.mxu0
    %v2517 = vadd.f32 %v2479, %v2516
    %2518 = vmatmul.f32.gmra.mxu0 %v2309
    %v2519 = vpop.f32.mrf.mxu0
    %v2520 = vadd.f32 %v2482, %v2519
    %2521 = vmatmul.f32.gmra.mxu0 %v2311
    %v2522 = vpop.f32.mrf.mxu0
    %v2523 = vadd.f32 %v2485, %v2522
    %2524 = vmatmul.f32.gmra.mxu0 %v2313
    %v2525 = vpop.f32.mrf.mxu0
    %v2526 = vadd.f32 %v2488, %v2525
    %2527 = vmatmul.f32.gmra.mxu0 %v2315
    %v2528 = vpop.f32.mrf.mxu0
    %v2529 = vadd.f32 %v2491, %v2528
    %2530 = vmatmul.f32.gmra.mxu0 %v2317
    %v2531 = vpop.f32.mrf.mxu0
    %v2532 = vadd.f32 %v2494, %v2531
    %2533 = vdwg.mxu0
    %2534 = vmatpush.msra.mxu0 %v2425
    %2535 = vmatpush.msra.mxu0 %v2423
    %2536 = vmatpush.msra.mxu0 %v2421
    %2537 = vmatpush.msra.mxu0 %v2419
    %2538 = vmatpush.msra.mxu0 %v2417
    %2539 = vmatpush.msra.mxu0 %v2415
    %2540 = vmatpush.msra.mxu0 %v2413
    %2541 = vmatpush.msra.mxu0 %v2411
    %2542 = vmatpush.msra.mxu0 %v2409
    %2543 = vmatpush.msra.mxu0 %v2407
    %2544 = vmatpush.msra.mxu0 %v2405
    %2545 = vmatpush.msra.mxu0 %v2403
    %2546 = vmatpush.msra.mxu0 %v2401
    %2547 = vmatpush.msra.mxu0 %v2399
    %2548 = vmatpush.msra.mxu0 %v2397
    %2549 = vmatpush.msra.mxu0 %v2395
    %2550 = vmatmul.f32.gmra.mxu0 %v2304
    %v2551 = vpop.f32.mrf.mxu0
    %v2552 = vadd.f32 0.0, %v2551
    %2553 = vmatmul.f32.gmra.mxu0 %v2306
    %v2554 = vpop.f32.mrf.mxu0
    %v2555 = vadd.f32 0.0, %v2554
    %2556 = vmatmul.f32.gmra.mxu0 %v2308
    %v2557 = vpop.f32.mrf.mxu0
    %v2558 = vadd.f32 0.0, %v2557
    %2559 = vmatmul.f32.gmra.mxu0 %v2310
    %v2560 = vpop.f32.mrf.mxu0
    %v2561 = vadd.f32 0.0, %v2560
    %2562 = vmatmul.f32.gmra.mxu0 %v2312
    %v2563 = vpop.f32.mrf.mxu0
    %v2564 = vadd.f32 0.0, %v2563
    %2565 = vmatmul.f32.gmra.mxu0 %v2314
    %v2566 = vpop.f32.mrf.mxu0
    %v2567 = vadd.f32 0.0, %v2566
    %2568 = vmatmul.f32.gmra.mxu0 %v2316
    %v2569 = vpop.f32.mrf.mxu0
    %v2570 = vadd.f32 0.0, %v2569
    %2571 = vdwg.mxu0
    %2572 = vmatpush.msra.mxu0 %v2457
    %2573 = vmatpush.msra.mxu0 %v2455
    %2574 = vmatpush.msra.mxu0 %v2453
    %2575 = vmatpush.msra.mxu0 %v2451
    %2576 = vmatpush.msra.mxu0 %v2449
    %2577 = vmatpush.msra.mxu0 %v2447
    %2578 = vmatpush.msra.mxu0 %v2445
    %2579 = vmatpush.msra.mxu0 %v2443
    %2580 = vmatpush.msra.mxu0 %v2441
    %2581 = vmatpush.msra.mxu0 %v2439
    %2582 = vmatpush.msra.mxu0 %v2437
    %2583 = vmatpush.msra.mxu0 %v2435
    %2584 = vmatpush.msra.mxu0 %v2433
    %2585 = vmatpush.msra.mxu0 %v2431
    %2586 = vmatpush.msra.mxu0 %v2429
    %2587 = vmatpush.msra.mxu0 %v2427
    %2588 = vmatmul.f32.gmra.mxu0 %v2305
    %v2589 = vpop.f32.mrf.mxu0
    %v2590 = vadd.f32 %v2552, %v2589
    %2591 = vmatmul.f32.gmra.mxu0 %v2307
    %v2592 = vpop.f32.mrf.mxu0
    %v2593 = vadd.f32 %v2555, %v2592
    %2594 = vmatmul.f32.gmra.mxu0 %v2309
    %v2595 = vpop.f32.mrf.mxu0
    %v2596 = vadd.f32 %v2558, %v2595
    %2597 = vmatmul.f32.gmra.mxu0 %v2311
    %v2598 = vpop.f32.mrf.mxu0
    %v2599 = vadd.f32 %v2561, %v2598
    %2600 = vmatmul.f32.gmra.mxu0 %v2313
    %v2601 = vpop.f32.mrf.mxu0
    %v2602 = vadd.f32 %v2564, %v2601
    %2603 = vmatmul.f32.gmra.mxu0 %v2315
    %v2604 = vpop.f32.mrf.mxu0
    %v2605 = vadd.f32 %v2567, %v2604
    %2606 = vmatmul.f32.gmra.mxu0 %v2317
    %v2607 = vpop.f32.mrf.mxu0
    %v2608 = vadd.f32 %v2570, %v2607
    %2609 = vdwg.mxu0
    %v2610 = vmul.f32 %v2336, %v2514
    %v2611 = vmul.f32 %v2374, %v2590
    %v2612 = vmul.f32 %v2339, %v2517
    %v2613 = vmul.f32 %v2377, %v2593
    %v2614 = vmul.f32 %v2342, %v2520
    %v2615 = vmul.f32 %v2380, %v2596
    %v2616 = vmul.f32 %v2345, %v2523
    %v2617 = vmul.f32 %v2383, %v2599
    %v2618 = vmul.f32 %v2348, %v2526
    %v2619 = vmul.f32 %v2386, %v2602
    %v2620 = vmul.f32 %v2351, %v2529
    %v2621 = vmul.f32 %v2389, %v2605
    %v2622 = vmul.f32 %v2354, %v2532
    %v2623 = vmul.f32 %v2392, %v2608
    %v2625 = vsel %vm534, %v47, 0
    %2627 = vmatpush.msra.mxu0 0.0
    %2628 = vmatpush.msra.mxu0 0.0
    %2629 = vmatpush.msra.mxu0 0.0
    %2630 = vmatpush.msra.mxu0 0.0
    %2631 = vmatpush.msra.mxu0 0.0
    %2632 = vmatpush.msra.mxu0 0.0
    %2633 = vmatpush.msra.mxu0 0.0
    %2634 = vmatpush.msra.mxu0 0.0
    %2635 = vmatpush.msra.mxu0 0.0
    %2636 = vmatpush.msra.mxu0 %v2622
    %2637 = vmatpush.msra.mxu0 %v2620
    %2638 = vmatpush.msra.mxu0 %v2618
    %2639 = vmatpush.msra.mxu0 %v2616
    %2640 = vmatpush.msra.mxu0 %v2614
    %2641 = vmatpush.msra.mxu0 %v2612
    %2642 = vmatpush.msra.mxu0 %v2610
    %2643 = vmatmul.f32.gmra.mxu0 %v2625
    %v2644 = vpop.f32.mrf.mxu0
    %v2645 = vadd.f32 0.0, %v2644
    %2646 = vdwg.mxu0
    %2647 = vmatpush.msra.mxu0 0.0
    %2648 = vmatpush.msra.mxu0 0.0
    %2649 = vmatpush.msra.mxu0 0.0
    %2650 = vmatpush.msra.mxu0 0.0
    %2651 = vmatpush.msra.mxu0 0.0
    %2652 = vmatpush.msra.mxu0 0.0
    %2653 = vmatpush.msra.mxu0 0.0
    %2654 = vmatpush.msra.mxu0 0.0
    %2655 = vmatpush.msra.mxu0 0.0
    %2656 = vmatpush.msra.mxu0 %v2623
    %2657 = vmatpush.msra.mxu0 %v2621
    %2658 = vmatpush.msra.mxu0 %v2619
    %2659 = vmatpush.msra.mxu0 %v2617
    %2660 = vmatpush.msra.mxu0 %v2615
    %2661 = vmatpush.msra.mxu0 %v2613
    %2662 = vmatpush.msra.mxu0 %v2611
    %2663 = vmatmul.f32.gmra.mxu0 %v2625
    %v2664 = vpop.f32.mrf.mxu0
    %v2665 = vadd.f32 0.0, %v2664
    %2666 = vdwg.mxu0
    %v2667 = vld [vmem:[%s10] sm:$0xff]
    %v2668 = vld [vmem:[%s10 + $0x8] sm:$0xff]
    %v2669 = vld [vmem:[%s10 + $0x10] sm:$0xff]
    %v2670 = vld [vmem:[%s10 + $0x18] sm:$0xff]
    %v2671 = vld [vmem:[%s10 + $0x20] sm:$0xff]
    %v2672 = vld [vmem:[%s10 + $0x28] sm:$0xff]
    %v2673 = vld [vmem:[%s10 + $0x30] sm:$0xff]
    %v2674 = vld [vmem:[%s10 + $0x38] sm:$0xff]
    %v2675 = vld [vmem:[%s10 + $0x40] sm:$0xff]
    %v2676 = vld [vmem:[%s10 + $0x48] sm:$0xff]
    %v2677 = vld [vmem:[%s10 + $0x50] sm:$0xff]
    %v2678 = vld [vmem:[%s10 + $0x58] sm:$0xff]
    %v2679 = vld [vmem:[%s10 + $0x60] sm:$0xff]
    %v2680 = vld [vmem:[%s10 + $0x68] sm:$0xff]
    %v2681 = vld [vmem:[%s10 + $0x70] sm:$0xff]
    %v2682 = vld [vmem:[%s10 + $0x78] sm:$0xff]
    %v2683 = vld [vmem:[%s10 + $0x80] sm:$0xff]
    %v2684 = vld [vmem:[%s10 + $0x88] sm:$0xff]
    %v2685 = vld [vmem:[%s10 + $0x90] sm:$0xff]
    %v2686 = vld [vmem:[%s10 + $0x98] sm:$0xff]
    %v2687 = vld [vmem:[%s10 + $0xa0] sm:$0xff]
    %v2688 = vld [vmem:[%s10 + $0xa8] sm:$0xff]
    %v2689 = vld [vmem:[%s10 + $0xb0] sm:$0xff]
    %v2690 = vld [vmem:[%s10 + $0xb8] sm:$0xff]
    %v2691 = vld [vmem:[%s10 + $0xc0] sm:$0xff]
    %v2692 = vld [vmem:[%s10 + $0xc8] sm:$0xff]
    %v2693 = vld [vmem:[%s10 + $0xd0] sm:$0xff]
    %v2694 = vld [vmem:[%s10 + $0xd8] sm:$0xff]
    %v2695 = vld [vmem:[%s10 + $0xe0] sm:$0xff]
    %v2696 = vld [vmem:[%s10 + $0xe8] sm:$0xff]
    %v2697 = vld [vmem:[%s10 + $0xf0] sm:$0xff]
    %v2698 = vld [vmem:[%s10 + $0xf8] sm:$0xff]
    %2699 = vmatpush.msra.mxu0 %v2682
    %2700 = vmatpush.msra.mxu0 %v2681
    %2701 = vmatpush.msra.mxu0 %v2680
    %2702 = vmatpush.msra.mxu0 %v2679
    %2703 = vmatpush.msra.mxu0 %v2678
    %2704 = vmatpush.msra.mxu0 %v2677
    %2705 = vmatpush.msra.mxu0 %v2676
    %2706 = vmatpush.msra.mxu0 %v2675
    %2707 = vmatpush.msra.mxu0 %v2674
    %2708 = vmatpush.msra.mxu0 %v2673
    %2709 = vmatpush.msra.mxu0 %v2672
    %2710 = vmatpush.msra.mxu0 %v2671
    %2711 = vmatpush.msra.mxu0 %v2670
    %2712 = vmatpush.msra.mxu0 %v2669
    %2713 = vmatpush.msra.mxu0 %v2668
    %2714 = vmatpush.msra.mxu0 %v2667
    %2715 = vmatmul.f32.gmra.mxu0 %v2645
    %v2716 = vpop.f32.mrf.mxu0
    %v2717 = vadd.f32 0.0, %v2716
    %2718 = vdwg.mxu0
    %2719 = vmatpush.msra.mxu0 %v2698
    %2720 = vmatpush.msra.mxu0 %v2697
    %2721 = vmatpush.msra.mxu0 %v2696
    %2722 = vmatpush.msra.mxu0 %v2695
    %2723 = vmatpush.msra.mxu0 %v2694
    %2724 = vmatpush.msra.mxu0 %v2693
    %2725 = vmatpush.msra.mxu0 %v2692
    %2726 = vmatpush.msra.mxu0 %v2691
    %2727 = vmatpush.msra.mxu0 %v2690
    %2728 = vmatpush.msra.mxu0 %v2689
    %2729 = vmatpush.msra.mxu0 %v2688
    %2730 = vmatpush.msra.mxu0 %v2687
    %2731 = vmatpush.msra.mxu0 %v2686
    %2732 = vmatpush.msra.mxu0 %v2685
    %2733 = vmatpush.msra.mxu0 %v2684
    %2734 = vmatpush.msra.mxu0 %v2683
    %2735 = vmatmul.f32.gmra.mxu0 %v2665
    %v2736 = vpop.f32.mrf.mxu0
    %v2737 = vadd.f32 %v2717, %v2736
    %2738 = vdwg.mxu0
    %vm2739 = vcmask 50176
    %2740 = vst.msk [vmem:[#allocation2] sm:$0x3] %vm2739, %v2737
    // Predicated region
    $region46: #{network_forward.1} parent=1 // pred_check
      _
    $region47: #{network_forward.1} parent=1 // pred_check_branch
      %2742 = sbr.rel (0) target = $region49
    $region48: #{network_forward.1} parent=1 // pred_region
      %2744 = vsyncadd [#allocation3], 0
      %s2746 = sshll.u32 [#allocation2], 4
      %s2747 = int_to_ptr.vmem [resolvable:$true] %s2746
      %s2748 = sshll.u32 %s11, 4
      %s2749 = int_to_ptr.hbm [resolvable:$true] %s2748
      %2751 = dma.vmem_to_hbm [thread:$0]  %s2747, 32, %s2749, [#allocation3]
    $region49: #{network_forward.1} parent=1 // pred_fallthru
      _
    // Predicated region
    $region50: #{network_forward.1} parent=1 // pred_check
      _
    $region51: #{network_forward.1} parent=1 // pred_check_branch
      %2753 = sbr.rel (0) target = $region53
    $region52: #{network_forward.1} parent=1 // pred_region
      %2755 = dma.done [#allocation3], 32
    $region53: #{network_forward.1} parent=1 // pred_fallthru
      _
    %2756 = vsyncpa [#allocation3], 1

</llo_original>
